<compile_context>
chip_gen: v5e
topology: v5e:2x2
jax: 0.10.0
libtpu: 0.0.40
codegen_flags: <defaults>
</compile_context>

<pallas_src>
import functools

import jax
import jax.numpy as jnp
from jax import lax
from jax.experimental import pallas as pl
from jax.experimental.pallas import tpu as pltpu


# ----------------------------------------------------------------------------
# Fused kernel: stem (1x1 conv) -> detect head + decode -> da/ll seg heads.
# One batch element per grid step; all pixels (HWp, multiple of 128) per block.
# ----------------------------------------------------------------------------
def _yolop_fused_kernel(x_ref, ws_ref, bs_ref, wd_ref, bd_ref,
                        wda_ref, bda_ref, wll_ref, bll_ref,
                        dety_ref, detraw_ref, da_ref, ll_ref,
                        *, na, no, img_w, stride, anchors):
    """Refs:
      x_ref      : (1, HWp, C)       pixel rows, channels-last
      ws_ref     : (C, hidden)       stem weight        bs_ref : (1, hidden)
      wd_ref     : (na, hidden, no)  detect weights     bd_ref : (na, 1, no)
      wda/wll    : (2, hidden)       seg weights        bda/bll: (2, 1)
      dety_ref   : (1, na, HWp, no)  decoded detections
      detraw_ref : (1, na, HWp, no)  raw detect maps (Detect "features")
      da_ref     : (1, 2, HWp)       drivable-area logits (channel-major)
      ll_ref     : (1, 2, HWp)       lane-line logits
    """
    xr = x_ref[0]                                                    # (HWp, C)

    # --- stem: 1x1 conv == matmul + bias + ReLU; feat never leaves the chip --
    feat = jnp.dot(xr, ws_ref[...], preferred_element_type=jnp.float32)
    feat = jnp.maximum(feat + bs_ref[...], 0.0)                      # (HWp, hidden)

    # --- segmentation heads: (2,hidden) x (HWp,hidden)^T -> (2,HWp) ----------
    # rhs-transposed contraction keeps HW in the lane dim => lane-dense stores.
    nt = (((1,), (1,)), ((), ()))
    da_ref[0, :, :] = lax.dot_general(
        wda_ref[...], feat, nt, preferred_element_type=jnp.float32) + bda_ref[...]
    ll_ref[0, :, :] = lax.dot_general(
        wll_ref[...], feat, nt, preferred_element_type=jnp.float32) + bll_ref[...]

    # --- detect head + YOLO decode (grid offsets from an in-kernel iota) -----
    hwp = xr.shape[0]
    c_idx = lax.broadcasted_iota(jnp.int32, (hwp, no), 1)            # box channel
    pix = lax.broadcasted_iota(jnp.int32, (hwp, no), 0).astype(jnp.float32)
    gy = jnp.floor(pix / float(img_w))                               # grid y
    gx = pix - gy * float(img_w)                                     # grid x
    grid_val = jnp.where(c_idx == 0, gx, gy)

    for a in range(na):                                              # static unroll
        raw = jnp.dot(feat, wd_ref[a],
                      preferred_element_type=jnp.float32) + bd_ref[a]    # (HWp, no)
        detraw_ref[0, a, :, :] = raw
        s = jax.nn.sigmoid(raw)
        # anchors are pixel-space (like YOLOv5 anchor_grid) => no stride factor
        anc = jnp.where(c_idx == 2, anchors[a][0], anchors[a][1])
        xy = (s * 2.0 - 0.5 + grid_val) * stride
        wh = (s * 2.0) ** 2 * anc
        dety_ref[0, a, :, :] = jnp.where(c_idx < 2, xy,
                                         jnp.where(c_idx < 4, wh, s))


# ----------------------------------------------------------------------------
# Synthetic YOLOP model + YOLOPPrediction wrapper (task-based output selection)
# ----------------------------------------------------------------------------
class YOLOPPredictionPallas:
    def __init__(self, task, key, *, in_ch=4, hidden=32, na=3, nc=3, stride=8.0):
        self.task = task
        self.na = na
        self.nc = nc
        self.no = 5 + nc            # 8: x, y, w, h, obj, classes...
        self.stride = float(stride)
        self.hidden = hidden

        k = jax.random.split(key, 8)
        s = 0.1
        w_stem = s * jax.random.normal(k[0], (in_ch, hidden), jnp.float32)
        b_stem = s * jax.random.normal(k[1], (hidden,), jnp.float32)
        w_det = s * jax.random.normal(k[2], (hidden, na * self.no), jnp.float32)
        b_det = s * jax.random.normal(k[3], (na * self.no,), jnp.float32)
        w_da = s * jax.random.normal(k[4], (hidden, 2), jnp.float32)
        b_da = s * jax.random.normal(k[5], (2,), jnp.float32)
        w_ll = s * jax.random.normal(k[6], (hidden, 2), jnp.float32)
        b_ll = s * jax.random.normal(k[7], (2,), jnp.float32)

        # kernel-ready layouts (prepared once, host side)
        self.w_stem = w_stem                                       # (C, hidden)
        self.b_stem = b_stem.reshape(1, hidden)                    # (1, hidden)
        self.w_det = jnp.transpose(                                # (na, hidden, no)
            w_det.reshape(hidden, na, self.no), (1, 0, 2))
        self.b_det = b_det.reshape(na, 1, self.no)                 # (na, 1, no)
        self.w_da = w_da.T                                         # (2, hidden)
        self.b_da = b_da.reshape(2, 1)                             # (2, 1)
        self.w_ll = w_ll.T
        self.b_ll = b_ll.reshape(2, 1)

        # deterministic YOLO anchors in pixel units (anchor_grid values)
        self.anchors = ((10.0, 13.0), (16.0, 30.0), (33.0, 23.0))[:na]

        self._fwd = jax.jit(self._forward)

    def _model(self, x):
        B, C, H, W = x.shape
        HW = H * W
        HWp = ((HW + 127) // 128) * 128       # lane-pad HW to a multiple of 128
        na, no, hidden = self.na, self.no, self.hidden

        # NCHW -> channels-last pixel rows (B, HWp, C): the only XLA relayout.
        rows = jnp.transpose(x, (0, 2, 3, 1)).reshape(B, HW, C)
        if HWp != HW:
            rows = jnp.pad(rows, ((0, 0), (0, HWp - HW), (0, 0)))

        kern = functools.partial(
            _yolop_fused_kernel, na=na, no=no, img_w=W,
            stride=self.stride, anchors=self.anchors)

        def full(shape):
            return pl.BlockSpec(shape, lambda b: (0,) * len(shape))

        dety, detraw, da, ll = pl.pallas_call(
            kern,
            out_shape=(
                jax.ShapeDtypeStruct((B, na, HWp, no), jnp.float32),
                jax.ShapeDtypeStruct((B, na, HWp, no), jnp.float32),
                jax.ShapeDtypeStruct((B, 2, HWp), jnp.float32),
                jax.ShapeDtypeStruct((B, 2, HWp), jnp.float32),
            ),
            grid_spec=pltpu.PrefetchScalarGridSpec(
                num_scalar_prefetch=0,
                grid=(B,),
                in_specs=[
                    pl.BlockSpec((1, HWp, C), lambda b: (b, 0, 0)),
                    full((C, hidden)), full((1, hidden)),
                    full((na, hidden, no)), full((na, 1, no)),
                    full((2, hidden)), full((2, 1)),
                    full((2, hidden)), full((2, 1)),
                ],
                out_specs=(
                    pl.BlockSpec((1, na, HWp, no), lambda b: (b, 0, 0, 0)),
                    pl.BlockSpec((1, na, HWp, no), lambda b: (b, 0, 0, 0)),
                    pl.BlockSpec((1, 2, HWp), lambda b: (b, 0, 0)),
                    pl.BlockSpec((1, 2, HWp), lambda b: (b, 0, 0)),
                ),
            ),
            compiler_params=pltpu.CompilerParams(
                dimension_semantics=("parallel",)),
        )(rows, self.w_stem, self.b_stem, self.w_det, self.b_det,
          self.w_da, self.b_da, self.w_ll, self.b_ll)

        # un-pad + cheap reshapes only (no output transposes)
        det_pred = dety[:, :, :HW, :].reshape(B, na * HW, no)    # torch: view(bs,-1,no)
        det_feats = [detraw[:, :, :HW, :].reshape(B, na, H, W, no)]
        da_seg = da[:, :, :HW].reshape(B, 2, H, W)               # NCHW
        ll_seg = ll[:, :, :HW].reshape(B, 2, H, W)               # NCHW
        return (det_pred, det_feats), da_seg, ll_seg

    def _forward(self, x):
        out = self._model(x)
        if self.task == "det":
            return out[0][0]
        elif self.task == "da_seg":
            return out[1]
        elif self.task == "ll_seg":
            return out[2]
        else:
            return out

    def __call__(self, x):
        return self._fwd(x)


if __name__ == "__main__":
    key = jax.random.PRNGKey(0)
    kx, kp = jax.random.split(key)
    # small NCHW input consistent with a conv-based model
    x = jax.random.normal(kx, (2, 4, 16, 16), jnp.float32)

    det = YOLOPPredictionPallas("det", kp)(x)
    da = YOLOPPredictionPallas("da_seg", kp)(x)
    ll = YOLOPPredictionPallas("ll_seg", kp)(x)

    jax.block_until_ready((det, da, ll))
    assert det.shape == (2, 3 * 16 * 16, 8)
    assert da.shape == (2, 2, 16, 16)
    assert ll.shape == (2, 2, 16, 16)
    print("KERNEL_OK")
</pallas_src>

<mosaic_0001>
module attributes {stable_mosaic.version = 11 : i64} {
  func.func @_yolop_fused_kernel(%arg0: i32, %arg1: memref<1x256x4xf32, #tpu.memory_space<vmem>>, %arg2: memref<4x32xf32, #tpu.memory_space<vmem>>, %arg3: memref<1x32xf32, #tpu.memory_space<vmem>>, %arg4: memref<3x32x8xf32, #tpu.memory_space<vmem>>, %arg5: memref<3x1x8xf32, #tpu.memory_space<vmem>>, %arg6: memref<2x32xf32, #tpu.memory_space<vmem>>, %arg7: memref<2x1xf32, #tpu.memory_space<vmem>>, %arg8: memref<2x32xf32, #tpu.memory_space<vmem>>, %arg9: memref<2x1xf32, #tpu.memory_space<vmem>>, %arg10: memref<1x3x256x8xf32, #tpu.memory_space<vmem>>, %arg11: memref<1x3x256x8xf32, #tpu.memory_space<vmem>>, %arg12: memref<1x2x256xf32, #tpu.memory_space<vmem>>, %arg13: memref<1x2x256xf32, #tpu.memory_space<vmem>>) attributes {dimension_semantics = [#tpu.dimension_semantics<parallel>], iteration_bounds = array<i64: 2>, scalar_prefetch = 0 : i64, scratch_operands = 0 : i64, tpu.core_type = #tpu.core_type<tc>, window_params = [{transform_indices = @transform_0, window_bounds = array<i64: 1, 256, 4>}, {pipeline_mode = #tpu.pipeline_mode<synchronous>, transform_indices = @transform_1, window_bounds = array<i64: 4, 32>}, {pipeline_mode = #tpu.pipeline_mode<synchronous>, transform_indices = @transform_2, window_bounds = array<i64: 1, 32>}, {pipeline_mode = #tpu.pipeline_mode<synchronous>, transform_indices = @transform_3, window_bounds = array<i64: 3, 32, 8>}, {pipeline_mode = #tpu.pipeline_mode<synchronous>, transform_indices = @transform_4, window_bounds = array<i64: 3, 1, 8>}, {pipeline_mode = #tpu.pipeline_mode<synchronous>, transform_indices = @transform_5, window_bounds = array<i64: 2, 32>}, {pipeline_mode = #tpu.pipeline_mode<synchronous>, transform_indices = @transform_6, window_bounds = array<i64: 2, 1>}, {pipeline_mode = #tpu.pipeline_mode<synchronous>, transform_indices = @transform_7, window_bounds = array<i64: 2, 32>}, {pipeline_mode = #tpu.pipeline_mode<synchronous>, transform_indices = @transform_8, window_bounds = array<i64: 2, 1>}, {transform_indices = @transform_9, window_bounds = array<i64: 1, 3, 256, 8>}, {transform_indices = @transform_10, window_bounds = array<i64: 1, 3, 256, 8>}, {transform_indices = @transform_11, window_bounds = array<i64: 1, 2, 256>}, {transform_indices = @transform_12, window_bounds = array<i64: 1, 2, 256>}]} {
    %c0 = arith.constant 0 : index
    %c0_0 = arith.constant 0 : index
    %c0_1 = arith.constant 0 : index
    %0 = vector.load %arg1[%c0, %c0_0, %c0_1] : memref<1x256x4xf32, #tpu.memory_space<vmem>>, vector<1x256x4xf32>
    %1 = vector.shape_cast %0 : vector<1x256x4xf32> to vector<256x4xf32>
    %c0_2 = arith.constant 0 : index
    %c0_3 = arith.constant 0 : index
    %2 = vector.load %arg2[%c0_2, %c0_3] : memref<4x32xf32, #tpu.memory_space<vmem>>, vector<4x32xf32>
    %cst = arith.constant dense<0.000000e+00> : vector<256x32xf32>
    %3 = tpu.matmul %1, %2, %cst {dimension_numbers = #tpu.dot_dimension_numbers<[1], [0], [0], [1], [0, 0, 1, 1], [], []>} : vector<256x4xf32>, vector<4x32xf32>, vector<256x32xf32> -> vector<256x32xf32>
    %c0_4 = arith.constant 0 : index
    %c0_5 = arith.constant 0 : index
    %4 = vector.load %arg3[%c0_4, %c0_5] : memref<1x32xf32, #tpu.memory_space<vmem>>, vector<1x32xf32>
    %5 = vector.broadcast %4 : vector<1x32xf32> to vector<256x32xf32>
    %6 = arith.addf %3, %5 : vector<256x32xf32>
    %cst_6 = arith.constant 0.000000e+00 : f32
    %7 = vector.broadcast %cst_6 : f32 to vector<256x32xf32>
    %8 = arith.maximumf %6, %7 : vector<256x32xf32>
    %c0_7 = arith.constant 0 : index
    %c0_8 = arith.constant 0 : index
    %9 = vector.load %arg6[%c0_7, %c0_8] : memref<2x32xf32, #tpu.memory_space<vmem>>, vector<2x32xf32>
    %cst_9 = arith.constant dense<0.000000e+00> : vector<2x256xf32>
    %10 = tpu.matmul %9, %8, %cst_9 {dimension_numbers = #tpu.dot_dimension_numbers<[1], [1], [0], [0], [0, 0, 1, 0], [], []>} : vector<2x32xf32>, vector<256x32xf32>, vector<2x256xf32> -> vector<2x256xf32>
    %c0_10 = arith.constant 0 : index
    %c0_11 = arith.constant 0 : index
    %11 = vector.load %arg7[%c0_10, %c0_11] : memref<2x1xf32, #tpu.memory_space<vmem>>, vector<2x1xf32>
    %12 = vector.broadcast %11 : vector<2x1xf32> to vector<2x256xf32>
    %13 = arith.addf %10, %12 : vector<2x256xf32>
    %c0_12 = arith.constant 0 : index
    %c0_13 = arith.constant 0 : index
    %c0_14 = arith.constant 0 : index
    %14 = vector.load %arg12[%c0_12, %c0_13, %c0_14] : memref<1x2x256xf32, #tpu.memory_space<vmem>>, vector<1x2x256xf32>
    %15 = vector.shape_cast %14 : vector<1x2x256xf32> to vector<2x256xf32>
    %16 = vector.shape_cast %13 : vector<2x256xf32> to vector<1x2x256xf32>
    tpu.vector_store %arg12[%c0_12, %c0_13, %c0_14], %16 {strides = array<i32>} : memref<1x2x256xf32, #tpu.memory_space<vmem>>, vector<1x2x256xf32>,
    %c0_15 = arith.constant 0 : index
    %c0_16 = arith.constant 0 : index
    %17 = vector.load %arg8[%c0_15, %c0_16] : memref<2x32xf32, #tpu.memory_space<vmem>>, vector<2x32xf32>
    %cst_17 = arith.constant dense<0.000000e+00> : vector<2x256xf32>
    %18 = tpu.matmul %17, %8, %cst_17 {dimension_numbers = #tpu.dot_dimension_numbers<[1], [1], [0], [0], [0, 0, 1, 0], [], []>} : vector<2x32xf32>, vector<256x32xf32>, vector<2x256xf32> -> vector<2x256xf32>
    %c0_18 = arith.constant 0 : index
    %c0_19 = arith.constant 0 : index
    %19 = vector.load %arg9[%c0_18, %c0_19] : memref<2x1xf32, #tpu.memory_space<vmem>>, vector<2x1xf32>
    %20 = vector.broadcast %19 : vector<2x1xf32> to vector<2x256xf32>
    %21 = arith.addf %18, %20 : vector<2x256xf32>
    %c0_20 = arith.constant 0 : index
    %c0_21 = arith.constant 0 : index
    %c0_22 = arith.constant 0 : index
    %22 = vector.load %arg13[%c0_20, %c0_21, %c0_22] : memref<1x2x256xf32, #tpu.memory_space<vmem>>, vector<1x2x256xf32>
    %23 = vector.shape_cast %22 : vector<1x2x256xf32> to vector<2x256xf32>
    %24 = vector.shape_cast %21 : vector<2x256xf32> to vector<1x2x256xf32>
    tpu.vector_store %arg13[%c0_20, %c0_21, %c0_22], %24 {strides = array<i32>} : memref<1x2x256xf32, #tpu.memory_space<vmem>>, vector<1x2x256xf32>,
    %25 = tpu.iota {dimensions = array<i32: 1>} : vector<256x8xi32>
    %26 = tpu.iota {dimensions = array<i32: 0>} : vector<256x8xi32>
    %27 = arith.sitofp %26 : vector<256x8xi32> to vector<256x8xf32>
    %cst_23 = arith.constant 1.600000e+01 : f32
    %28 = vector.broadcast %cst_23 : f32 to vector<256x8xf32>
    %29 = arith.divf %27, %28 : vector<256x8xf32>
    %30 = math.floor %29 : vector<256x8xf32>
    %cst_24 = arith.constant 1.600000e+01 : f32
    %31 = vector.broadcast %cst_24 : f32 to vector<256x8xf32>
    %32 = arith.mulf %30, %31 : vector<256x8xf32>
    %33 = arith.subf %27, %32 : vector<256x8xf32>
    %c0_i32 = arith.constant 0 : i32
    %34 = vector.broadcast %c0_i32 : i32 to vector<256x8xi32>
    %35 = arith.cmpi eq, %25, %34 : vector<256x8xi32>
    %36 = arith.select %35, %33, %30 : vector<256x8xi1>, vector<256x8xf32>
    %c0_25 = arith.constant 0 : index
    %c0_26 = arith.constant 0 : index
    %c0_27 = arith.constant 0 : index
    %37 = vector.load %arg4[%c0_25, %c0_26, %c0_27] : memref<3x32x8xf32, #tpu.memory_space<vmem>>, vector<1x32x8xf32>
    %38 = vector.shape_cast %37 : vector<1x32x8xf32> to vector<32x8xf32>
    %cst_28 = arith.constant dense<0.000000e+00> : vector<256x8xf32>
    %39 = tpu.matmul %8, %38, %cst_28 {dimension_numbers = #tpu.dot_dimension_numbers<[1], [0], [0], [1], [0, 0, 1, 1], [], []>} : vector<256x32xf32>, vector<32x8xf32>, vector<256x8xf32> -> vector<256x8xf32>
    %c0_29 = arith.constant 0 : index
    %c0_30 = arith.constant 0 : index
    %c0_31 = arith.constant 0 : index
    %40 = vector.load %arg5[%c0_29, %c0_30, %c0_31] : memref<3x1x8xf32, #tpu.memory_space<vmem>>, vector<1x1x8xf32>
    %41 = vector.shape_cast %40 : vector<1x1x8xf32> to vector<1x8xf32>
    %42 = vector.broadcast %41 : vector<1x8xf32> to vector<256x8xf32>
    %43 = arith.addf %39, %42 : vector<256x8xf32>
    %c0_32 = arith.constant 0 : index
    %c0_33 = arith.constant 0 : index
    %c0_34 = arith.constant 0 : index
    %c0_35 = arith.constant 0 : index
    %44 = vector.load %arg11[%c0_32, %c0_33, %c0_34, %c0_35] : memref<1x3x256x8xf32, #tpu.memory_space<vmem>>, vector<1x1x256x8xf32>
    %45 = vector.shape_cast %44 : vector<1x1x256x8xf32> to vector<256x8xf32>
    %46 = vector.shape_cast %43 : vector<256x8xf32> to vector<1x1x256x8xf32>
    tpu.vector_store %arg11[%c0_32, %c0_33, %c0_34, %c0_35], %46 {strides = array<i32>} : memref<1x3x256x8xf32, #tpu.memory_space<vmem>>, vector<1x1x256x8xf32>,
    %47 = arith.negf %43 : vector<256x8xf32>
    %48 = math.exp %47 : vector<256x8xf32>
    %cst_36 = arith.constant 1.000000e+00 : f32
    %49 = vector.broadcast %cst_36 : f32 to vector<256x8xf32>
    %50 = arith.addf %49, %48 : vector<256x8xf32>
    %51 = arith.divf %49, %50 : vector<256x8xf32>
    %c2_i32 = arith.constant 2 : i32
    %52 = vector.broadcast %c2_i32 : i32 to vector<256x8xi32>
    %53 = arith.cmpi eq, %25, %52 : vector<256x8xi32>
    %cst_37 = arith.constant 1.000000e+01 : f32
    %cst_38 = arith.constant 1.300000e+01 : f32
    %54 = vector.broadcast %cst_37 : f32 to vector<256x8xf32>
    %55 = vector.broadcast %cst_38 : f32 to vector<256x8xf32>
    %56 = arith.select %53, %54, %55 : vector<256x8xi1>, vector<256x8xf32>
    %cst_39 = arith.constant 2.000000e+00 : f32
    %57 = vector.broadcast %cst_39 : f32 to vector<256x8xf32>
    %58 = arith.mulf %51, %57 : vector<256x8xf32>
    %cst_40 = arith.constant 5.000000e-01 : f32
    %59 = vector.broadcast %cst_40 : f32 to vector<256x8xf32>
    %60 = arith.subf %58, %59 : vector<256x8xf32>
    %61 = arith.addf %60, %36 : vector<256x8xf32>
    %cst_41 = arith.constant 8.000000e+00 : f32
    %62 = vector.broadcast %cst_41 : f32 to vector<256x8xf32>
    %63 = arith.mulf %61, %62 : vector<256x8xf32>
    %cst_42 = arith.constant 2.000000e+00 : f32
    %64 = vector.broadcast %cst_42 : f32 to vector<256x8xf32>
    %65 = arith.mulf %51, %64 : vector<256x8xf32>
    %66 = arith.mulf %65, %65 : vector<256x8xf32>
    %67 = arith.mulf %66, %56 : vector<256x8xf32>
    %c2_i32_43 = arith.constant 2 : i32
    %68 = vector.broadcast %c2_i32_43 : i32 to vector<256x8xi32>
    %69 = arith.cmpi slt, %25, %68 : vector<256x8xi32>
    %c4_i32 = arith.constant 4 : i32
    %70 = vector.broadcast %c4_i32 : i32 to vector<256x8xi32>
    %71 = arith.cmpi slt, %25, %70 : vector<256x8xi32>
    %72 = arith.select %71, %67, %51 : vector<256x8xi1>, vector<256x8xf32>
    %73 = arith.select %69, %63, %72 : vector<256x8xi1>, vector<256x8xf32>
    %c0_44 = arith.constant 0 : index
    %c0_45 = arith.constant 0 : index
    %c0_46 = arith.constant 0 : index
    %c0_47 = arith.constant 0 : index
    %74 = vector.load %arg10[%c0_44, %c0_45, %c0_46, %c0_47] : memref<1x3x256x8xf32, #tpu.memory_space<vmem>>, vector<1x1x256x8xf32>
    %75 = vector.shape_cast %74 : vector<1x1x256x8xf32> to vector<256x8xf32>
    %76 = vector.shape_cast %73 : vector<256x8xf32> to vector<1x1x256x8xf32>
    tpu.vector_store %arg10[%c0_44, %c0_45, %c0_46, %c0_47], %76 {strides = array<i32>} : memref<1x3x256x8xf32, #tpu.memory_space<vmem>>, vector<1x1x256x8xf32>,
    %c1 = arith.constant 1 : index
    %c0_48 = arith.constant 0 : index
    %c0_49 = arith.constant 0 : index
    %77 = vector.load %arg4[%c1, %c0_48, %c0_49] : memref<3x32x8xf32, #tpu.memory_space<vmem>>, vector<1x32x8xf32>
    %78 = vector.shape_cast %77 : vector<1x32x8xf32> to vector<32x8xf32>
    %cst_50 = arith.constant dense<0.000000e+00> : vector<256x8xf32>
    %79 = tpu.matmul %8, %78, %cst_50 {dimension_numbers = #tpu.dot_dimension_numbers<[1], [0], [0], [1], [0, 0, 1, 1], [], []>} : vector<256x32xf32>, vector<32x8xf32>, vector<256x8xf32> -> vector<256x8xf32>
    %c1_51 = arith.constant 1 : index
    %c0_52 = arith.constant 0 : index
    %c0_53 = arith.constant 0 : index
    %80 = vector.load %arg5[%c1_51, %c0_52, %c0_53] : memref<3x1x8xf32, #tpu.memory_space<vmem>>, vector<1x1x8xf32>
    %81 = vector.shape_cast %80 : vector<1x1x8xf32> to vector<1x8xf32>
    %82 = vector.broadcast %81 : vector<1x8xf32> to vector<256x8xf32>
    %83 = arith.addf %79, %82 : vector<256x8xf32>
    %c0_54 = arith.constant 0 : index
    %c1_55 = arith.constant 1 : index
    %c0_56 = arith.constant 0 : index
    %c0_57 = arith.constant 0 : index
    %84 = vector.load %arg11[%c0_54, %c1_55, %c0_56, %c0_57] : memref<1x3x256x8xf32, #tpu.memory_space<vmem>>, vector<1x1x256x8xf32>
    %85 = vector.shape_cast %84 : vector<1x1x256x8xf32> to vector<256x8xf32>
    %86 = vector.shape_cast %83 : vector<256x8xf32> to vector<1x1x256x8xf32>
    tpu.vector_store %arg11[%c0_54, %c1_55, %c0_56, %c0_57], %86 {strides = array<i32>} : memref<1x3x256x8xf32, #tpu.memory_space<vmem>>, vector<1x1x256x8xf32>,
    %87 = arith.negf %83 : vector<256x8xf32>
    %88 = math.exp %87 : vector<256x8xf32>
    %cst_58 = arith.constant 1.000000e+00 : f32
    %89 = vector.broadcast %cst_58 : f32 to vector<256x8xf32>
    %90 = arith.addf %89, %88 : vector<256x8xf32>
    %91 = arith.divf %89, %90 : vector<256x8xf32>
    %c2_i32_59 = arith.constant 2 : i32
    %92 = vector.broadcast %c2_i32_59 : i32 to vector<256x8xi32>
    %93 = arith.cmpi eq, %25, %92 : vector<256x8xi32>
    %cst_60 = arith.constant 1.600000e+01 : f32
    %cst_61 = arith.constant 3.000000e+01 : f32
    %94 = vector.broadcast %cst_60 : f32 to vector<256x8xf32>
    %95 = vector.broadcast %cst_61 : f32 to vector<256x8xf32>
    %96 = arith.select %93, %94, %95 : vector<256x8xi1>, vector<256x8xf32>
    %cst_62 = arith.constant 2.000000e+00 : f32
    %97 = vector.broadcast %cst_62 : f32 to vector<256x8xf32>
    %98 = arith.mulf %91, %97 : vector<256x8xf32>
    %cst_63 = arith.constant 5.000000e-01 : f32
    %99 = vector.broadcast %cst_63 : f32 to vector<256x8xf32>
    %100 = arith.subf %98, %99 : vector<256x8xf32>
    %101 = arith.addf %100, %36 : vector<256x8xf32>
    %cst_64 = arith.constant 8.000000e+00 : f32
    %102 = vector.broadcast %cst_64 : f32 to vector<256x8xf32>
    %103 = arith.mulf %101, %102 : vector<256x8xf32>
    %cst_65 = arith.constant 2.000000e+00 : f32
    %104 = vector.broadcast %cst_65 : f32 to vector<256x8xf32>
    %105 = arith.mulf %91, %104 : vector<256x8xf32>
    %106 = arith.mulf %105, %105 : vector<256x8xf32>
    %107 = arith.mulf %106, %96 : vector<256x8xf32>
    %c2_i32_66 = arith.constant 2 : i32
    %108 = vector.broadcast %c2_i32_66 : i32 to vector<256x8xi32>
    %109 = arith.cmpi slt, %25, %108 : vector<256x8xi32>
    %c4_i32_67 = arith.constant 4 : i32
    %110 = vector.broadcast %c4_i32_67 : i32 to vector<256x8xi32>
    %111 = arith.cmpi slt, %25, %110 : vector<256x8xi32>
    %112 = arith.select %111, %107, %91 : vector<256x8xi1>, vector<256x8xf32>
    %113 = arith.select %109, %103, %112 : vector<256x8xi1>, vector<256x8xf32>
    %c0_68 = arith.constant 0 : index
    %c1_69 = arith.constant 1 : index
    %c0_70 = arith.constant 0 : index
    %c0_71 = arith.constant 0 : index
    %114 = vector.load %arg10[%c0_68, %c1_69, %c0_70, %c0_71] : memref<1x3x256x8xf32, #tpu.memory_space<vmem>>, vector<1x1x256x8xf32>
    %115 = vector.shape_cast %114 : vector<1x1x256x8xf32> to vector<256x8xf32>
    %116 = vector.shape_cast %113 : vector<256x8xf32> to vector<1x1x256x8xf32>
    tpu.vector_store %arg10[%c0_68, %c1_69, %c0_70, %c0_71], %116 {strides = array<i32>} : memref<1x3x256x8xf32, #tpu.memory_space<vmem>>, vector<1x1x256x8xf32>,
    %c2 = arith.constant 2 : index
    %c0_72 = arith.constant 0 : index
    %c0_73 = arith.constant 0 : index
    %117 = vector.load %arg4[%c2, %c0_72, %c0_73] : memref<3x32x8xf32, #tpu.memory_space<vmem>>, vector<1x32x8xf32>
    %118 = vector.shape_cast %117 : vector<1x32x8xf32> to vector<32x8xf32>
    %cst_74 = arith.constant dense<0.000000e+00> : vector<256x8xf32>
    %119 = tpu.matmul %8, %118, %cst_74 {dimension_numbers = #tpu.dot_dimension_numbers<[1], [0], [0], [1], [0, 0, 1, 1], [], []>} : vector<256x32xf32>, vector<32x8xf32>, vector<256x8xf32> -> vector<256x8xf32>
    %c2_75 = arith.constant 2 : index
    %c0_76 = arith.constant 0 : index
    %c0_77 = arith.constant 0 : index
    %120 = vector.load %arg5[%c2_75, %c0_76, %c0_77] : memref<3x1x8xf32, #tpu.memory_space<vmem>>, vector<1x1x8xf32>
    %121 = vector.shape_cast %120 : vector<1x1x8xf32> to vector<1x8xf32>
    %122 = vector.broadcast %121 : vector<1x8xf32> to vector<256x8xf32>
    %123 = arith.addf %119, %122 : vector<256x8xf32>
    %c0_78 = arith.constant 0 : index
    %c2_79 = arith.constant 2 : index
    %c0_80 = arith.constant 0 : index
    %c0_81 = arith.constant 0 : index
    %124 = vector.load %arg11[%c0_78, %c2_79, %c0_80, %c0_81] : memref<1x3x256x8xf32, #tpu.memory_space<vmem>>, vector<1x1x256x8xf32>
    %125 = vector.shape_cast %124 : vector<1x1x256x8xf32> to vector<256x8xf32>
    %126 = vector.shape_cast %123 : vector<256x8xf32> to vector<1x1x256x8xf32>
    tpu.vector_store %arg11[%c0_78, %c2_79, %c0_80, %c0_81], %126 {strides = array<i32>} : memref<1x3x256x8xf32, #tpu.memory_space<vmem>>, vector<1x1x256x8xf32>,
    %127 = arith.negf %123 : vector<256x8xf32>
    %128 = math.exp %127 : vector<256x8xf32>
    %cst_82 = arith.constant 1.000000e+00 : f32
    %129 = vector.broadcast %cst_82 : f32 to vector<256x8xf32>
    %130 = arith.addf %129, %128 : vector<256x8xf32>
    %131 = arith.divf %129, %130 : vector<256x8xf32>
    %c2_i32_83 = arith.constant 2 : i32
    %132 = vector.broadcast %c2_i32_83 : i32 to vector<256x8xi32>
    %133 = arith.cmpi eq, %25, %132 : vector<256x8xi32>
    %cst_84 = arith.constant 3.300000e+01 : f32
    %cst_85 = arith.constant 2.300000e+01 : f32
    %134 = vector.broadcast %cst_84 : f32 to vector<256x8xf32>
    %135 = vector.broadcast %cst_85 : f32 to vector<256x8xf32>
    %136 = arith.select %133, %134, %135 : vector<256x8xi1>, vector<256x8xf32>
    %cst_86 = arith.constant 2.000000e+00 : f32
    %137 = vector.broadcast %cst_86 : f32 to vector<256x8xf32>
    %138 = arith.mulf %131, %137 : vector<256x8xf32>
    %cst_87 = arith.constant 5.000000e-01 : f32
    %139 = vector.broadcast %cst_87 : f32 to vector<256x8xf32>
    %140 = arith.subf %138, %139 : vector<256x8xf32>
    %141 = arith.addf %140, %36 : vector<256x8xf32>
    %cst_88 = arith.constant 8.000000e+00 : f32
    %142 = vector.broadcast %cst_88 : f32 to vector<256x8xf32>
    %143 = arith.mulf %141, %142 : vector<256x8xf32>
    %cst_89 = arith.constant 2.000000e+00 : f32
    %144 = vector.broadcast %cst_89 : f32 to vector<256x8xf32>
    %145 = arith.mulf %131, %144 : vector<256x8xf32>
    %146 = arith.mulf %145, %145 : vector<256x8xf32>
    %147 = arith.mulf %146, %136 : vector<256x8xf32>
    %c2_i32_90 = arith.constant 2 : i32
    %148 = vector.broadcast %c2_i32_90 : i32 to vector<256x8xi32>
    %149 = arith.cmpi slt, %25, %148 : vector<256x8xi32>
    %c4_i32_91 = arith.constant 4 : i32
    %150 = vector.broadcast %c4_i32_91 : i32 to vector<256x8xi32>
    %151 = arith.cmpi slt, %25, %150 : vector<256x8xi32>
    %152 = arith.select %151, %147, %131 : vector<256x8xi1>, vector<256x8xf32>
    %153 = arith.select %149, %143, %152 : vector<256x8xi1>, vector<256x8xf32>
    %c0_92 = arith.constant 0 : index
    %c2_93 = arith.constant 2 : index
    %c0_94 = arith.constant 0 : index
    %c0_95 = arith.constant 0 : index
    %154 = vector.load %arg10[%c0_92, %c2_93, %c0_94, %c0_95] : memref<1x3x256x8xf32, #tpu.memory_space<vmem>>, vector<1x1x256x8xf32>
    %155 = vector.shape_cast %154 : vector<1x1x256x8xf32> to vector<256x8xf32>
    %156 = vector.shape_cast %153 : vector<256x8xf32> to vector<1x1x256x8xf32>
    tpu.vector_store %arg10[%c0_92, %c2_93, %c0_94, %c0_95], %156 {strides = array<i32>} : memref<1x3x256x8xf32, #tpu.memory_space<vmem>>, vector<1x1x256x8xf32>,
    return
  }
  func.func @transform_0(%arg0: i32) -> (i32, i32, i32) {
    %c0_i32 = arith.constant 0 : i32
    %c0_i32_0 = arith.constant 0 : i32
    %c0_i32_1 = arith.constant 0 : i32
    return %arg0, %c0_i32, %c0_i32_0 : i32, i32, i32
  }
  func.func @transform_1(%arg0: i32) -> (i32, i32) {
    %c0_i32 = arith.constant 0 : i32
    %c0_i32_0 = arith.constant 0 : i32
    %c0_i32_1 = arith.constant 0 : i32
    return %c0_i32, %c0_i32_0 : i32, i32
  }
  func.func @transform_2(%arg0: i32) -> (i32, i32) {
    %c0_i32 = arith.constant 0 : i32
    %c0_i32_0 = arith.constant 0 : i32
    %c0_i32_1 = arith.constant 0 : i32
    return %c0_i32, %c0_i32_0 : i32, i32
  }
  func.func @transform_3(%arg0: i32) -> (i32, i32, i32) {
    %c0_i32 = arith.constant 0 : i32
    %c0_i32_0 = arith.constant 0 : i32
    %c0_i32_1 = arith.constant 0 : i32
    %c0_i32_2 = arith.constant 0 : i32
    return %c0_i32, %c0_i32_0, %c0_i32_1 : i32, i32, i32
  }
  func.func @transform_4(%arg0: i32) -> (i32, i32, i32) {
    %c0_i32 = arith.constant 0 : i32
    %c0_i32_0 = arith.constant 0 : i32
    %c0_i32_1 = arith.constant 0 : i32
    %c0_i32_2 = arith.constant 0 : i32
    return %c0_i32, %c0_i32_0, %c0_i32_1 : i32, i32, i32
  }
  func.func @transform_5(%arg0: i32) -> (i32, i32) {
    %c0_i32 = arith.constant 0 : i32
    %c0_i32_0 = arith.constant 0 : i32
    %c0_i32_1 = arith.constant 0 : i32
    return %c0_i32, %c0_i32_0 : i32, i32
  }
  func.func @transform_6(%arg0: i32) -> (i32, i32) {
    %c0_i32 = arith.constant 0 : i32
    %c0_i32_0 = arith.constant 0 : i32
    %c0_i32_1 = arith.constant 0 : i32
    return %c0_i32, %c0_i32_0 : i32, i32
  }
  func.func @transform_7(%arg0: i32) -> (i32, i32) {
    %c0_i32 = arith.constant 0 : i32
    %c0_i32_0 = arith.constant 0 : i32
    %c0_i32_1 = arith.constant 0 : i32
    return %c0_i32, %c0_i32_0 : i32, i32
  }
  func.func @transform_8(%arg0: i32) -> (i32, i32) {
    %c0_i32 = arith.constant 0 : i32
    %c0_i32_0 = arith.constant 0 : i32
    %c0_i32_1 = arith.constant 0 : i32
    return %c0_i32, %c0_i32_0 : i32, i32
  }
  func.func @transform_9(%arg0: i32) -> (i32, i32, i32, i32) {
    %c0_i32 = arith.constant 0 : i32
    %c0_i32_0 = arith.constant 0 : i32
    %c0_i32_1 = arith.constant 0 : i32
    %c0_i32_2 = arith.constant 0 : i32
    return %arg0, %c0_i32, %c0_i32_0, %c0_i32_1 : i32, i32, i32, i32
  }
  func.func @transform_10(%arg0: i32) -> (i32, i32, i32, i32) {
    %c0_i32 = arith.constant 0 : i32
    %c0_i32_0 = arith.constant 0 : i32
    %c0_i32_1 = arith.constant 0 : i32
    %c0_i32_2 = arith.constant 0 : i32
    return %arg0, %c0_i32, %c0_i32_0, %c0_i32_1 : i32, i32, i32, i32
  }
  func.func @transform_11(%arg0: i32) -> (i32, i32, i32) {
    %c0_i32 = arith.constant 0 : i32
    %c0_i32_0 = arith.constant 0 : i32
    %c0_i32_1 = arith.constant 0 : i32
    return %arg0, %c0_i32, %c0_i32_0 : i32, i32, i32
  }
  func.func @transform_12(%arg0: i32) -> (i32, i32, i32) {
    %c0_i32 = arith.constant 0 : i32
    %c0_i32_0 = arith.constant 0 : i32
    %c0_i32_1 = arith.constant 0 : i32
    return %arg0, %c0_i32, %c0_i32_0 : i32, i32, i32
  }
}

</mosaic_0001>

<llo_original>
// kernel: _forward.1
$region0: #{_forward.1}
  #allocation0 [shape = 'u32[]', space=smem, size = 0x4, offset = 0x4, fixed_abs, tag = 'smem constant byte address 0x4 - core index']
  #allocation1 [shape = 'u32[72,128]{1,0:T(1,128)}', space=vmem, size = 0x9000, scoped, tag = 'internal scratch']
  %s0 = inlined_call_operand.vmem [shape: f32[2,256,4], index: 0, kind: input, shape index: {}]
  %s1 = inlined_call_operand.vmem [shape: f32[4,32], index: 1, kind: input, shape index: {}]
  %s2 = inlined_call_operand.vmem [shape: f32[1,32], index: 2, kind: input, shape index: {}]
  %s3 = inlined_call_operand.vmem [shape: f32[3,32,8], index: 3, kind: input, shape index: {}]
  %s4 = inlined_call_operand.vmem [shape: f32[3,1,8], index: 4, kind: input, shape index: {}]
  %s5 = inlined_call_operand.vmem [shape: f32[2,32], index: 5, kind: input, shape index: {}]
  %s6 = inlined_call_operand.vmem [shape: f32[2,1], index: 6, kind: input, shape index: {}]
  %s7 = inlined_call_operand.vmem [shape: f32[2,32], index: 7, kind: input, shape index: {}]
  %s8 = inlined_call_operand.vmem [shape: f32[2,1], index: 8, kind: input, shape index: {}]
  %s9 = inlined_call_operand.vmem [shape: f32[2,3,256,8], index: 9, kind: output, shape index: {0}]
  %s10 = inlined_call_operand.hbm [shape: f32[2,3,256,8], index: 10, kind: output, shape index: {1}]
  %s11 = inlined_call_operand.hbm [shape: f32[2,2,256], index: 11, kind: output, shape index: {2}]
  %s12 = inlined_call_operand.hbm [shape: f32[2,2,256], index: 12, kind: output, shape index: {3}]
  %13 = xla_tuple %s9, %s10, %s11, %s12
  %s14 = sld [smem:[#allocation0]]
  $region93: #{_forward.1} parent=0
    _
  %s16 = ssub.s32 1, %s14
  %s17 = scalar_select 0, %s16, %s14
  $region1: #{_forward.1} parent=0
    #allocation2 [shape = 'u8[786432]{0}', space=vmem, size = 0xc0000, scoped, tag = 'output window, operand 1']
    #allocation3 [shape = 's32[2]{0}', space=sflag, size = 0x8, scoped, tag = 'scoped memory for _forward.1']
    #allocation4 [shape = 'u8[4096]{0}', space=vmem, size = 0x1000, scoped, tag = 'output window, operand 2']
    #allocation5 [shape = 's32[2]{0}', space=sflag, size = 0x8, scoped, tag = 'scoped memory for _forward.1']
    #allocation6 [shape = 'u8[4096]{0}', space=vmem, size = 0x1000, scoped, tag = 'output window, operand 3']
    %18 = vsyncpa [#allocation3], 0
    %s19 = scalar_lea.sflag [#allocation3], 1
    %20 = vsyncpa %s19, 0
    %21 = vsyncpa [#allocation5], 0
    %s22 = scalar_lea.sflag [#allocation5], 1
    %23 = vsyncpa %s22, 0
    loop: start=0, step=1, limit=4
    $region2: #{_forward.1} parent=1 // loop_pre_header
      _
    $region3: #{_forward.1} parent=1 // loop_header
      %s25 = sphi 0, %s29
      %p26 = scmp.ge.s32.totalorder %s25, 4
      %s35 = sphi 0, %s37
      %s38 = sphi 0, %s35
      %s39 = sphi 0, %s38
      %s55 = sphi 0, %s39
      %s59 = sphi 0, %s59
      %s61 = sphi 0, %s59
      %s62 = sphi 0, %s61
      %s76 = sphi 0, %s62
      %s80 = sphi 0, %s80
      %s82 = sphi 0, %s80
      %s83 = sphi 0, %s82
      %s97 = sphi 0, %s83
      %s101 = sphi 0, %s101
      %s103 = sphi 0, %s101
      %s104 = sphi 0, %s103
      %s118 = sphi 0, %s104
      %s122 = sphi 0, %s122
      %s124 = sphi 0, %s122
      %s125 = sphi 0, %s124
      %s139 = sphi 0, %s125
      %s143 = sphi 0, %s143
      %s145 = sphi 0, %s143
      %s146 = sphi 0, %s145
      %s160 = sphi 0, %s146
      %s164 = sphi 0, %s164
      %s166 = sphi 0, %s164
      %s167 = sphi 0, %s166
      %s181 = sphi 0, %s167
      %s185 = sphi 0, %s185
      %s187 = sphi 0, %s185
      %s188 = sphi 0, %s187
      %s202 = sphi 0, %s188
      %s206 = sphi 0, %s206
      %s208 = sphi 0, %s206
      %s209 = sphi 0, %s208
      %s223 = sphi 0, %s209
      %s229 = sphi 0, %s231
      %s232 = sphi 0, %s229
      %s233 = sphi 0, %s232
      %s249 = sphi 0, %s233
      %s255 = sphi 0, %s257
      %s258 = sphi 0, %s255
      %s259 = sphi 0, %s258
      %s275 = sphi 0, %s259
      %s281 = sphi 0, %s283
      %s284 = sphi 0, %s281
      %s285 = sphi 0, %s284
      %s301 = sphi 0, %s285
      %s307 = sphi 0, %s309
      %s310 = sphi 0, %s307
      %s311 = sphi 0, %s310
      %s327 = sphi 0, %s311
    $region4: #{_forward.1} parent=1 // loop_header_branch
      %28 = sbr.rel (%p26) target = $region8
    $region5: #{_forward.1} parent=1 // loop_body
      %s30 = ssub.s32 %s25, 1
      %s31 = ssub.s32 %s25, 2
      %s32 = sadd.s32 %s25, 1
      %s33 = ssub.s32 %s25, %s32
      %p34 = scmp.eq.s32.totalorder %s33, 0
      %s36 = sadd.s32 %s35, 1
      %s37 = scalar_select %p34, %s35, %s36
      %p40 = pneg %p34
      %p41 = scmp.eq.s32.totalorder %s25, 1
      %p42 = por %p40, %p41
      %p43 = scmp.ne.s32.totalorder %s35, %s38
      %p44 = scmp.eq.s32.totalorder %s25, 0
      %p45 = por %p43, %p44
      %p46 = scmp.ne.s32.totalorder %s35, %s38
      %p47 = scmp.eq.s32.totalorder %s30, 1
      %p48 = por %p46, %p47
      %p49 = scmp.ne.s32.totalorder %s38, %s39
      %p50 = scmp.eq.s32.totalorder %s30, 0
      %p51 = por %p49, %p50
      %p52 = scmp.ne.s32.totalorder %s38, %s39
      %p53 = scmp.eq.s32.totalorder %s31, 1
      %p54 = por %p52, %p53
      %p56 = scmp.ne.s32.totalorder %s39, %s55
      %p57 = scmp.eq.s32.totalorder %s31, 0
      %p58 = por %p56, %p57
      %s60 = sadd.s32 %s59, 1
      %p63 = scmp.eq.s32.totalorder %s25, 1
      %p64 = scmp.ne.s32.totalorder %s59, %s61
      %p65 = scmp.eq.s32.totalorder %s25, 0
      %p66 = por %p64, %p65
      %p67 = scmp.ne.s32.totalorder %s59, %s61
      %p68 = scmp.eq.s32.totalorder %s30, 1
      %p69 = por %p67, %p68
      %p70 = scmp.ne.s32.totalorder %s61, %s62
      %p71 = scmp.eq.s32.totalorder %s30, 0
      %p72 = por %p70, %p71
      %p73 = scmp.ne.s32.totalorder %s61, %s62
      %p74 = scmp.eq.s32.totalorder %s31, 1
      %p75 = por %p73, %p74
      %p77 = scmp.ne.s32.totalorder %s62, %s76
      %p78 = scmp.eq.s32.totalorder %s31, 0
      %p79 = por %p77, %p78
      %s81 = sadd.s32 %s80, 1
      %p84 = scmp.eq.s32.totalorder %s25, 1
      %p85 = scmp.ne.s32.totalorder %s80, %s82
      %p86 = scmp.eq.s32.totalorder %s25, 0
      %p87 = por %p85, %p86
      %p88 = scmp.ne.s32.totalorder %s80, %s82
      %p89 = scmp.eq.s32.totalorder %s30, 1
      %p90 = por %p88, %p89
      %p91 = scmp.ne.s32.totalorder %s82, %s83
      %p92 = scmp.eq.s32.totalorder %s30, 0
      %p93 = por %p91, %p92
      %p94 = scmp.ne.s32.totalorder %s82, %s83
      %p95 = scmp.eq.s32.totalorder %s31, 1
      %p96 = por %p94, %p95
      %p98 = scmp.ne.s32.totalorder %s83, %s97
      %p99 = scmp.eq.s32.totalorder %s31, 0
      %p100 = por %p98, %p99
      %s102 = sadd.s32 %s101, 1
      %p105 = scmp.eq.s32.totalorder %s25, 1
      %p106 = scmp.ne.s32.totalorder %s101, %s103
      %p107 = scmp.eq.s32.totalorder %s25, 0
      %p108 = por %p106, %p107
      %p109 = scmp.ne.s32.totalorder %s101, %s103
      %p110 = scmp.eq.s32.totalorder %s30, 1
      %p111 = por %p109, %p110
      %p112 = scmp.ne.s32.totalorder %s103, %s104
      %p113 = scmp.eq.s32.totalorder %s30, 0
      %p114 = por %p112, %p113
      %p115 = scmp.ne.s32.totalorder %s103, %s104
      %p116 = scmp.eq.s32.totalorder %s31, 1
      %p117 = por %p115, %p116
      %p119 = scmp.ne.s32.totalorder %s104, %s118
      %p120 = scmp.eq.s32.totalorder %s31, 0
      %p121 = por %p119, %p120
      %s123 = sadd.s32 %s122, 1
      %p126 = scmp.eq.s32.totalorder %s25, 1
      %p127 = scmp.ne.s32.totalorder %s122, %s124
      %p128 = scmp.eq.s32.totalorder %s25, 0
      %p129 = por %p127, %p128
      %p130 = scmp.ne.s32.totalorder %s122, %s124
      %p131 = scmp.eq.s32.totalorder %s30, 1
      %p132 = por %p130, %p131
      %p133 = scmp.ne.s32.totalorder %s124, %s125
      %p134 = scmp.eq.s32.totalorder %s30, 0
      %p135 = por %p133, %p134
      %p136 = scmp.ne.s32.totalorder %s124, %s125
      %p137 = scmp.eq.s32.totalorder %s31, 1
      %p138 = por %p136, %p137
      %p140 = scmp.ne.s32.totalorder %s125, %s139
      %p141 = scmp.eq.s32.totalorder %s31, 0
      %p142 = por %p140, %p141
      %s144 = sadd.s32 %s143, 1
      %p147 = scmp.eq.s32.totalorder %s25, 1
      %p148 = scmp.ne.s32.totalorder %s143, %s145
      %p149 = scmp.eq.s32.totalorder %s25, 0
      %p150 = por %p148, %p149
      %p151 = scmp.ne.s32.totalorder %s143, %s145
      %p152 = scmp.eq.s32.totalorder %s30, 1
      %p153 = por %p151, %p152
      %p154 = scmp.ne.s32.totalorder %s145, %s146
      %p155 = scmp.eq.s32.totalorder %s30, 0
      %p156 = por %p154, %p155
      %p157 = scmp.ne.s32.totalorder %s145, %s146
      %p158 = scmp.eq.s32.totalorder %s31, 1
      %p159 = por %p157, %p158
      %p161 = scmp.ne.s32.totalorder %s146, %s160
      %p162 = scmp.eq.s32.totalorder %s31, 0
      %p163 = por %p161, %p162
      %s165 = sadd.s32 %s164, 1
      %p168 = scmp.eq.s32.totalorder %s25, 1
      %p169 = scmp.ne.s32.totalorder %s164, %s166
      %p170 = scmp.eq.s32.totalorder %s25, 0
      %p171 = por %p169, %p170
      %p172 = scmp.ne.s32.totalorder %s164, %s166
      %p173 = scmp.eq.s32.totalorder %s30, 1
      %p174 = por %p172, %p173
      %p175 = scmp.ne.s32.totalorder %s166, %s167
      %p176 = scmp.eq.s32.totalorder %s30, 0
      %p177 = por %p175, %p176
      %p178 = scmp.ne.s32.totalorder %s166, %s167
      %p179 = scmp.eq.s32.totalorder %s31, 1
      %p180 = por %p178, %p179
      %p182 = scmp.ne.s32.totalorder %s167, %s181
      %p183 = scmp.eq.s32.totalorder %s31, 0
      %p184 = por %p182, %p183
      %s186 = sadd.s32 %s185, 1
      %p189 = scmp.eq.s32.totalorder %s25, 1
      %p190 = scmp.ne.s32.totalorder %s185, %s187
      %p191 = scmp.eq.s32.totalorder %s25, 0
      %p192 = por %p190, %p191
      %p193 = scmp.ne.s32.totalorder %s185, %s187
      %p194 = scmp.eq.s32.totalorder %s30, 1
      %p195 = por %p193, %p194
      %p196 = scmp.ne.s32.totalorder %s187, %s188
      %p197 = scmp.eq.s32.totalorder %s30, 0
      %p198 = por %p196, %p197
      %p199 = scmp.ne.s32.totalorder %s187, %s188
      %p200 = scmp.eq.s32.totalorder %s31, 1
      %p201 = por %p199, %p200
      %p203 = scmp.ne.s32.totalorder %s188, %s202
      %p204 = scmp.eq.s32.totalorder %s31, 0
      %p205 = por %p203, %p204
      %s207 = sadd.s32 %s206, 1
      %p210 = scmp.eq.s32.totalorder %s25, 1
      %p211 = scmp.ne.s32.totalorder %s206, %s208
      %p212 = scmp.eq.s32.totalorder %s25, 0
      %p213 = por %p211, %p212
      %p214 = scmp.ne.s32.totalorder %s206, %s208
      %p215 = scmp.eq.s32.totalorder %s30, 1
      %p216 = por %p214, %p215
      %p217 = scmp.ne.s32.totalorder %s208, %s209
      %p218 = scmp.eq.s32.totalorder %s30, 0
      %p219 = por %p217, %p218
      %p220 = scmp.ne.s32.totalorder %s208, %s209
      %p221 = scmp.eq.s32.totalorder %s31, 1
      %p222 = por %p220, %p221
      %p224 = scmp.ne.s32.totalorder %s209, %s223
      %p225 = scmp.eq.s32.totalorder %s31, 0
      %p226 = por %p224, %p225
      %s227 = ssub.s32 %s25, %s32
      %p228 = scmp.eq.s32.totalorder %s227, 0
      %s230 = sadd.s32 %s229, 1
      %s231 = scalar_select %p228, %s229, %s230
      %p234 = pneg %p228
      %p235 = scmp.eq.s32.totalorder %s25, 1
      %p236 = por %p234, %p235
      %p237 = scmp.ne.s32.totalorder %s229, %s232
      %p238 = scmp.eq.s32.totalorder %s25, 0
      %p239 = por %p237, %p238
      %p240 = scmp.ne.s32.totalorder %s229, %s232
      %p241 = scmp.eq.s32.totalorder %s30, 1
      %p242 = por %p240, %p241
      %p243 = scmp.ne.s32.totalorder %s232, %s233
      %p244 = scmp.eq.s32.totalorder %s30, 0
      %p245 = por %p243, %p244
      %p246 = scmp.ne.s32.totalorder %s232, %s233
      %p247 = scmp.eq.s32.totalorder %s31, 1
      %p248 = por %p246, %p247
      %p250 = scmp.ne.s32.totalorder %s233, %s249
      %p251 = scmp.eq.s32.totalorder %s31, 0
      %p252 = por %p250, %p251
      %s253 = ssub.s32 %s25, %s32
      %p254 = scmp.eq.s32.totalorder %s253, 0
      %s256 = sadd.s32 %s255, 1
      %s257 = scalar_select %p254, %s255, %s256
      %p260 = pneg %p254
      %p261 = scmp.eq.s32.totalorder %s25, 1
      %p262 = por %p260, %p261
      %p263 = scmp.ne.s32.totalorder %s255, %s258
      %p264 = scmp.eq.s32.totalorder %s25, 0
      %p265 = por %p263, %p264
      %p266 = scmp.ne.s32.totalorder %s255, %s258
      %p267 = scmp.eq.s32.totalorder %s30, 1
      %p268 = por %p266, %p267
      %p269 = scmp.ne.s32.totalorder %s258, %s259
      %p270 = scmp.eq.s32.totalorder %s30, 0
      %p271 = por %p269, %p270
      %p272 = scmp.ne.s32.totalorder %s258, %s259
      %p273 = scmp.eq.s32.totalorder %s31, 1
      %p274 = por %p272, %p273
      %p276 = scmp.ne.s32.totalorder %s259, %s275
      %p277 = scmp.eq.s32.totalorder %s31, 0
      %p278 = por %p276, %p277
      %s279 = ssub.s32 %s25, %s32
      %p280 = scmp.eq.s32.totalorder %s279, 0
      %s282 = sadd.s32 %s281, 1
      %s283 = scalar_select %p280, %s281, %s282
      %p286 = pneg %p280
      %p287 = scmp.eq.s32.totalorder %s25, 1
      %p288 = por %p286, %p287
      %p289 = scmp.ne.s32.totalorder %s281, %s284
      %p290 = scmp.eq.s32.totalorder %s25, 0
      %p291 = por %p289, %p290
      %p292 = scmp.ne.s32.totalorder %s281, %s284
      %p293 = scmp.eq.s32.totalorder %s30, 1
      %p294 = por %p292, %p293
      %p295 = scmp.ne.s32.totalorder %s284, %s285
      %p296 = scmp.eq.s32.totalorder %s30, 0
      %p297 = por %p295, %p296
      %p298 = scmp.ne.s32.totalorder %s284, %s285
      %p299 = scmp.eq.s32.totalorder %s31, 1
      %p300 = por %p298, %p299
      %p302 = scmp.ne.s32.totalorder %s285, %s301
      %p303 = scmp.eq.s32.totalorder %s31, 0
      %p304 = por %p302, %p303
      %s305 = ssub.s32 %s25, %s32
      %p306 = scmp.eq.s32.totalorder %s305, 0
      %s308 = sadd.s32 %s307, 1
      %s309 = scalar_select %p306, %s307, %s308
      %p312 = pneg %p306
      %p313 = scmp.eq.s32.totalorder %s25, 1
      %p314 = por %p312, %p313
      %p315 = scmp.ne.s32.totalorder %s307, %s310
      %p316 = scmp.eq.s32.totalorder %s25, 0
      %p317 = por %p315, %p316
      %p318 = scmp.ne.s32.totalorder %s307, %s310
      %p319 = scmp.eq.s32.totalorder %s30, 1
      %p320 = por %p318, %p319
      %p321 = scmp.ne.s32.totalorder %s310, %s311
      %p322 = scmp.eq.s32.totalorder %s30, 0
      %p323 = por %p321, %p322
      %p324 = scmp.ne.s32.totalorder %s310, %s311
      %p325 = scmp.eq.s32.totalorder %s31, 1
      %p326 = por %p324, %p325
      %p328 = scmp.ne.s32.totalorder %s311, %s327
      %p329 = scmp.eq.s32.totalorder %s31, 0
      %p330 = por %p328, %p329
      %p331 = scmp.le.s32.totalorder 1, %s25
      %p332 = scmp.lt.s32.totalorder %s25, 3
      %p333 = pnand %p331, %p332
      %p334 = pneg %p333
      // Predicated region
      $region9: #{_forward.1} parent=5 // pred_check
        _
      $region10: #{_forward.1} parent=5 // pred_check_branch
        %336 = sbr.rel (%p333) target = $region12
      $region11: #{_forward.1} parent=5 // pred_region
        %s337 = ssub.s32 %s25, 1
        // Predicated region
        $region13: #{_forward.1} parent=11 // pred_check
          %p338 = pneg %p72
        $region14: #{_forward.1} parent=11 // pred_check_branch
          %340 = sbr.rel (%p338) target = $region16
        $region15: #{_forward.1} parent=11 // pred_region
          _
        $region16: #{_forward.1} parent=11 // pred_fallthru
          _
        // Predicated region
        $region17: #{_forward.1} parent=11 // pred_check
          %p341 = pneg %p93
        $region18: #{_forward.1} parent=11 // pred_check_branch
          %343 = sbr.rel (%p341) target = $region20
        $region19: #{_forward.1} parent=11 // pred_region
          _
        $region20: #{_forward.1} parent=11 // pred_fallthru
          _
        // Predicated region
        $region21: #{_forward.1} parent=11 // pred_check
          %p344 = pneg %p114
        $region22: #{_forward.1} parent=11 // pred_check_branch
          %346 = sbr.rel (%p344) target = $region24
        $region23: #{_forward.1} parent=11 // pred_region
          _
        $region24: #{_forward.1} parent=11 // pred_fallthru
          _
        // Predicated region
        $region25: #{_forward.1} parent=11 // pred_check
          %p347 = pneg %p135
        $region26: #{_forward.1} parent=11 // pred_check_branch
          %349 = sbr.rel (%p347) target = $region28
        $region27: #{_forward.1} parent=11 // pred_region
          _
        $region28: #{_forward.1} parent=11 // pred_fallthru
          _
        // Predicated region
        $region29: #{_forward.1} parent=11 // pred_check
          %p350 = pneg %p156
        $region30: #{_forward.1} parent=11 // pred_check_branch
          %352 = sbr.rel (%p350) target = $region32
        $region31: #{_forward.1} parent=11 // pred_region
          _
        $region32: #{_forward.1} parent=11 // pred_fallthru
          _
        // Predicated region
        $region33: #{_forward.1} parent=11 // pred_check
          %p353 = pneg %p177
        $region34: #{_forward.1} parent=11 // pred_check_branch
          %355 = sbr.rel (%p353) target = $region36
        $region35: #{_forward.1} parent=11 // pred_region
          _
        $region36: #{_forward.1} parent=11 // pred_fallthru
          _
        // Predicated region
        $region37: #{_forward.1} parent=11 // pred_check
          %p356 = pneg %p198
        $region38: #{_forward.1} parent=11 // pred_check_branch
          %358 = sbr.rel (%p356) target = $region40
        $region39: #{_forward.1} parent=11 // pred_region
          _
        $region40: #{_forward.1} parent=11 // pred_fallthru
          _
        // Predicated region
        $region41: #{_forward.1} parent=11 // pred_check
          %p359 = pneg %p219
        $region42: #{_forward.1} parent=11 // pred_check_branch
          %361 = sbr.rel (%p359) target = $region44
        $region43: #{_forward.1} parent=11 // pred_region
          _
        $region44: #{_forward.1} parent=11 // pred_fallthru
          _
      $region12: #{_forward.1} parent=5 // pred_fallthru
        _
      %p362 = scmp.lt.s32.totalorder %s25, 2
      // Predicated region
      $region45: #{_forward.1} parent=5 // pred_check
        %p363 = pneg %p362
      $region46: #{_forward.1} parent=5 // pred_check_branch
        %365 = sbr.rel (%p363) target = $region48
      $region47: #{_forward.1} parent=5 // pred_region
        // Predicated region
        $region49: #{_forward.1} parent=47 // pred_check
          %p366 = pneg %p45
        $region50: #{_forward.1} parent=47 // pred_check_branch
          %368 = sbr.rel (%p366) target = $region52
        $region51: #{_forward.1} parent=47 // pred_region
          %p369 = scmp.lt.s32.totalorder %s25, 1
          %s370 = scalar_select %p369, %s25, 1
          %s371 = smul.addr %s370, 32
          %s372 = smul.addr %s371, 8
          %s373 = scalar_lea.vmem %s0, %s372
        $region52: #{_forward.1} parent=47 // pred_fallthru
          _
      $region48: #{_forward.1} parent=5 // pred_fallthru
        _
      %p374 = scmp.le.s32.totalorder 1, %s25
      %p375 = scmp.lt.s32.totalorder %s25, 3
      %p376 = pnand %p374, %p375
      %p377 = pneg %p376
      // Predicated region
      $region53: #{_forward.1} parent=5 // pred_check
        _
      $region54: #{_forward.1} parent=5 // pred_check_branch
        %379 = sbr.rel (%p376) target = $region56
      $region55: #{_forward.1} parent=5 // pred_region
        %s380 = ssub.s32 %s25, 1
        %p381 = scmp.lt.s32.totalorder %s30, 1
        %s382 = scalar_select %p381, %s30, 1
        %s383 = smul.addr %s382, 32
        %s384 = smul.addr %s383, 8
        %s385 = scalar_lea.vmem %s0, %s384
        %p386 = pneg %p51
        %p387 = pneg %p48
        %p388 = pneg %p72
        %p389 = pneg %p69
        %p390 = pneg %p93
        %p391 = pneg %p90
        %p392 = pneg %p114
        %p393 = pneg %p111
        %p394 = pneg %p135
        %p395 = pneg %p132
        %p396 = pneg %p156
        %p397 = pneg %p153
        %p398 = pneg %p177
        %p399 = pneg %p174
        %p400 = pneg %p198
        %p401 = pneg %p195
        %p402 = pneg %p219
        %p403 = pneg %p216
        %p404 = pneg %p245
        %p405 = pneg %p242
        %p406 = scmp.lt.s32.totalorder %s30, 1
        %s407 = scalar_select %p406, %s30, 1
        %s408 = smul.addr %s407, 96
        %s409 = smul.addr %s408, 8
        %s410 = scalar_lea.vmem %s9, %s409
        %p411 = pneg %p271
        %p412 = pneg %p268
        %s413 = sand.u32 %s258, 1
        %s414 = scalar_lea.sflag [#allocation3], %s413
        %s415 = sand.u32 %s258, 1
        %s416 = smul.addr %s415, 768
        %s417 = scalar_lea.vmem [#allocation2], %s416
        %p418 = pneg %p297
        %p419 = pneg %p294
        %s420 = sand.u32 %s30, 1
        %s421 = scalar_lea.sflag [#allocation5], %s420
        %s422 = sand.u32 %s284, 1
        %s423 = smul.addr %s422, 4
        %s424 = scalar_lea.vmem [#allocation4], %s423
        %p425 = pneg %p323
        %p426 = pneg %p320
        %s427 = sand.u32 %s30, 1
        %s428 = scalar_lea.sflag [#allocation5], %s427
        %s429 = sand.u32 %s310, 1
        %s430 = smul.addr %s429, 4
        %s431 = scalar_lea.vmem [#allocation6], %s430
        %p432 = scmp.lt.s32.totalorder %s30, 1
        %s433 = scalar_select %p432, %s30, 1
        %s434 = smul.addr %s433, 32
        %s435 = smul.addr %s434, 8
        %s436 = scalar_lea.vmem %s0, %s435
        %p437 = scmp.lt.s32.totalorder %s30, 1
        %s438 = scalar_select %p437, %s30, 1
        %s439 = smul.addr %s438, 96
        %s440 = smul.addr %s439, 8
        %s441 = scalar_lea.vmem %s9, %s440
        %v442 = vld [vmem:[%s436] sm:$0xff]
        %v443 = vld [vmem:[%s436 + $0x8] sm:$0xff]
        %v444 = vld [vmem:[%s436 + $0x10] sm:$0xff]
        %v445 = vld [vmem:[%s436 + $0x18] sm:$0xff]
        %v446 = vld [vmem:[%s436 + $0x20] sm:$0xff]
        %v447 = vld [vmem:[%s436 + $0x28] sm:$0xff]
        %v448 = vld [vmem:[%s436 + $0x30] sm:$0xff]
        %v449 = vld [vmem:[%s436 + $0x38] sm:$0xff]
        %v450 = vld [vmem:[%s436 + $0x40] sm:$0xff]
        %v451 = vld [vmem:[%s436 + $0x48] sm:$0xff]
        %v452 = vld [vmem:[%s436 + $0x50] sm:$0xff]
        %v453 = vld [vmem:[%s436 + $0x58] sm:$0xff]
        %v454 = vld [vmem:[%s436 + $0x60] sm:$0xff]
        %v455 = vld [vmem:[%s436 + $0x68] sm:$0xff]
        %v456 = vld [vmem:[%s436 + $0x70] sm:$0xff]
        %v457 = vld [vmem:[%s436 + $0x78] sm:$0xff]
        %v458 = vld [vmem:[%s436 + $0x80] sm:$0xff]
        %v459 = vld [vmem:[%s436 + $0x88] sm:$0xff]
        %v460 = vld [vmem:[%s436 + $0x90] sm:$0xff]
        %v461 = vld [vmem:[%s436 + $0x98] sm:$0xff]
        %v462 = vld [vmem:[%s436 + $0xa0] sm:$0xff]
        %v463 = vld [vmem:[%s436 + $0xa8] sm:$0xff]
        %v464 = vld [vmem:[%s436 + $0xb0] sm:$0xff]
        %v465 = vld [vmem:[%s436 + $0xb8] sm:$0xff]
        %v466 = vld [vmem:[%s436 + $0xc0] sm:$0xff]
        %v467 = vld [vmem:[%s436 + $0xc8] sm:$0xff]
        %v468 = vld [vmem:[%s436 + $0xd0] sm:$0xff]
        %v469 = vld [vmem:[%s436 + $0xd8] sm:$0xff]
        %v470 = vld [vmem:[%s436 + $0xe0] sm:$0xff]
        %v471 = vld [vmem:[%s436 + $0xe8] sm:$0xff]
        %v472 = vld [vmem:[%s436 + $0xf0] sm:$0xff]
        %v473 = vld [vmem:[%s436 + $0xf8] sm:$0xff]
        %v474 = vld [vmem:[%s1] sm:$0xf]
        %v475 = vld [vmem:[%s2] sm:$0x1]
        %v477 = vperm.slane %v475, 0
        %vm479 = vcmask 31744
        %v481 = vsel %vm479, %v442, 0
        %v484 = vsel %vm479, %v443, 0
        %v487 = vsel %vm479, %v444, 0
        %v490 = vsel %vm479, %v445, 0
        %v493 = vsel %vm479, %v446, 0
        %v496 = vsel %vm479, %v447, 0
        %v499 = vsel %vm479, %v448, 0
        %v502 = vsel %vm479, %v449, 0
        %v505 = vsel %vm479, %v450, 0
        %v508 = vsel %vm479, %v451, 0
        %v511 = vsel %vm479, %v452, 0
        %v514 = vsel %vm479, %v453, 0
        %v517 = vsel %vm479, %v454, 0
        %v520 = vsel %vm479, %v455, 0
        %v523 = vsel %vm479, %v456, 0
        %v526 = vsel %vm479, %v457, 0
        %v529 = vsel %vm479, %v458, 0
        %v532 = vsel %vm479, %v459, 0
        %v535 = vsel %vm479, %v460, 0
        %v538 = vsel %vm479, %v461, 0
        %v541 = vsel %vm479, %v462, 0
        %v544 = vsel %vm479, %v463, 0
        %v547 = vsel %vm479, %v464, 0
        %v550 = vsel %vm479, %v465, 0
        %v553 = vsel %vm479, %v466, 0
        %v556 = vsel %vm479, %v467, 0
        %v559 = vsel %vm479, %v468, 0
        %v562 = vsel %vm479, %v469, 0
        %v565 = vsel %vm479, %v470, 0
        %v568 = vsel %vm479, %v471, 0
        %v571 = vsel %vm479, %v472, 0
        %v574 = vsel %vm479, %v473, 0
        %vm576 = vcmask 1043456
        %v578 = vsel %vm576, %v474, 0
        %580 = vmatpush.msra.mxu0 0.0
        %581 = vmatpush.msra.mxu0 0.0
        %582 = vmatpush.msra.mxu0 0.0
        %583 = vmatpush.msra.mxu0 0.0
        %584 = vmatpush.msra.mxu0 0.0
        %585 = vmatpush.msra.mxu0 0.0
        %586 = vmatpush.msra.mxu0 0.0
        %587 = vmatpush.msra.mxu0 0.0
        %588 = vmatpush.msra.mxu0 0.0
        %589 = vmatpush.msra.mxu0 0.0
        %590 = vmatpush.msra.mxu0 0.0
        %591 = vmatpush.msra.mxu0 0.0
        %592 = vmatpush.msra.mxu0 0.0
        %593 = vmatpush.msra.mxu0 0.0
        %594 = vmatpush.msra.mxu0 0.0
        %595 = vmatpush.msra.mxu0 %v578
        %596 = vmatmul.f32.gmra.mxu0 %v481
        %v597 = vpop.f32.mrf.mxu0
        %v598 = vadd.f32 %v477, %v597
        %599 = vmatmul.f32.gmra.mxu0 %v484
        %v600 = vpop.f32.mrf.mxu0
        %v601 = vadd.f32 %v477, %v600
        %602 = vmatmul.f32.gmra.mxu0 %v487
        %v603 = vpop.f32.mrf.mxu0
        %v604 = vadd.f32 %v477, %v603
        %605 = vmatmul.f32.gmra.mxu0 %v490
        %v606 = vpop.f32.mrf.mxu0
        %v607 = vadd.f32 %v477, %v606
        %608 = vmatmul.f32.gmra.mxu0 %v493
        %v609 = vpop.f32.mrf.mxu0
        %v610 = vadd.f32 %v477, %v609
        %611 = vmatmul.f32.gmra.mxu0 %v496
        %v612 = vpop.f32.mrf.mxu0
        %v613 = vadd.f32 %v477, %v612
        %614 = vmatmul.f32.gmra.mxu0 %v499
        %v615 = vpop.f32.mrf.mxu0
        %v616 = vadd.f32 %v477, %v615
        %617 = vmatmul.f32.gmra.mxu0 %v502
        %v618 = vpop.f32.mrf.mxu0
        %v619 = vadd.f32 %v477, %v618
        %620 = vmatmul.f32.gmra.mxu0 %v505
        %v621 = vpop.f32.mrf.mxu0
        %v622 = vadd.f32 %v477, %v621
        %623 = vmatmul.f32.gmra.mxu0 %v508
        %v624 = vpop.f32.mrf.mxu0
        %v625 = vadd.f32 %v477, %v624
        %626 = vmatmul.f32.gmra.mxu0 %v511
        %v627 = vpop.f32.mrf.mxu0
        %v628 = vadd.f32 %v477, %v627
        %629 = vmatmul.f32.gmra.mxu0 %v514
        %v630 = vpop.f32.mrf.mxu0
        %v631 = vadd.f32 %v477, %v630
        %632 = vmatmul.f32.gmra.mxu0 %v517
        %v633 = vpop.f32.mrf.mxu0
        %v634 = vadd.f32 %v477, %v633
        %635 = vmatmul.f32.gmra.mxu0 %v520
        %v636 = vpop.f32.mrf.mxu0
        %v637 = vadd.f32 %v477, %v636
        %638 = vmatmul.f32.gmra.mxu0 %v523
        %v639 = vpop.f32.mrf.mxu0
        %v640 = vadd.f32 %v477, %v639
        %641 = vmatmul.f32.gmra.mxu0 %v526
        %v642 = vpop.f32.mrf.mxu0
        %v643 = vadd.f32 %v477, %v642
        %644 = vmatmul.f32.gmra.mxu0 %v529
        %v645 = vpop.f32.mrf.mxu0
        %v646 = vadd.f32 %v477, %v645
        %647 = vmatmul.f32.gmra.mxu0 %v532
        %v648 = vpop.f32.mrf.mxu0
        %v649 = vadd.f32 %v477, %v648
        %650 = vmatmul.f32.gmra.mxu0 %v535
        %v651 = vpop.f32.mrf.mxu0
        %v652 = vadd.f32 %v477, %v651
        %653 = vmatmul.f32.gmra.mxu0 %v538
        %v654 = vpop.f32.mrf.mxu0
        %v655 = vadd.f32 %v477, %v654
        %656 = vmatmul.f32.gmra.mxu0 %v541
        %v657 = vpop.f32.mrf.mxu0
        %v658 = vadd.f32 %v477, %v657
        %659 = vmatmul.f32.gmra.mxu0 %v544
        %v660 = vpop.f32.mrf.mxu0
        %v661 = vadd.f32 %v477, %v660
        %662 = vmatmul.f32.gmra.mxu0 %v547
        %v663 = vpop.f32.mrf.mxu0
        %v664 = vadd.f32 %v477, %v663
        %665 = vmatmul.f32.gmra.mxu0 %v550
        %v666 = vpop.f32.mrf.mxu0
        %v667 = vadd.f32 %v477, %v666
        %668 = vmatmul.f32.gmra.mxu0 %v553
        %v669 = vpop.f32.mrf.mxu0
        %v670 = vadd.f32 %v477, %v669
        %671 = vmatmul.f32.gmra.mxu0 %v556
        %v672 = vpop.f32.mrf.mxu0
        %v673 = vadd.f32 %v477, %v672
        %674 = vmatmul.f32.gmra.mxu0 %v559
        %v675 = vpop.f32.mrf.mxu0
        %v676 = vadd.f32 %v477, %v675
        %677 = vmatmul.f32.gmra.mxu0 %v562
        %v678 = vpop.f32.mrf.mxu0
        %v679 = vadd.f32 %v477, %v678
        %680 = vmatmul.f32.gmra.mxu0 %v565
        %v681 = vpop.f32.mrf.mxu0
        %v682 = vadd.f32 %v477, %v681
        %683 = vmatmul.f32.gmra.mxu0 %v568
        %v684 = vpop.f32.mrf.mxu0
        %v685 = vadd.f32 %v477, %v684
        %686 = vmatmul.f32.gmra.mxu0 %v571
        %v687 = vpop.f32.mrf.mxu0
        %v688 = vadd.f32 %v477, %v687
        %689 = vmatmul.f32.gmra.mxu0 %v574
        %v690 = vpop.f32.mrf.mxu0
        %v691 = vadd.f32 %v477, %v690
        %692 = vdwg.mxu0
        %v693 = vmax.f32 %v598, 0.0
        %v694 = vmax.f32 %v601, 0.0
        %v695 = vmax.f32 %v604, 0.0
        %v696 = vmax.f32 %v607, 0.0
        %v697 = vmax.f32 %v610, 0.0
        %v698 = vmax.f32 %v613, 0.0
        %v699 = vmax.f32 %v616, 0.0
        %v700 = vmax.f32 %v619, 0.0
        %v701 = vmax.f32 %v622, 0.0
        %v702 = vmax.f32 %v625, 0.0
        %v703 = vmax.f32 %v628, 0.0
        %v704 = vmax.f32 %v631, 0.0
        %v705 = vmax.f32 %v634, 0.0
        %v706 = vmax.f32 %v637, 0.0
        %v707 = vmax.f32 %v640, 0.0
        %v708 = vmax.f32 %v643, 0.0
        %v709 = vmax.f32 %v646, 0.0
        %v710 = vmax.f32 %v649, 0.0
        %v711 = vmax.f32 %v652, 0.0
        %v712 = vmax.f32 %v655, 0.0
        %v713 = vmax.f32 %v658, 0.0
        %v714 = vmax.f32 %v661, 0.0
        %v715 = vmax.f32 %v664, 0.0
        %v716 = vmax.f32 %v667, 0.0
        %v717 = vmax.f32 %v670, 0.0
        %v718 = vmax.f32 %v673, 0.0
        %v719 = vmax.f32 %v676, 0.0
        %v720 = vmax.f32 %v679, 0.0
        %v721 = vmax.f32 %v682, 0.0
        %v722 = vmax.f32 %v685, 0.0
        %v723 = vmax.f32 %v688, 0.0
        %v724 = vmax.f32 %v691, 0.0
        %v725 = vld [vmem:[%s5] sm:$0x3]
        %v726 = vld [vmem:[%s6] sm:$0x3]
        %728 = vset.pattern.permute.xlu0 0
        %729 = vperm.xlu0 %728, %v726
        %v730 = vpop.permute.xlu0 %729
        %vm732 = vcmask 261120
        %v734 = vsel %vm732, %v725, 0
        %v737 = vsel %vm732, %v693, 0
        %v740 = vsel %vm732, %v694, 0
        %v743 = vsel %vm732, %v695, 0
        %v746 = vsel %vm732, %v696, 0
        %v749 = vsel %vm732, %v697, 0
        %v752 = vsel %vm732, %v698, 0
        %v755 = vsel %vm732, %v699, 0
        %v758 = vsel %vm732, %v700, 0
        %v761 = vsel %vm732, %v701, 0
        %v764 = vsel %vm732, %v702, 0
        %v767 = vsel %vm732, %v703, 0
        %v770 = vsel %vm732, %v704, 0
        %v773 = vsel %vm732, %v705, 0
        %v776 = vsel %vm732, %v706, 0
        %v779 = vsel %vm732, %v707, 0
        %v782 = vsel %vm732, %v708, 0
        %v785 = vsel %vm732, %v709, 0
        %v788 = vsel %vm732, %v710, 0
        %v791 = vsel %vm732, %v711, 0
        %v794 = vsel %vm732, %v712, 0
        %v797 = vsel %vm732, %v713, 0
        %v800 = vsel %vm732, %v714, 0
        %v803 = vsel %vm732, %v715, 0
        %v806 = vsel %vm732, %v716, 0
        %v809 = vsel %vm732, %v717, 0
        %v812 = vsel %vm732, %v718, 0
        %v815 = vsel %vm732, %v719, 0
        %v818 = vsel %vm732, %v720, 0
        %v821 = vsel %vm732, %v721, 0
        %v824 = vsel %vm732, %v722, 0
        %v827 = vsel %vm732, %v723, 0
        %v830 = vsel %vm732, %v724, 0
        %832 = vmatpush.xpose.msra.mxu0 %v782
        %833 = vmatpush.xpose.msra.mxu0 %v779
        %834 = vmatpush.xpose.msra.mxu0 %v776
        %835 = vmatpush.xpose.msra.mxu0 %v773
        %836 = vmatpush.xpose.msra.mxu0 %v770
        %837 = vmatpush.xpose.msra.mxu0 %v767
        %838 = vmatpush.xpose.msra.mxu0 %v764
        %839 = vmatpush.xpose.msra.mxu0 %v761
        %840 = vmatpush.xpose.msra.mxu0 %v758
        %841 = vmatpush.xpose.msra.mxu0 %v755
        %842 = vmatpush.xpose.msra.mxu0 %v752
        %843 = vmatpush.xpose.msra.mxu0 %v749
        %844 = vmatpush.xpose.msra.mxu0 %v746
        %845 = vmatpush.xpose.msra.mxu0 %v743
        %846 = vmatpush.xpose.msra.mxu0 %v740
        %847 = vmatpush.xpose.msra.mxu0 %v737
        %848 = vmatmul.f32.gmra.mxu0 %v734
        %v849 = vpop.f32.mrf.mxu0
        %v850 = vadd.f32 %v730, %v849
        %851 = vdwg.mxu0
        %852 = vmatpush.xpose.msra.mxu0 %v830
        %853 = vmatpush.xpose.msra.mxu0 %v827
        %854 = vmatpush.xpose.msra.mxu0 %v824
        %855 = vmatpush.xpose.msra.mxu0 %v821
        %856 = vmatpush.xpose.msra.mxu0 %v818
        %857 = vmatpush.xpose.msra.mxu0 %v815
        %858 = vmatpush.xpose.msra.mxu0 %v812
        %859 = vmatpush.xpose.msra.mxu0 %v809
        %860 = vmatpush.xpose.msra.mxu0 %v806
        %861 = vmatpush.xpose.msra.mxu0 %v803
        %862 = vmatpush.xpose.msra.mxu0 %v800
        %863 = vmatpush.xpose.msra.mxu0 %v797
        %864 = vmatpush.xpose.msra.mxu0 %v794
        %865 = vmatpush.xpose.msra.mxu0 %v791
        %866 = vmatpush.xpose.msra.mxu0 %v788
        %867 = vmatpush.xpose.msra.mxu0 %v785
        %868 = vmatmul.f32.gmra.mxu0 %v734
        %v869 = vpop.f32.mrf.mxu0
        %v870 = vadd.f32 %v730, %v869
        %871 = vdwg.mxu0
        %v874 = vrot.slane %v870, 6
        %vm875 = vcmask 1041408
        %v876 = vsel %vm875, %v850, %v874
        %878 = vst [vmem:[%s424] sm:$0xf] %v876
        %v879 = vld [vmem:[%s7] sm:$0x3]
        %v880 = vld [vmem:[%s8] sm:$0x3]
        %882 = vset.pattern.permute.xlu0 0
        %883 = vperm.xlu0 %882, %v880
        %v884 = vpop.permute.xlu0 %883
        %v887 = vsel %vm732, %v879, 0
        %889 = vmatpush.xpose.msra.mxu0 %v782
        %890 = vmatpush.xpose.msra.mxu0 %v779
        %891 = vmatpush.xpose.msra.mxu0 %v776
        %892 = vmatpush.xpose.msra.mxu0 %v773
        %893 = vmatpush.xpose.msra.mxu0 %v770
        %894 = vmatpush.xpose.msra.mxu0 %v767
        %895 = vmatpush.xpose.msra.mxu0 %v764
        %896 = vmatpush.xpose.msra.mxu0 %v761
        %897 = vmatpush.xpose.msra.mxu0 %v758
        %898 = vmatpush.xpose.msra.mxu0 %v755
        %899 = vmatpush.xpose.msra.mxu0 %v752
        %900 = vmatpush.xpose.msra.mxu0 %v749
        %901 = vmatpush.xpose.msra.mxu0 %v746
        %902 = vmatpush.xpose.msra.mxu0 %v743
        %903 = vmatpush.xpose.msra.mxu0 %v740
        %904 = vmatpush.xpose.msra.mxu0 %v737
        %905 = vmatmul.f32.gmra.mxu0 %v887
        %v906 = vpop.f32.mrf.mxu0
        %v907 = vadd.f32 %v884, %v906
        %908 = vdwg.mxu0
        %909 = vmatpush.xpose.msra.mxu0 %v830
        %910 = vmatpush.xpose.msra.mxu0 %v827
        %911 = vmatpush.xpose.msra.mxu0 %v824
        %912 = vmatpush.xpose.msra.mxu0 %v821
        %913 = vmatpush.xpose.msra.mxu0 %v818
        %914 = vmatpush.xpose.msra.mxu0 %v815
        %915 = vmatpush.xpose.msra.mxu0 %v812
        %916 = vmatpush.xpose.msra.mxu0 %v809
        %917 = vmatpush.xpose.msra.mxu0 %v806
        %918 = vmatpush.xpose.msra.mxu0 %v803
        %919 = vmatpush.xpose.msra.mxu0 %v800
        %920 = vmatpush.xpose.msra.mxu0 %v797
        %921 = vmatpush.xpose.msra.mxu0 %v794
        %922 = vmatpush.xpose.msra.mxu0 %v791
        %923 = vmatpush.xpose.msra.mxu0 %v788
        %924 = vmatpush.xpose.msra.mxu0 %v785
        %925 = vmatmul.f32.gmra.mxu0 %v887
        %v926 = vpop.f32.mrf.mxu0
        %v927 = vadd.f32 %v884, %v926
        %928 = vdwg.mxu0
        %v931 = vrot.slane %v927, 6
        %v932 = vsel %vm875, %v907, %v931
        %934 = vst [vmem:[%s431] sm:$0xf] %v932
        %v935 = vlaneseq
        %v936 = vand.u32 %v935, 127
        %v937 = vlaneseq
        %v938 = vshrl.u32 %v937, 7
        %v939 = vadd.s32 %v938, 8
        %v940 = vadd.s32 %v938, 16
        %v941 = vadd.s32 %v938, 24
        %v942 = vadd.s32 %v938, 32
        %v943 = vadd.s32 %v938, 40
        %v944 = vadd.s32 %v938, 48
        %v945 = vadd.s32 %v938, 56
        %v946 = vadd.s32 %v938, 64
        %v947 = vadd.s32 %v938, 72
        %v948 = vadd.s32 %v938, 80
        %v949 = vadd.s32 %v938, 88
        %v950 = vadd.s32 %v938, 96
        %v951 = vadd.s32 %v938, 104
        %v952 = vadd.s32 %v938, 112
        %v953 = vadd.s32 %v938, 120
        %v954 = vadd.s32 %v938, 128
        %v955 = vadd.s32 %v938, 136
        %v956 = vadd.s32 %v938, 144
        %v957 = vadd.s32 %v938, 152
        %v958 = vadd.s32 %v938, 160
        %v959 = vadd.s32 %v938, 168
        %v960 = vadd.s32 %v938, 176
        %v961 = vadd.s32 %v938, 184
        %v962 = vadd.s32 %v938, 192
        %v963 = vadd.s32 %v938, 200
        %v964 = vadd.s32 %v938, 208
        %v965 = vadd.s32 %v938, 216
        %v966 = vadd.s32 %v938, 224
        %v967 = vadd.s32 %v938, 232
        %v968 = vadd.s32 %v938, 240
        %v969 = vadd.s32 %v938, 248
        %v970 = vcvt.s32.f32 %v938
        %v971 = vcvt.s32.f32 %v939
        %v972 = vcvt.s32.f32 %v940
        %v973 = vcvt.s32.f32 %v941
        %v974 = vcvt.s32.f32 %v942
        %v975 = vcvt.s32.f32 %v943
        %v976 = vcvt.s32.f32 %v944
        %v977 = vcvt.s32.f32 %v945
        %v978 = vcvt.s32.f32 %v946
        %v979 = vcvt.s32.f32 %v947
        %v980 = vcvt.s32.f32 %v948
        %v981 = vcvt.s32.f32 %v949
        %v982 = vcvt.s32.f32 %v950
        %v983 = vcvt.s32.f32 %v951
        %v984 = vcvt.s32.f32 %v952
        %v985 = vcvt.s32.f32 %v953
        %v986 = vcvt.s32.f32 %v954
        %v987 = vcvt.s32.f32 %v955
        %v988 = vcvt.s32.f32 %v956
        %v989 = vcvt.s32.f32 %v957
        %v990 = vcvt.s32.f32 %v958
        %v991 = vcvt.s32.f32 %v959
        %v992 = vcvt.s32.f32 %v960
        %v993 = vcvt.s32.f32 %v961
        %v994 = vcvt.s32.f32 %v962
        %v995 = vcvt.s32.f32 %v963
        %v996 = vcvt.s32.f32 %v964
        %v997 = vcvt.s32.f32 %v965
        %v998 = vcvt.s32.f32 %v966
        %v999 = vcvt.s32.f32 %v967
        %v1000 = vcvt.s32.f32 %v968
        %v1001 = vcvt.s32.f32 %v969
        %v1002 = vrcp.pop 16.0
        %v1003 = vmul.f32 16.0, %v1002
        %v1004 = vsub.f32 1.0, %v1003
        %v1005 = vmul.f32 %v1002, %v1004
        %v1006 = vadd.f32 %v1002, %v1005
        %vm1007 = vweird.f32 %v1002
        %v1008 = vsel %vm1007, %v1002, %v1006
        %v1009 = vmul.f32 %v970, %v1008
        %v1010 = vmul.f32 %v971, %v1008
        %v1011 = vmul.f32 %v972, %v1008
        %v1012 = vmul.f32 %v973, %v1008
        %v1013 = vmul.f32 %v974, %v1008
        %v1014 = vmul.f32 %v975, %v1008
        %v1015 = vmul.f32 %v976, %v1008
        %v1016 = vmul.f32 %v977, %v1008
        %v1017 = vmul.f32 %v978, %v1008
        %v1018 = vmul.f32 %v979, %v1008
        %v1019 = vmul.f32 %v980, %v1008
        %v1020 = vmul.f32 %v981, %v1008
        %v1021 = vmul.f32 %v982, %v1008
        %v1022 = vmul.f32 %v983, %v1008
        %v1023 = vmul.f32 %v984, %v1008
        %v1024 = vmul.f32 %v985, %v1008
        %v1025 = vmul.f32 %v986, %v1008
        %v1026 = vmul.f32 %v987, %v1008
        %v1027 = vmul.f32 %v988, %v1008
        %v1028 = vmul.f32 %v989, %v1008
        %v1029 = vmul.f32 %v990, %v1008
        %v1030 = vmul.f32 %v991, %v1008
        %v1031 = vmul.f32 %v992, %v1008
        %v1032 = vmul.f32 %v993, %v1008
        %v1033 = vmul.f32 %v994, %v1008
        %v1034 = vmul.f32 %v995, %v1008
        %v1035 = vmul.f32 %v996, %v1008
        %v1036 = vmul.f32 %v997, %v1008
        %v1037 = vmul.f32 %v998, %v1008
        %v1038 = vmul.f32 %v999, %v1008
        %v1039 = vmul.f32 %v1000, %v1008
        %v1040 = vmul.f32 %v1001, %v1008
        %v1041 = vfloor.f32 %v1009
        %v1042 = vfloor.f32 %v1010
        %v1043 = vfloor.f32 %v1011
        %v1044 = vfloor.f32 %v1012
        %v1045 = vfloor.f32 %v1013
        %v1046 = vfloor.f32 %v1014
        %v1047 = vfloor.f32 %v1015
        %v1048 = vfloor.f32 %v1016
        %v1049 = vfloor.f32 %v1017
        %v1050 = vfloor.f32 %v1018
        %v1051 = vfloor.f32 %v1019
        %v1052 = vfloor.f32 %v1020
        %v1053 = vfloor.f32 %v1021
        %v1054 = vfloor.f32 %v1022
        %v1055 = vfloor.f32 %v1023
        %v1056 = vfloor.f32 %v1024
        %v1057 = vfloor.f32 %v1025
        %v1058 = vfloor.f32 %v1026
        %v1059 = vfloor.f32 %v1027
        %v1060 = vfloor.f32 %v1028
        %v1061 = vfloor.f32 %v1029
        %v1062 = vfloor.f32 %v1030
        %v1063 = vfloor.f32 %v1031
        %v1064 = vfloor.f32 %v1032
        %v1065 = vfloor.f32 %v1033
        %v1066 = vfloor.f32 %v1034
        %v1067 = vfloor.f32 %v1035
        %v1068 = vfloor.f32 %v1036
        %v1069 = vfloor.f32 %v1037
        %v1070 = vfloor.f32 %v1038
        %v1071 = vfloor.f32 %v1039
        %v1072 = vfloor.f32 %v1040
        %v1073 = vmul.f32 %v1041, 16.0
        %v1074 = vmul.f32 %v1042, 16.0
        %v1075 = vmul.f32 %v1043, 16.0
        %v1076 = vmul.f32 %v1044, 16.0
        %v1077 = vmul.f32 %v1045, 16.0
        %v1078 = vmul.f32 %v1046, 16.0
        %v1079 = vmul.f32 %v1047, 16.0
        %v1080 = vmul.f32 %v1048, 16.0
        %v1081 = vmul.f32 %v1049, 16.0
        %v1082 = vmul.f32 %v1050, 16.0
        %v1083 = vmul.f32 %v1051, 16.0
        %v1084 = vmul.f32 %v1052, 16.0
        %v1085 = vmul.f32 %v1053, 16.0
        %v1086 = vmul.f32 %v1054, 16.0
        %v1087 = vmul.f32 %v1055, 16.0
        %v1088 = vmul.f32 %v1056, 16.0
        %v1089 = vmul.f32 %v1057, 16.0
        %v1090 = vmul.f32 %v1058, 16.0
        %v1091 = vmul.f32 %v1059, 16.0
        %v1092 = vmul.f32 %v1060, 16.0
        %v1093 = vmul.f32 %v1061, 16.0
        %v1094 = vmul.f32 %v1062, 16.0
        %v1095 = vmul.f32 %v1063, 16.0
        %v1096 = vmul.f32 %v1064, 16.0
        %v1097 = vmul.f32 %v1065, 16.0
        %v1098 = vmul.f32 %v1066, 16.0
        %v1099 = vmul.f32 %v1067, 16.0
        %v1100 = vmul.f32 %v1068, 16.0
        %v1101 = vmul.f32 %v1069, 16.0
        %v1102 = vmul.f32 %v1070, 16.0
        %v1103 = vmul.f32 %v1071, 16.0
        %v1104 = vmul.f32 %v1072, 16.0
        %v1105 = vsub.f32 %v970, %v1073
        %v1106 = vsub.f32 %v971, %v1074
        %v1107 = vsub.f32 %v972, %v1075
        %v1108 = vsub.f32 %v973, %v1076
        %v1109 = vsub.f32 %v974, %v1077
        %v1110 = vsub.f32 %v975, %v1078
        %v1111 = vsub.f32 %v976, %v1079
        %v1112 = vsub.f32 %v977, %v1080
        %v1113 = vsub.f32 %v978, %v1081
        %v1114 = vsub.f32 %v979, %v1082
        %v1115 = vsub.f32 %v980, %v1083
        %v1116 = vsub.f32 %v981, %v1084
        %v1117 = vsub.f32 %v982, %v1085
        %v1118 = vsub.f32 %v983, %v1086
        %v1119 = vsub.f32 %v984, %v1087
        %v1120 = vsub.f32 %v985, %v1088
        %v1121 = vsub.f32 %v986, %v1089
        %v1122 = vsub.f32 %v987, %v1090
        %v1123 = vsub.f32 %v988, %v1091
        %v1124 = vsub.f32 %v989, %v1092
        %v1125 = vsub.f32 %v990, %v1093
        %v1126 = vsub.f32 %v991, %v1094
        %v1127 = vsub.f32 %v992, %v1095
        %v1128 = vsub.f32 %v993, %v1096
        %v1129 = vsub.f32 %v994, %v1097
        %v1130 = vsub.f32 %v995, %v1098
        %v1131 = vsub.f32 %v996, %v1099
        %v1132 = vsub.f32 %v997, %v1100
        %v1133 = vsub.f32 %v998, %v1101
        %v1134 = vsub.f32 %v999, %v1102
        %v1135 = vsub.f32 %v1000, %v1103
        %v1136 = vsub.f32 %v1001, %v1104
        %vm1137 = vcmp.eq.s32.totalorder %v936, 0
        %v1138 = vsel %vm1137, %v1105, %v1041
        %v1139 = vsel %vm1137, %v1106, %v1042
        %v1140 = vsel %vm1137, %v1107, %v1043
        %v1141 = vsel %vm1137, %v1108, %v1044
        %v1142 = vsel %vm1137, %v1109, %v1045
        %v1143 = vsel %vm1137, %v1110, %v1046
        %v1144 = vsel %vm1137, %v1111, %v1047
        %v1145 = vsel %vm1137, %v1112, %v1048
        %v1146 = vsel %vm1137, %v1113, %v1049
        %v1147 = vsel %vm1137, %v1114, %v1050
        %v1148 = vsel %vm1137, %v1115, %v1051
        %v1149 = vsel %vm1137, %v1116, %v1052
        %v1150 = vsel %vm1137, %v1117, %v1053
        %v1151 = vsel %vm1137, %v1118, %v1054
        %v1152 = vsel %vm1137, %v1119, %v1055
        %v1153 = vsel %vm1137, %v1120, %v1056
        %v1154 = vsel %vm1137, %v1121, %v1057
        %v1155 = vsel %vm1137, %v1122, %v1058
        %v1156 = vsel %vm1137, %v1123, %v1059
        %v1157 = vsel %vm1137, %v1124, %v1060
        %v1158 = vsel %vm1137, %v1125, %v1061
        %v1159 = vsel %vm1137, %v1126, %v1062
        %v1160 = vsel %vm1137, %v1127, %v1063
        %v1161 = vsel %vm1137, %v1128, %v1064
        %v1162 = vsel %vm1137, %v1129, %v1065
        %v1163 = vsel %vm1137, %v1130, %v1066
        %v1164 = vsel %vm1137, %v1131, %v1067
        %v1165 = vsel %vm1137, %v1132, %v1068
        %v1166 = vsel %vm1137, %v1133, %v1069
        %v1167 = vsel %vm1137, %v1134, %v1070
        %v1168 = vsel %vm1137, %v1135, %v1071
        %v1169 = vsel %vm1137, %v1136, %v1072
        %v1170 = vld [vmem:[%s3] sm:$0xff]
        %v1171 = vld [vmem:[%s3 + $0x8] sm:$0xff]
        %v1172 = vld [vmem:[%s3 + $0x10] sm:$0xff]
        %v1173 = vld [vmem:[%s3 + $0x18] sm:$0xff]
        %v1174 = vld [vmem:[%s4] sm:$0x1]
        %v1176 = vperm.slane %v1174, 0
        %1178 = vmatpush.msra.mxu0 0.0
        %1179 = vmatpush.msra.mxu0 0.0
        %1180 = vmatpush.msra.mxu0 0.0
        %1181 = vmatpush.msra.mxu0 0.0
        %1182 = vmatpush.msra.mxu0 0.0
        %1183 = vmatpush.msra.mxu0 0.0
        %1184 = vmatpush.msra.mxu0 0.0
        %1185 = vmatpush.msra.mxu0 0.0
        %1186 = vmatpush.msra.mxu0 0.0
        %1187 = vmatpush.msra.mxu0 0.0
        %1188 = vmatpush.msra.mxu0 0.0
        %1189 = vmatpush.msra.mxu0 0.0
        %1190 = vmatpush.msra.mxu0 %v1173
        %1191 = vmatpush.msra.mxu0 %v1172
        %1192 = vmatpush.msra.mxu0 %v1171
        %1193 = vmatpush.msra.mxu0 %v1170
        %1194 = vmatmul.f32.gmra.mxu0 %v737
        %v1195 = vpop.f32.mrf.mxu0
        %v1196 = vadd.f32 %v1176, %v1195
        %1197 = vmatmul.f32.gmra.mxu0 %v740
        %v1198 = vpop.f32.mrf.mxu0
        %v1199 = vadd.f32 %v1176, %v1198
        %1200 = vmatmul.f32.gmra.mxu0 %v743
        %v1201 = vpop.f32.mrf.mxu0
        %v1202 = vadd.f32 %v1176, %v1201
        %1203 = vmatmul.f32.gmra.mxu0 %v746
        %v1204 = vpop.f32.mrf.mxu0
        %v1205 = vadd.f32 %v1176, %v1204
        %1206 = vmatmul.f32.gmra.mxu0 %v749
        %v1207 = vpop.f32.mrf.mxu0
        %v1208 = vadd.f32 %v1176, %v1207
        %1209 = vmatmul.f32.gmra.mxu0 %v752
        %v1210 = vpop.f32.mrf.mxu0
        %v1211 = vadd.f32 %v1176, %v1210
        %1212 = vmatmul.f32.gmra.mxu0 %v755
        %v1213 = vpop.f32.mrf.mxu0
        %v1214 = vadd.f32 %v1176, %v1213
        %1215 = vmatmul.f32.gmra.mxu0 %v758
        %v1216 = vpop.f32.mrf.mxu0
        %v1217 = vadd.f32 %v1176, %v1216
        %1218 = vmatmul.f32.gmra.mxu0 %v761
        %v1219 = vpop.f32.mrf.mxu0
        %v1220 = vadd.f32 %v1176, %v1219
        %1221 = vmatmul.f32.gmra.mxu0 %v764
        %v1222 = vpop.f32.mrf.mxu0
        %v1223 = vadd.f32 %v1176, %v1222
        %1224 = vmatmul.f32.gmra.mxu0 %v767
        %v1225 = vpop.f32.mrf.mxu0
        %v1226 = vadd.f32 %v1176, %v1225
        %1227 = vmatmul.f32.gmra.mxu0 %v770
        %v1228 = vpop.f32.mrf.mxu0
        %v1229 = vadd.f32 %v1176, %v1228
        %1230 = vmatmul.f32.gmra.mxu0 %v773
        %v1231 = vpop.f32.mrf.mxu0
        %v1232 = vadd.f32 %v1176, %v1231
        %1233 = vmatmul.f32.gmra.mxu0 %v776
        %v1234 = vpop.f32.mrf.mxu0
        %v1235 = vadd.f32 %v1176, %v1234
        %1236 = vmatmul.f32.gmra.mxu0 %v779
        %v1237 = vpop.f32.mrf.mxu0
        %v1238 = vadd.f32 %v1176, %v1237
        %1239 = vmatmul.f32.gmra.mxu0 %v782
        %v1240 = vpop.f32.mrf.mxu0
        %v1241 = vadd.f32 %v1176, %v1240
        %1242 = vmatmul.f32.gmra.mxu0 %v785
        %v1243 = vpop.f32.mrf.mxu0
        %v1244 = vadd.f32 %v1176, %v1243
        %1245 = vmatmul.f32.gmra.mxu0 %v788
        %v1246 = vpop.f32.mrf.mxu0
        %v1247 = vadd.f32 %v1176, %v1246
        %1248 = vmatmul.f32.gmra.mxu0 %v791
        %v1249 = vpop.f32.mrf.mxu0
        %v1250 = vadd.f32 %v1176, %v1249
        %1251 = vmatmul.f32.gmra.mxu0 %v794
        %v1252 = vpop.f32.mrf.mxu0
        %v1253 = vadd.f32 %v1176, %v1252
        %1254 = vmatmul.f32.gmra.mxu0 %v797
        %v1255 = vpop.f32.mrf.mxu0
        %v1256 = vadd.f32 %v1176, %v1255
        %1257 = vmatmul.f32.gmra.mxu0 %v800
        %v1258 = vpop.f32.mrf.mxu0
        %v1259 = vadd.f32 %v1176, %v1258
        %1260 = vmatmul.f32.gmra.mxu0 %v803
        %v1261 = vpop.f32.mrf.mxu0
        %v1262 = vadd.f32 %v1176, %v1261
        %1263 = vmatmul.f32.gmra.mxu0 %v806
        %v1264 = vpop.f32.mrf.mxu0
        %v1265 = vadd.f32 %v1176, %v1264
        %1266 = vmatmul.f32.gmra.mxu0 %v809
        %v1267 = vpop.f32.mrf.mxu0
        %v1268 = vadd.f32 %v1176, %v1267
        %1269 = vmatmul.f32.gmra.mxu0 %v812
        %v1270 = vpop.f32.mrf.mxu0
        %v1271 = vadd.f32 %v1176, %v1270
        %1272 = vmatmul.f32.gmra.mxu0 %v815
        %v1273 = vpop.f32.mrf.mxu0
        %v1274 = vadd.f32 %v1176, %v1273
        %1275 = vmatmul.f32.gmra.mxu0 %v818
        %v1276 = vpop.f32.mrf.mxu0
        %v1277 = vadd.f32 %v1176, %v1276
        %1278 = vmatmul.f32.gmra.mxu0 %v821
        %v1279 = vpop.f32.mrf.mxu0
        %v1280 = vadd.f32 %v1176, %v1279
        %1281 = vmatmul.f32.gmra.mxu0 %v824
        %v1282 = vpop.f32.mrf.mxu0
        %v1283 = vadd.f32 %v1176, %v1282
        %1284 = vmatmul.f32.gmra.mxu0 %v827
        %v1285 = vpop.f32.mrf.mxu0
        %v1286 = vadd.f32 %v1176, %v1285
        %1287 = vmatmul.f32.gmra.mxu0 %v830
        %v1288 = vpop.f32.mrf.mxu0
        %v1289 = vadd.f32 %v1176, %v1288
        %1290 = vdwg.mxu0
        %vm1291 = vcmask 64512
        %1292 = vst.msk [vmem:[%s417] sm:$0xff] %vm1291, %v1196
        %1293 = vst.msk [vmem:[%s417 + $0x8] sm:$0xff] %vm1291, %v1199
        %1294 = vst.msk [vmem:[%s417 + $0x10] sm:$0xff] %vm1291, %v1202
        %1295 = vst.msk [vmem:[%s417 + $0x18] sm:$0xff] %vm1291, %v1205
        %1296 = vst.msk [vmem:[%s417 + $0x20] sm:$0xff] %vm1291, %v1208
        %1297 = vst.msk [vmem:[%s417 + $0x28] sm:$0xff] %vm1291, %v1211
        %1298 = vst.msk [vmem:[%s417 + $0x30] sm:$0xff] %vm1291, %v1214
        %1299 = vst.msk [vmem:[%s417 + $0x38] sm:$0xff] %vm1291, %v1217
        %1300 = vst.msk [vmem:[%s417 + $0x40] sm:$0xff] %vm1291, %v1220
        %1301 = vst.msk [vmem:[%s417 + $0x48] sm:$0xff] %vm1291, %v1223
        %1302 = vst.msk [vmem:[%s417 + $0x50] sm:$0xff] %vm1291, %v1226
        %1303 = vst.msk [vmem:[%s417 + $0x58] sm:$0xff] %vm1291, %v1229
        %1304 = vst.msk [vmem:[%s417 + $0x60] sm:$0xff] %vm1291, %v1232
        %1305 = vst.msk [vmem:[%s417 + $0x68] sm:$0xff] %vm1291, %v1235
        %1306 = vst.msk [vmem:[%s417 + $0x70] sm:$0xff] %vm1291, %v1238
        %1307 = vst.msk [vmem:[%s417 + $0x78] sm:$0xff] %vm1291, %v1241
        %1308 = vst.msk [vmem:[%s417 + $0x80] sm:$0xff] %vm1291, %v1244
        %1309 = vst.msk [vmem:[%s417 + $0x88] sm:$0xff] %vm1291, %v1247
        %1310 = vst.msk [vmem:[%s417 + $0x90] sm:$0xff] %vm1291, %v1250
        %1311 = vst.msk [vmem:[%s417 + $0x98] sm:$0xff] %vm1291, %v1253
        %1312 = vst.msk [vmem:[%s417 + $0xa0] sm:$0xff] %vm1291, %v1256
        %1313 = vst.msk [vmem:[%s417 + $0xa8] sm:$0xff] %vm1291, %v1259
        %1314 = vst.msk [vmem:[%s417 + $0xb0] sm:$0xff] %vm1291, %v1262
        %1315 = vst.msk [vmem:[%s417 + $0xb8] sm:$0xff] %vm1291, %v1265
        %1316 = vst.msk [vmem:[%s417 + $0xc0] sm:$0xff] %vm1291, %v1268
        %1317 = vst.msk [vmem:[%s417 + $0xc8] sm:$0xff] %vm1291, %v1271
        %1318 = vst.msk [vmem:[%s417 + $0xd0] sm:$0xff] %vm1291, %v1274
        %1319 = vst.msk [vmem:[%s417 + $0xd8] sm:$0xff] %vm1291, %v1277
        %1320 = vst.msk [vmem:[%s417 + $0xe0] sm:$0xff] %vm1291, %v1280
        %1321 = vst.msk [vmem:[%s417 + $0xe8] sm:$0xff] %vm1291, %v1283
        %1322 = vst.msk [vmem:[%s417 + $0xf0] sm:$0xff] %vm1291, %v1286
        %1323 = vst.msk [vmem:[%s417 + $0xf8] sm:$0xff] %vm1291, %v1289
        %v1324 = vxor.u32 %v1196, 2147483648
        %v1325 = vxor.u32 %v1199, 2147483648
        %v1326 = vxor.u32 %v1202, 2147483648
        %v1327 = vxor.u32 %v1205, 2147483648
        %v1328 = vxor.u32 %v1208, 2147483648
        %v1329 = vxor.u32 %v1211, 2147483648
        %v1330 = vxor.u32 %v1214, 2147483648
        %v1331 = vxor.u32 %v1217, 2147483648
        %v1332 = vxor.u32 %v1220, 2147483648
        %v1333 = vxor.u32 %v1223, 2147483648
        %v1334 = vxor.u32 %v1226, 2147483648
        %v1335 = vxor.u32 %v1229, 2147483648
        %v1336 = vxor.u32 %v1232, 2147483648
        %v1337 = vxor.u32 %v1235, 2147483648
        %v1338 = vxor.u32 %v1238, 2147483648
        %v1339 = vxor.u32 %v1241, 2147483648
        %v1340 = vxor.u32 %v1244, 2147483648
        %v1341 = vxor.u32 %v1247, 2147483648
        %v1342 = vxor.u32 %v1250, 2147483648
        %v1343 = vxor.u32 %v1253, 2147483648
        %v1344 = vxor.u32 %v1256, 2147483648
        %v1345 = vxor.u32 %v1259, 2147483648
        %v1346 = vxor.u32 %v1262, 2147483648
        %v1347 = vxor.u32 %v1265, 2147483648
        %v1348 = vxor.u32 %v1268, 2147483648
        %v1349 = vxor.u32 %v1271, 2147483648
        %v1350 = vxor.u32 %v1274, 2147483648
        %v1351 = vxor.u32 %v1277, 2147483648
        %v1352 = vxor.u32 %v1280, 2147483648
        %v1353 = vxor.u32 %v1283, 2147483648
        %v1354 = vxor.u32 %v1286, 2147483648
        %v1355 = vxor.u32 %v1289, 2147483648
        %v1356 = vmul.f32 %v1324, 1.442695
        %v1357 = vpow.pop %v1356
        %v1358 = vmul.f32 %v1325, 1.442695
        %v1359 = vpow.pop %v1358
        %v1360 = vmul.f32 %v1326, 1.442695
        %v1361 = vpow.pop %v1360
        %v1362 = vmul.f32 %v1327, 1.442695
        %v1363 = vpow.pop %v1362
        %v1364 = vmul.f32 %v1328, 1.442695
        %v1365 = vpow.pop %v1364
        %v1366 = vmul.f32 %v1329, 1.442695
        %v1367 = vpow.pop %v1366
        %v1368 = vmul.f32 %v1330, 1.442695
        %v1369 = vpow.pop %v1368
        %v1370 = vmul.f32 %v1331, 1.442695
        %v1371 = vpow.pop %v1370
        %v1372 = vmul.f32 %v1332, 1.442695
        %v1373 = vpow.pop %v1372
        %v1374 = vmul.f32 %v1333, 1.442695
        %v1375 = vpow.pop %v1374
        %v1376 = vmul.f32 %v1334, 1.442695
        %v1377 = vpow.pop %v1376
        %v1378 = vmul.f32 %v1335, 1.442695
        %v1379 = vpow.pop %v1378
        %v1380 = vmul.f32 %v1336, 1.442695
        %v1381 = vpow.pop %v1380
        %v1382 = vmul.f32 %v1337, 1.442695
        %v1383 = vpow.pop %v1382
        %v1384 = vmul.f32 %v1338, 1.442695
        %v1385 = vpow.pop %v1384
        %v1386 = vmul.f32 %v1339, 1.442695
        %v1387 = vpow.pop %v1386
        %v1388 = vmul.f32 %v1340, 1.442695
        %v1389 = vpow.pop %v1388
        %v1390 = vmul.f32 %v1341, 1.442695
        %v1391 = vpow.pop %v1390
        %v1392 = vmul.f32 %v1342, 1.442695
        %v1393 = vpow.pop %v1392
        %v1394 = vmul.f32 %v1343, 1.442695
        %v1395 = vpow.pop %v1394
        %v1396 = vmul.f32 %v1344, 1.442695
        %v1397 = vpow.pop %v1396
        %v1398 = vmul.f32 %v1345, 1.442695
        %v1399 = vpow.pop %v1398
        %v1400 = vmul.f32 %v1346, 1.442695
        %v1401 = vpow.pop %v1400
        %v1402 = vmul.f32 %v1347, 1.442695
        %v1403 = vpow.pop %v1402
        %v1404 = vmul.f32 %v1348, 1.442695
        %v1405 = vpow.pop %v1404
        %v1406 = vmul.f32 %v1349, 1.442695
        %v1407 = vpow.pop %v1406
        %v1408 = vmul.f32 %v1350, 1.442695
        %v1409 = vpow.pop %v1408
        %v1410 = vmul.f32 %v1351, 1.442695
        %v1411 = vpow.pop %v1410
        %v1412 = vmul.f32 %v1352, 1.442695
        %v1413 = vpow.pop %v1412
        %v1414 = vmul.f32 %v1353, 1.442695
        %v1415 = vpow.pop %v1414
        %v1416 = vmul.f32 %v1354, 1.442695
        %v1417 = vpow.pop %v1416
        %v1418 = vmul.f32 %v1355, 1.442695
        %v1419 = vpow.pop %v1418
        %v1420 = vadd.f32 %v1357, 1.0
        %v1421 = vadd.f32 %v1359, 1.0
        %v1422 = vadd.f32 %v1361, 1.0
        %v1423 = vadd.f32 %v1363, 1.0
        %v1424 = vadd.f32 %v1365, 1.0
        %v1425 = vadd.f32 %v1367, 1.0
        %v1426 = vadd.f32 %v1369, 1.0
        %v1427 = vadd.f32 %v1371, 1.0
        %v1428 = vadd.f32 %v1373, 1.0
        %v1429 = vadd.f32 %v1375, 1.0
        %v1430 = vadd.f32 %v1377, 1.0
        %v1431 = vadd.f32 %v1379, 1.0
        %v1432 = vadd.f32 %v1381, 1.0
        %v1433 = vadd.f32 %v1383, 1.0
        %v1434 = vadd.f32 %v1385, 1.0
        %v1435 = vadd.f32 %v1387, 1.0
        %v1436 = vadd.f32 %v1389, 1.0
        %v1437 = vadd.f32 %v1391, 1.0
        %v1438 = vadd.f32 %v1393, 1.0
        %v1439 = vadd.f32 %v1395, 1.0
        %v1440 = vadd.f32 %v1397, 1.0
        %v1441 = vadd.f32 %v1399, 1.0
        %v1442 = vadd.f32 %v1401, 1.0
        %v1443 = vadd.f32 %v1403, 1.0
        %v1444 = vadd.f32 %v1405, 1.0
        %v1445 = vadd.f32 %v1407, 1.0
        %v1446 = vadd.f32 %v1409, 1.0
        %v1447 = vadd.f32 %v1411, 1.0
        %v1448 = vadd.f32 %v1413, 1.0
        %v1449 = vadd.f32 %v1415, 1.0
        %v1450 = vadd.f32 %v1417, 1.0
        %v1451 = vadd.f32 %v1419, 1.0
        %v1452 = vrcp.pop %v1420
        %v1453 = vmul.f32 %v1420, %v1452
        %v1454 = vsub.f32 1.0, %v1453
        %v1455 = vmul.f32 %v1452, %v1454
        %v1456 = vadd.f32 %v1452, %v1455
        %vm1457 = vweird.f32 %v1420
        %vm1458 = vweird.f32 %v1452
        %vm1459 = vmor %vm1457, %vm1458
        %v1460 = vsel %vm1459, %v1452, %v1456
        %v1461 = vand.u32 2147483647, %v1420
        %vm1462 = vcmp.eq.f32.partialorder %v1461, 8.507059e+37
        %v1463 = vand.u32 %v1420, 2147483648
        %v1464 = vor.u32 1.1754944e-38, %v1463
        %v1465 = vsel %vm1462, %v1464, %v1460
        %v1466 = vmul.f32 1.0, %v1465
        %v1467 = vrcp.pop %v1421
        %v1468 = vmul.f32 %v1421, %v1467
        %v1469 = vsub.f32 1.0, %v1468
        %v1470 = vmul.f32 %v1467, %v1469
        %v1471 = vadd.f32 %v1467, %v1470
        %vm1472 = vweird.f32 %v1421
        %vm1473 = vweird.f32 %v1467
        %vm1474 = vmor %vm1472, %vm1473
        %v1475 = vsel %vm1474, %v1467, %v1471
        %v1476 = vand.u32 2147483647, %v1421
        %vm1477 = vcmp.eq.f32.partialorder %v1476, 8.507059e+37
        %v1478 = vand.u32 %v1421, 2147483648
        %v1479 = vor.u32 1.1754944e-38, %v1478
        %v1480 = vsel %vm1477, %v1479, %v1475
        %v1481 = vmul.f32 1.0, %v1480
        %v1482 = vrcp.pop %v1422
        %v1483 = vmul.f32 %v1422, %v1482
        %v1484 = vsub.f32 1.0, %v1483
        %v1485 = vmul.f32 %v1482, %v1484
        %v1486 = vadd.f32 %v1482, %v1485
        %vm1487 = vweird.f32 %v1422
        %vm1488 = vweird.f32 %v1482
        %vm1489 = vmor %vm1487, %vm1488
        %v1490 = vsel %vm1489, %v1482, %v1486
        %v1491 = vand.u32 2147483647, %v1422
        %vm1492 = vcmp.eq.f32.partialorder %v1491, 8.507059e+37
        %v1493 = vand.u32 %v1422, 2147483648
        %v1494 = vor.u32 1.1754944e-38, %v1493
        %v1495 = vsel %vm1492, %v1494, %v1490
        %v1496 = vmul.f32 1.0, %v1495
        %v1497 = vrcp.pop %v1423
        %v1498 = vmul.f32 %v1423, %v1497
        %v1499 = vsub.f32 1.0, %v1498
        %v1500 = vmul.f32 %v1497, %v1499
        %v1501 = vadd.f32 %v1497, %v1500
        %vm1502 = vweird.f32 %v1423
        %vm1503 = vweird.f32 %v1497
        %vm1504 = vmor %vm1502, %vm1503
        %v1505 = vsel %vm1504, %v1497, %v1501
        %v1506 = vand.u32 2147483647, %v1423
        %vm1507 = vcmp.eq.f32.partialorder %v1506, 8.507059e+37
        %v1508 = vand.u32 %v1423, 2147483648
        %v1509 = vor.u32 1.1754944e-38, %v1508
        %v1510 = vsel %vm1507, %v1509, %v1505
        %v1511 = vmul.f32 1.0, %v1510
        %v1512 = vrcp.pop %v1424
        %v1513 = vmul.f32 %v1424, %v1512
        %v1514 = vsub.f32 1.0, %v1513
        %v1515 = vmul.f32 %v1512, %v1514
        %v1516 = vadd.f32 %v1512, %v1515
        %vm1517 = vweird.f32 %v1424
        %vm1518 = vweird.f32 %v1512
        %vm1519 = vmor %vm1517, %vm1518
        %v1520 = vsel %vm1519, %v1512, %v1516
        %v1521 = vand.u32 2147483647, %v1424
        %vm1522 = vcmp.eq.f32.partialorder %v1521, 8.507059e+37
        %v1523 = vand.u32 %v1424, 2147483648
        %v1524 = vor.u32 1.1754944e-38, %v1523
        %v1525 = vsel %vm1522, %v1524, %v1520
        %v1526 = vmul.f32 1.0, %v1525
        %v1527 = vrcp.pop %v1425
        %v1528 = vmul.f32 %v1425, %v1527
        %v1529 = vsub.f32 1.0, %v1528
        %v1530 = vmul.f32 %v1527, %v1529
        %v1531 = vadd.f32 %v1527, %v1530
        %vm1532 = vweird.f32 %v1425
        %vm1533 = vweird.f32 %v1527
        %vm1534 = vmor %vm1532, %vm1533
        %v1535 = vsel %vm1534, %v1527, %v1531
        %v1536 = vand.u32 2147483647, %v1425
        %vm1537 = vcmp.eq.f32.partialorder %v1536, 8.507059e+37
        %v1538 = vand.u32 %v1425, 2147483648
        %v1539 = vor.u32 1.1754944e-38, %v1538
        %v1540 = vsel %vm1537, %v1539, %v1535
        %v1541 = vmul.f32 1.0, %v1540
        %v1542 = vrcp.pop %v1426
        %v1543 = vmul.f32 %v1426, %v1542
        %v1544 = vsub.f32 1.0, %v1543
        %v1545 = vmul.f32 %v1542, %v1544
        %v1546 = vadd.f32 %v1542, %v1545
        %vm1547 = vweird.f32 %v1426
        %vm1548 = vweird.f32 %v1542
        %vm1549 = vmor %vm1547, %vm1548
        %v1550 = vsel %vm1549, %v1542, %v1546
        %v1551 = vand.u32 2147483647, %v1426
        %vm1552 = vcmp.eq.f32.partialorder %v1551, 8.507059e+37
        %v1553 = vand.u32 %v1426, 2147483648
        %v1554 = vor.u32 1.1754944e-38, %v1553
        %v1555 = vsel %vm1552, %v1554, %v1550
        %v1556 = vmul.f32 1.0, %v1555
        %v1557 = vrcp.pop %v1427
        %v1558 = vmul.f32 %v1427, %v1557
        %v1559 = vsub.f32 1.0, %v1558
        %v1560 = vmul.f32 %v1557, %v1559
        %v1561 = vadd.f32 %v1557, %v1560
        %vm1562 = vweird.f32 %v1427
        %vm1563 = vweird.f32 %v1557
        %vm1564 = vmor %vm1562, %vm1563
        %v1565 = vsel %vm1564, %v1557, %v1561
        %v1566 = vand.u32 2147483647, %v1427
        %vm1567 = vcmp.eq.f32.partialorder %v1566, 8.507059e+37
        %v1568 = vand.u32 %v1427, 2147483648
        %v1569 = vor.u32 1.1754944e-38, %v1568
        %v1570 = vsel %vm1567, %v1569, %v1565
        %v1571 = vmul.f32 1.0, %v1570
        %v1572 = vrcp.pop %v1428
        %v1573 = vmul.f32 %v1428, %v1572
        %v1574 = vsub.f32 1.0, %v1573
        %v1575 = vmul.f32 %v1572, %v1574
        %v1576 = vadd.f32 %v1572, %v1575
        %vm1577 = vweird.f32 %v1428
        %vm1578 = vweird.f32 %v1572
        %vm1579 = vmor %vm1577, %vm1578
        %v1580 = vsel %vm1579, %v1572, %v1576
        %v1581 = vand.u32 2147483647, %v1428
        %vm1582 = vcmp.eq.f32.partialorder %v1581, 8.507059e+37
        %v1583 = vand.u32 %v1428, 2147483648
        %v1584 = vor.u32 1.1754944e-38, %v1583
        %v1585 = vsel %vm1582, %v1584, %v1580
        %v1586 = vmul.f32 1.0, %v1585
        %v1587 = vrcp.pop %v1429
        %v1588 = vmul.f32 %v1429, %v1587
        %v1589 = vsub.f32 1.0, %v1588
        %v1590 = vmul.f32 %v1587, %v1589
        %v1591 = vadd.f32 %v1587, %v1590
        %vm1592 = vweird.f32 %v1429
        %vm1593 = vweird.f32 %v1587
        %vm1594 = vmor %vm1592, %vm1593
        %v1595 = vsel %vm1594, %v1587, %v1591
        %v1596 = vand.u32 2147483647, %v1429
        %vm1597 = vcmp.eq.f32.partialorder %v1596, 8.507059e+37
        %v1598 = vand.u32 %v1429, 2147483648
        %v1599 = vor.u32 1.1754944e-38, %v1598
        %v1600 = vsel %vm1597, %v1599, %v1595
        %v1601 = vmul.f32 1.0, %v1600
        %v1602 = vrcp.pop %v1430
        %v1603 = vmul.f32 %v1430, %v1602
        %v1604 = vsub.f32 1.0, %v1603
        %v1605 = vmul.f32 %v1602, %v1604
        %v1606 = vadd.f32 %v1602, %v1605
        %vm1607 = vweird.f32 %v1430
        %vm1608 = vweird.f32 %v1602
        %vm1609 = vmor %vm1607, %vm1608
        %v1610 = vsel %vm1609, %v1602, %v1606
        %v1611 = vand.u32 2147483647, %v1430
        %vm1612 = vcmp.eq.f32.partialorder %v1611, 8.507059e+37
        %v1613 = vand.u32 %v1430, 2147483648
        %v1614 = vor.u32 1.1754944e-38, %v1613
        %v1615 = vsel %vm1612, %v1614, %v1610
        %v1616 = vmul.f32 1.0, %v1615
        %v1617 = vrcp.pop %v1431
        %v1618 = vmul.f32 %v1431, %v1617
        %v1619 = vsub.f32 1.0, %v1618
        %v1620 = vmul.f32 %v1617, %v1619
        %v1621 = vadd.f32 %v1617, %v1620
        %vm1622 = vweird.f32 %v1431
        %vm1623 = vweird.f32 %v1617
        %vm1624 = vmor %vm1622, %vm1623
        %v1625 = vsel %vm1624, %v1617, %v1621
        %v1626 = vand.u32 2147483647, %v1431
        %vm1627 = vcmp.eq.f32.partialorder %v1626, 8.507059e+37
        %v1628 = vand.u32 %v1431, 2147483648
        %v1629 = vor.u32 1.1754944e-38, %v1628
        %v1630 = vsel %vm1627, %v1629, %v1625
        %v1631 = vmul.f32 1.0, %v1630
        %v1632 = vrcp.pop %v1432
        %v1633 = vmul.f32 %v1432, %v1632
        %v1634 = vsub.f32 1.0, %v1633
        %v1635 = vmul.f32 %v1632, %v1634
        %v1636 = vadd.f32 %v1632, %v1635
        %vm1637 = vweird.f32 %v1432
        %vm1638 = vweird.f32 %v1632
        %vm1639 = vmor %vm1637, %vm1638
        %v1640 = vsel %vm1639, %v1632, %v1636
        %v1641 = vand.u32 2147483647, %v1432
        %vm1642 = vcmp.eq.f32.partialorder %v1641, 8.507059e+37
        %v1643 = vand.u32 %v1432, 2147483648
        %v1644 = vor.u32 1.1754944e-38, %v1643
        %v1645 = vsel %vm1642, %v1644, %v1640
        %v1646 = vmul.f32 1.0, %v1645
        %v1647 = vrcp.pop %v1433
        %v1648 = vmul.f32 %v1433, %v1647
        %v1649 = vsub.f32 1.0, %v1648
        %v1650 = vmul.f32 %v1647, %v1649
        %v1651 = vadd.f32 %v1647, %v1650
        %vm1652 = vweird.f32 %v1433
        %vm1653 = vweird.f32 %v1647
        %vm1654 = vmor %vm1652, %vm1653
        %v1655 = vsel %vm1654, %v1647, %v1651
        %v1656 = vand.u32 2147483647, %v1433
        %vm1657 = vcmp.eq.f32.partialorder %v1656, 8.507059e+37
        %v1658 = vand.u32 %v1433, 2147483648
        %v1659 = vor.u32 1.1754944e-38, %v1658
        %v1660 = vsel %vm1657, %v1659, %v1655
        %v1661 = vmul.f32 1.0, %v1660
        %v1662 = vrcp.pop %v1434
        %v1663 = vmul.f32 %v1434, %v1662
        %v1664 = vsub.f32 1.0, %v1663
        %v1665 = vmul.f32 %v1662, %v1664
        %v1666 = vadd.f32 %v1662, %v1665
        %vm1667 = vweird.f32 %v1434
        %vm1668 = vweird.f32 %v1662
        %vm1669 = vmor %vm1667, %vm1668
        %v1670 = vsel %vm1669, %v1662, %v1666
        %v1671 = vand.u32 2147483647, %v1434
        %vm1672 = vcmp.eq.f32.partialorder %v1671, 8.507059e+37
        %v1673 = vand.u32 %v1434, 2147483648
        %v1674 = vor.u32 1.1754944e-38, %v1673
        %v1675 = vsel %vm1672, %v1674, %v1670
        %v1676 = vmul.f32 1.0, %v1675
        %v1677 = vrcp.pop %v1435
        %v1678 = vmul.f32 %v1435, %v1677
        %v1679 = vsub.f32 1.0, %v1678
        %v1680 = vmul.f32 %v1677, %v1679
        %v1681 = vadd.f32 %v1677, %v1680
        %vm1682 = vweird.f32 %v1435
        %vm1683 = vweird.f32 %v1677
        %vm1684 = vmor %vm1682, %vm1683
        %v1685 = vsel %vm1684, %v1677, %v1681
        %v1686 = vand.u32 2147483647, %v1435
        %vm1687 = vcmp.eq.f32.partialorder %v1686, 8.507059e+37
        %v1688 = vand.u32 %v1435, 2147483648
        %v1689 = vor.u32 1.1754944e-38, %v1688
        %v1690 = vsel %vm1687, %v1689, %v1685
        %v1691 = vmul.f32 1.0, %v1690
        %v1692 = vrcp.pop %v1436
        %v1693 = vmul.f32 %v1436, %v1692
        %v1694 = vsub.f32 1.0, %v1693
        %v1695 = vmul.f32 %v1692, %v1694
        %v1696 = vadd.f32 %v1692, %v1695
        %vm1697 = vweird.f32 %v1436
        %vm1698 = vweird.f32 %v1692
        %vm1699 = vmor %vm1697, %vm1698
        %v1700 = vsel %vm1699, %v1692, %v1696
        %v1701 = vand.u32 2147483647, %v1436
        %vm1702 = vcmp.eq.f32.partialorder %v1701, 8.507059e+37
        %v1703 = vand.u32 %v1436, 2147483648
        %v1704 = vor.u32 1.1754944e-38, %v1703
        %v1705 = vsel %vm1702, %v1704, %v1700
        %v1706 = vmul.f32 1.0, %v1705
        %v1707 = vrcp.pop %v1437
        %v1708 = vmul.f32 %v1437, %v1707
        %v1709 = vsub.f32 1.0, %v1708
        %v1710 = vmul.f32 %v1707, %v1709
        %v1711 = vadd.f32 %v1707, %v1710
        %vm1712 = vweird.f32 %v1437
        %vm1713 = vweird.f32 %v1707
        %vm1714 = vmor %vm1712, %vm1713
        %v1715 = vsel %vm1714, %v1707, %v1711
        %v1716 = vand.u32 2147483647, %v1437
        %vm1717 = vcmp.eq.f32.partialorder %v1716, 8.507059e+37
        %v1718 = vand.u32 %v1437, 2147483648
        %v1719 = vor.u32 1.1754944e-38, %v1718
        %v1720 = vsel %vm1717, %v1719, %v1715
        %v1721 = vmul.f32 1.0, %v1720
        %v1722 = vrcp.pop %v1438
        %v1723 = vmul.f32 %v1438, %v1722
        %v1724 = vsub.f32 1.0, %v1723
        %v1725 = vmul.f32 %v1722, %v1724
        %v1726 = vadd.f32 %v1722, %v1725
        %vm1727 = vweird.f32 %v1438
        %vm1728 = vweird.f32 %v1722
        %vm1729 = vmor %vm1727, %vm1728
        %v1730 = vsel %vm1729, %v1722, %v1726
        %v1731 = vand.u32 2147483647, %v1438
        %vm1732 = vcmp.eq.f32.partialorder %v1731, 8.507059e+37
        %v1733 = vand.u32 %v1438, 2147483648
        %v1734 = vor.u32 1.1754944e-38, %v1733
        %v1735 = vsel %vm1732, %v1734, %v1730
        %v1736 = vmul.f32 1.0, %v1735
        %v1737 = vrcp.pop %v1439
        %v1738 = vmul.f32 %v1439, %v1737
        %v1739 = vsub.f32 1.0, %v1738
        %v1740 = vmul.f32 %v1737, %v1739
        %v1741 = vadd.f32 %v1737, %v1740
        %vm1742 = vweird.f32 %v1439
        %vm1743 = vweird.f32 %v1737
        %vm1744 = vmor %vm1742, %vm1743
        %v1745 = vsel %vm1744, %v1737, %v1741
        %v1746 = vand.u32 2147483647, %v1439
        %vm1747 = vcmp.eq.f32.partialorder %v1746, 8.507059e+37
        %v1748 = vand.u32 %v1439, 2147483648
        %v1749 = vor.u32 1.1754944e-38, %v1748
        %v1750 = vsel %vm1747, %v1749, %v1745
        %v1751 = vmul.f32 1.0, %v1750
        %v1752 = vrcp.pop %v1440
        %v1753 = vmul.f32 %v1440, %v1752
        %v1754 = vsub.f32 1.0, %v1753
        %v1755 = vmul.f32 %v1752, %v1754
        %v1756 = vadd.f32 %v1752, %v1755
        %vm1757 = vweird.f32 %v1440
        %vm1758 = vweird.f32 %v1752
        %vm1759 = vmor %vm1757, %vm1758
        %v1760 = vsel %vm1759, %v1752, %v1756
        %v1761 = vand.u32 2147483647, %v1440
        %vm1762 = vcmp.eq.f32.partialorder %v1761, 8.507059e+37
        %v1763 = vand.u32 %v1440, 2147483648
        %v1764 = vor.u32 1.1754944e-38, %v1763
        %v1765 = vsel %vm1762, %v1764, %v1760
        %v1766 = vmul.f32 1.0, %v1765
        %v1767 = vrcp.pop %v1441
        %v1768 = vmul.f32 %v1441, %v1767
        %v1769 = vsub.f32 1.0, %v1768
        %v1770 = vmul.f32 %v1767, %v1769
        %v1771 = vadd.f32 %v1767, %v1770
        %vm1772 = vweird.f32 %v1441
        %vm1773 = vweird.f32 %v1767
        %vm1774 = vmor %vm1772, %vm1773
        %v1775 = vsel %vm1774, %v1767, %v1771
        %v1776 = vand.u32 2147483647, %v1441
        %vm1777 = vcmp.eq.f32.partialorder %v1776, 8.507059e+37
        %v1778 = vand.u32 %v1441, 2147483648
        %v1779 = vor.u32 1.1754944e-38, %v1778
        %v1780 = vsel %vm1777, %v1779, %v1775
        %v1781 = vmul.f32 1.0, %v1780
        %v1782 = vrcp.pop %v1442
        %v1783 = vmul.f32 %v1442, %v1782
        %v1784 = vsub.f32 1.0, %v1783
        %v1785 = vmul.f32 %v1782, %v1784
        %v1786 = vadd.f32 %v1782, %v1785
        %vm1787 = vweird.f32 %v1442
        %vm1788 = vweird.f32 %v1782
        %vm1789 = vmor %vm1787, %vm1788
        %v1790 = vsel %vm1789, %v1782, %v1786
        %v1791 = vand.u32 2147483647, %v1442
        %vm1792 = vcmp.eq.f32.partialorder %v1791, 8.507059e+37
        %v1793 = vand.u32 %v1442, 2147483648
        %v1794 = vor.u32 1.1754944e-38, %v1793
        %v1795 = vsel %vm1792, %v1794, %v1790
        %v1796 = vmul.f32 1.0, %v1795
        %v1797 = vrcp.pop %v1443
        %v1798 = vmul.f32 %v1443, %v1797
        %v1799 = vsub.f32 1.0, %v1798
        %v1800 = vmul.f32 %v1797, %v1799
        %v1801 = vadd.f32 %v1797, %v1800
        %vm1802 = vweird.f32 %v1443
        %vm1803 = vweird.f32 %v1797
        %vm1804 = vmor %vm1802, %vm1803
        %v1805 = vsel %vm1804, %v1797, %v1801
        %v1806 = vand.u32 2147483647, %v1443
        %vm1807 = vcmp.eq.f32.partialorder %v1806, 8.507059e+37
        %v1808 = vand.u32 %v1443, 2147483648
        %v1809 = vor.u32 1.1754944e-38, %v1808
        %v1810 = vsel %vm1807, %v1809, %v1805
        %v1811 = vmul.f32 1.0, %v1810
        %v1812 = vrcp.pop %v1444
        %v1813 = vmul.f32 %v1444, %v1812
        %v1814 = vsub.f32 1.0, %v1813
        %v1815 = vmul.f32 %v1812, %v1814
        %v1816 = vadd.f32 %v1812, %v1815
        %vm1817 = vweird.f32 %v1444
        %vm1818 = vweird.f32 %v1812
        %vm1819 = vmor %vm1817, %vm1818
        %v1820 = vsel %vm1819, %v1812, %v1816
        %v1821 = vand.u32 2147483647, %v1444
        %vm1822 = vcmp.eq.f32.partialorder %v1821, 8.507059e+37
        %v1823 = vand.u32 %v1444, 2147483648
        %v1824 = vor.u32 1.1754944e-38, %v1823
        %v1825 = vsel %vm1822, %v1824, %v1820
        %v1826 = vmul.f32 1.0, %v1825
        %v1827 = vrcp.pop %v1445
        %v1828 = vmul.f32 %v1445, %v1827
        %v1829 = vsub.f32 1.0, %v1828
        %v1830 = vmul.f32 %v1827, %v1829
        %v1831 = vadd.f32 %v1827, %v1830
        %vm1832 = vweird.f32 %v1445
        %vm1833 = vweird.f32 %v1827
        %vm1834 = vmor %vm1832, %vm1833
        %v1835 = vsel %vm1834, %v1827, %v1831
        %v1836 = vand.u32 2147483647, %v1445
        %vm1837 = vcmp.eq.f32.partialorder %v1836, 8.507059e+37
        %v1838 = vand.u32 %v1445, 2147483648
        %v1839 = vor.u32 1.1754944e-38, %v1838
        %v1840 = vsel %vm1837, %v1839, %v1835
        %v1841 = vmul.f32 1.0, %v1840
        %v1842 = vrcp.pop %v1446
        %v1843 = vmul.f32 %v1446, %v1842
        %v1844 = vsub.f32 1.0, %v1843
        %v1845 = vmul.f32 %v1842, %v1844
        %v1846 = vadd.f32 %v1842, %v1845
        %vm1847 = vweird.f32 %v1446
        %vm1848 = vweird.f32 %v1842
        %vm1849 = vmor %vm1847, %vm1848
        %v1850 = vsel %vm1849, %v1842, %v1846
        %v1851 = vand.u32 2147483647, %v1446
        %vm1852 = vcmp.eq.f32.partialorder %v1851, 8.507059e+37
        %v1853 = vand.u32 %v1446, 2147483648
        %v1854 = vor.u32 1.1754944e-38, %v1853
        %v1855 = vsel %vm1852, %v1854, %v1850
        %v1856 = vmul.f32 1.0, %v1855
        %v1857 = vrcp.pop %v1447
        %v1858 = vmul.f32 %v1447, %v1857
        %v1859 = vsub.f32 1.0, %v1858
        %v1860 = vmul.f32 %v1857, %v1859
        %v1861 = vadd.f32 %v1857, %v1860
        %vm1862 = vweird.f32 %v1447
        %vm1863 = vweird.f32 %v1857
        %vm1864 = vmor %vm1862, %vm1863
        %v1865 = vsel %vm1864, %v1857, %v1861
        %v1866 = vand.u32 2147483647, %v1447
        %vm1867 = vcmp.eq.f32.partialorder %v1866, 8.507059e+37
        %v1868 = vand.u32 %v1447, 2147483648
        %v1869 = vor.u32 1.1754944e-38, %v1868
        %v1870 = vsel %vm1867, %v1869, %v1865
        %v1871 = vmul.f32 1.0, %v1870
        %v1872 = vrcp.pop %v1448
        %v1873 = vmul.f32 %v1448, %v1872
        %v1874 = vsub.f32 1.0, %v1873
        %v1875 = vmul.f32 %v1872, %v1874
        %v1876 = vadd.f32 %v1872, %v1875
        %vm1877 = vweird.f32 %v1448
        %vm1878 = vweird.f32 %v1872
        %vm1879 = vmor %vm1877, %vm1878
        %v1880 = vsel %vm1879, %v1872, %v1876
        %v1881 = vand.u32 2147483647, %v1448
        %vm1882 = vcmp.eq.f32.partialorder %v1881, 8.507059e+37
        %v1883 = vand.u32 %v1448, 2147483648
        %v1884 = vor.u32 1.1754944e-38, %v1883
        %v1885 = vsel %vm1882, %v1884, %v1880
        %v1886 = vmul.f32 1.0, %v1885
        %v1887 = vrcp.pop %v1449
        %v1888 = vmul.f32 %v1449, %v1887
        %v1889 = vsub.f32 1.0, %v1888
        %v1890 = vmul.f32 %v1887, %v1889
        %v1891 = vadd.f32 %v1887, %v1890
        %vm1892 = vweird.f32 %v1449
        %vm1893 = vweird.f32 %v1887
        %vm1894 = vmor %vm1892, %vm1893
        %v1895 = vsel %vm1894, %v1887, %v1891
        %v1896 = vand.u32 2147483647, %v1449
        %vm1897 = vcmp.eq.f32.partialorder %v1896, 8.507059e+37
        %v1898 = vand.u32 %v1449, 2147483648
        %v1899 = vor.u32 1.1754944e-38, %v1898
        %v1900 = vsel %vm1897, %v1899, %v1895
        %v1901 = vmul.f32 1.0, %v1900
        %v1902 = vrcp.pop %v1450
        %v1903 = vmul.f32 %v1450, %v1902
        %v1904 = vsub.f32 1.0, %v1903
        %v1905 = vmul.f32 %v1902, %v1904
        %v1906 = vadd.f32 %v1902, %v1905
        %vm1907 = vweird.f32 %v1450
        %vm1908 = vweird.f32 %v1902
        %vm1909 = vmor %vm1907, %vm1908
        %v1910 = vsel %vm1909, %v1902, %v1906
        %v1911 = vand.u32 2147483647, %v1450
        %vm1912 = vcmp.eq.f32.partialorder %v1911, 8.507059e+37
        %v1913 = vand.u32 %v1450, 2147483648
        %v1914 = vor.u32 1.1754944e-38, %v1913
        %v1915 = vsel %vm1912, %v1914, %v1910
        %v1916 = vmul.f32 1.0, %v1915
        %v1917 = vrcp.pop %v1451
        %v1918 = vmul.f32 %v1451, %v1917
        %v1919 = vsub.f32 1.0, %v1918
        %v1920 = vmul.f32 %v1917, %v1919
        %v1921 = vadd.f32 %v1917, %v1920
        %vm1922 = vweird.f32 %v1451
        %vm1923 = vweird.f32 %v1917
        %vm1924 = vmor %vm1922, %vm1923
        %v1925 = vsel %vm1924, %v1917, %v1921
        %v1926 = vand.u32 2147483647, %v1451
        %vm1927 = vcmp.eq.f32.partialorder %v1926, 8.507059e+37
        %v1928 = vand.u32 %v1451, 2147483648
        %v1929 = vor.u32 1.1754944e-38, %v1928
        %v1930 = vsel %vm1927, %v1929, %v1925
        %v1931 = vmul.f32 1.0, %v1930
        %vm1932 = vcmp.eq.s32.totalorder %v936, 2
        %v1933 = vsel %vm1932, 10.0, 13.0
        %v1934 = vmul.f32 %v1466, 2.0
        %v1935 = vmul.f32 %v1481, 2.0
        %v1936 = vmul.f32 %v1496, 2.0
        %v1937 = vmul.f32 %v1511, 2.0
        %v1938 = vmul.f32 %v1526, 2.0
        %v1939 = vmul.f32 %v1541, 2.0
        %v1940 = vmul.f32 %v1556, 2.0
        %v1941 = vmul.f32 %v1571, 2.0
        %v1942 = vmul.f32 %v1586, 2.0
        %v1943 = vmul.f32 %v1601, 2.0
        %v1944 = vmul.f32 %v1616, 2.0
        %v1945 = vmul.f32 %v1631, 2.0
        %v1946 = vmul.f32 %v1646, 2.0
        %v1947 = vmul.f32 %v1661, 2.0
        %v1948 = vmul.f32 %v1676, 2.0
        %v1949 = vmul.f32 %v1691, 2.0
        %v1950 = vmul.f32 %v1706, 2.0
        %v1951 = vmul.f32 %v1721, 2.0
        %v1952 = vmul.f32 %v1736, 2.0
        %v1953 = vmul.f32 %v1751, 2.0
        %v1954 = vmul.f32 %v1766, 2.0
        %v1955 = vmul.f32 %v1781, 2.0
        %v1956 = vmul.f32 %v1796, 2.0
        %v1957 = vmul.f32 %v1811, 2.0
        %v1958 = vmul.f32 %v1826, 2.0
        %v1959 = vmul.f32 %v1841, 2.0
        %v1960 = vmul.f32 %v1856, 2.0
        %v1961 = vmul.f32 %v1871, 2.0
        %v1962 = vmul.f32 %v1886, 2.0
        %v1963 = vmul.f32 %v1901, 2.0
        %v1964 = vmul.f32 %v1916, 2.0
        %v1965 = vmul.f32 %v1931, 2.0
        %v1966 = vsub.f32 %v1934, 0.5
        %v1967 = vsub.f32 %v1935, 0.5
        %v1968 = vsub.f32 %v1936, 0.5
        %v1969 = vsub.f32 %v1937, 0.5
        %v1970 = vsub.f32 %v1938, 0.5
        %v1971 = vsub.f32 %v1939, 0.5
        %v1972 = vsub.f32 %v1940, 0.5
        %v1973 = vsub.f32 %v1941, 0.5
        %v1974 = vsub.f32 %v1942, 0.5
        %v1975 = vsub.f32 %v1943, 0.5
        %v1976 = vsub.f32 %v1944, 0.5
        %v1977 = vsub.f32 %v1945, 0.5
        %v1978 = vsub.f32 %v1946, 0.5
        %v1979 = vsub.f32 %v1947, 0.5
        %v1980 = vsub.f32 %v1948, 0.5
        %v1981 = vsub.f32 %v1949, 0.5
        %v1982 = vsub.f32 %v1950, 0.5
        %v1983 = vsub.f32 %v1951, 0.5
        %v1984 = vsub.f32 %v1952, 0.5
        %v1985 = vsub.f32 %v1953, 0.5
        %v1986 = vsub.f32 %v1954, 0.5
        %v1987 = vsub.f32 %v1955, 0.5
        %v1988 = vsub.f32 %v1956, 0.5
        %v1989 = vsub.f32 %v1957, 0.5
        %v1990 = vsub.f32 %v1958, 0.5
        %v1991 = vsub.f32 %v1959, 0.5
        %v1992 = vsub.f32 %v1960, 0.5
        %v1993 = vsub.f32 %v1961, 0.5
        %v1994 = vsub.f32 %v1962, 0.5
        %v1995 = vsub.f32 %v1963, 0.5
        %v1996 = vsub.f32 %v1964, 0.5
        %v1997 = vsub.f32 %v1965, 0.5
        %v1998 = vadd.f32 %v1966, %v1138
        %v1999 = vadd.f32 %v1967, %v1139
        %v2000 = vadd.f32 %v1968, %v1140
        %v2001 = vadd.f32 %v1969, %v1141
        %v2002 = vadd.f32 %v1970, %v1142
        %v2003 = vadd.f32 %v1971, %v1143
        %v2004 = vadd.f32 %v1972, %v1144
        %v2005 = vadd.f32 %v1973, %v1145
        %v2006 = vadd.f32 %v1974, %v1146
        %v2007 = vadd.f32 %v1975, %v1147
        %v2008 = vadd.f32 %v1976, %v1148
        %v2009 = vadd.f32 %v1977, %v1149
        %v2010 = vadd.f32 %v1978, %v1150
        %v2011 = vadd.f32 %v1979, %v1151
        %v2012 = vadd.f32 %v1980, %v1152
        %v2013 = vadd.f32 %v1981, %v1153
        %v2014 = vadd.f32 %v1982, %v1154
        %v2015 = vadd.f32 %v1983, %v1155
        %v2016 = vadd.f32 %v1984, %v1156
        %v2017 = vadd.f32 %v1985, %v1157
        %v2018 = vadd.f32 %v1986, %v1158
        %v2019 = vadd.f32 %v1987, %v1159
        %v2020 = vadd.f32 %v1988, %v1160
        %v2021 = vadd.f32 %v1989, %v1161
        %v2022 = vadd.f32 %v1990, %v1162
        %v2023 = vadd.f32 %v1991, %v1163
        %v2024 = vadd.f32 %v1992, %v1164
        %v2025 = vadd.f32 %v1993, %v1165
        %v2026 = vadd.f32 %v1994, %v1166
        %v2027 = vadd.f32 %v1995, %v1167
        %v2028 = vadd.f32 %v1996, %v1168
        %v2029 = vadd.f32 %v1997, %v1169
        %v2030 = vmul.f32 %v1998, 8.0
        %v2031 = vmul.f32 %v1999, 8.0
        %v2032 = vmul.f32 %v2000, 8.0
        %v2033 = vmul.f32 %v2001, 8.0
        %v2034 = vmul.f32 %v2002, 8.0
        %v2035 = vmul.f32 %v2003, 8.0
        %v2036 = vmul.f32 %v2004, 8.0
        %v2037 = vmul.f32 %v2005, 8.0
        %v2038 = vmul.f32 %v2006, 8.0
        %v2039 = vmul.f32 %v2007, 8.0
        %v2040 = vmul.f32 %v2008, 8.0
        %v2041 = vmul.f32 %v2009, 8.0
        %v2042 = vmul.f32 %v2010, 8.0
        %v2043 = vmul.f32 %v2011, 8.0
        %v2044 = vmul.f32 %v2012, 8.0
        %v2045 = vmul.f32 %v2013, 8.0
        %v2046 = vmul.f32 %v2014, 8.0
        %v2047 = vmul.f32 %v2015, 8.0
        %v2048 = vmul.f32 %v2016, 8.0
        %v2049 = vmul.f32 %v2017, 8.0
        %v2050 = vmul.f32 %v2018, 8.0
        %v2051 = vmul.f32 %v2019, 8.0
        %v2052 = vmul.f32 %v2020, 8.0
        %v2053 = vmul.f32 %v2021, 8.0
        %v2054 = vmul.f32 %v2022, 8.0
        %v2055 = vmul.f32 %v2023, 8.0
        %v2056 = vmul.f32 %v2024, 8.0
        %v2057 = vmul.f32 %v2025, 8.0
        %v2058 = vmul.f32 %v2026, 8.0
        %v2059 = vmul.f32 %v2027, 8.0
        %v2060 = vmul.f32 %v2028, 8.0
        %v2061 = vmul.f32 %v2029, 8.0
        %v2062 = vmul.f32 %v1934, %v1934
        %v2063 = vmul.f32 %v1935, %v1935
        %v2064 = vmul.f32 %v1936, %v1936
        %v2065 = vmul.f32 %v1937, %v1937
        %v2066 = vmul.f32 %v1938, %v1938
        %v2067 = vmul.f32 %v1939, %v1939
        %v2068 = vmul.f32 %v1940, %v1940
        %v2069 = vmul.f32 %v1941, %v1941
        %v2070 = vmul.f32 %v1942, %v1942
        %v2071 = vmul.f32 %v1943, %v1943
        %v2072 = vmul.f32 %v1944, %v1944
        %v2073 = vmul.f32 %v1945, %v1945
        %v2074 = vmul.f32 %v1946, %v1946
        %v2075 = vmul.f32 %v1947, %v1947
        %v2076 = vmul.f32 %v1948, %v1948
        %v2077 = vmul.f32 %v1949, %v1949
        %v2078 = vmul.f32 %v1950, %v1950
        %v2079 = vmul.f32 %v1951, %v1951
        %v2080 = vmul.f32 %v1952, %v1952
        %v2081 = vmul.f32 %v1953, %v1953
        %v2082 = vmul.f32 %v1954, %v1954
        %v2083 = vmul.f32 %v1955, %v1955
        %v2084 = vmul.f32 %v1956, %v1956
        %v2085 = vmul.f32 %v1957, %v1957
        %v2086 = vmul.f32 %v1958, %v1958
        %v2087 = vmul.f32 %v1959, %v1959
        %v2088 = vmul.f32 %v1960, %v1960
        %v2089 = vmul.f32 %v1961, %v1961
        %v2090 = vmul.f32 %v1962, %v1962
        %v2091 = vmul.f32 %v1963, %v1963
        %v2092 = vmul.f32 %v1964, %v1964
        %v2093 = vmul.f32 %v1965, %v1965
        %v2094 = vmul.f32 %v2062, %v1933
        %v2095 = vmul.f32 %v2063, %v1933
        %v2096 = vmul.f32 %v2064, %v1933
        %v2097 = vmul.f32 %v2065, %v1933
        %v2098 = vmul.f32 %v2066, %v1933
        %v2099 = vmul.f32 %v2067, %v1933
        %v2100 = vmul.f32 %v2068, %v1933
        %v2101 = vmul.f32 %v2069, %v1933
        %v2102 = vmul.f32 %v2070, %v1933
        %v2103 = vmul.f32 %v2071, %v1933
        %v2104 = vmul.f32 %v2072, %v1933
        %v2105 = vmul.f32 %v2073, %v1933
        %v2106 = vmul.f32 %v2074, %v1933
        %v2107 = vmul.f32 %v2075, %v1933
        %v2108 = vmul.f32 %v2076, %v1933
        %v2109 = vmul.f32 %v2077, %v1933
        %v2110 = vmul.f32 %v2078, %v1933
        %v2111 = vmul.f32 %v2079, %v1933
        %v2112 = vmul.f32 %v2080, %v1933
        %v2113 = vmul.f32 %v2081, %v1933
        %v2114 = vmul.f32 %v2082, %v1933
        %v2115 = vmul.f32 %v2083, %v1933
        %v2116 = vmul.f32 %v2084, %v1933
        %v2117 = vmul.f32 %v2085, %v1933
        %v2118 = vmul.f32 %v2086, %v1933
        %v2119 = vmul.f32 %v2087, %v1933
        %v2120 = vmul.f32 %v2088, %v1933
        %v2121 = vmul.f32 %v2089, %v1933
        %v2122 = vmul.f32 %v2090, %v1933
        %v2123 = vmul.f32 %v2091, %v1933
        %v2124 = vmul.f32 %v2092, %v1933
        %v2125 = vmul.f32 %v2093, %v1933
        %vm2126 = vcmp.lt.s32.totalorder %v936, 2
        %vm2127 = vcmp.lt.s32.totalorder %v936, 4
        %v2128 = vsel %vm2127, %v2094, %v1466
        %v2129 = vsel %vm2127, %v2095, %v1481
        %v2130 = vsel %vm2127, %v2096, %v1496
        %v2131 = vsel %vm2127, %v2097, %v1511
        %v2132 = vsel %vm2127, %v2098, %v1526
        %v2133 = vsel %vm2127, %v2099, %v1541
        %v2134 = vsel %vm2127, %v2100, %v1556
        %v2135 = vsel %vm2127, %v2101, %v1571
        %v2136 = vsel %vm2127, %v2102, %v1586
        %v2137 = vsel %vm2127, %v2103, %v1601
        %v2138 = vsel %vm2127, %v2104, %v1616
        %v2139 = vsel %vm2127, %v2105, %v1631
        %v2140 = vsel %vm2127, %v2106, %v1646
        %v2141 = vsel %vm2127, %v2107, %v1661
        %v2142 = vsel %vm2127, %v2108, %v1676
        %v2143 = vsel %vm2127, %v2109, %v1691
        %v2144 = vsel %vm2127, %v2110, %v1706
        %v2145 = vsel %vm2127, %v2111, %v1721
        %v2146 = vsel %vm2127, %v2112, %v1736
        %v2147 = vsel %vm2127, %v2113, %v1751
        %v2148 = vsel %vm2127, %v2114, %v1766
        %v2149 = vsel %vm2127, %v2115, %v1781
        %v2150 = vsel %vm2127, %v2116, %v1796
        %v2151 = vsel %vm2127, %v2117, %v1811
        %v2152 = vsel %vm2127, %v2118, %v1826
        %v2153 = vsel %vm2127, %v2119, %v1841
        %v2154 = vsel %vm2127, %v2120, %v1856
        %v2155 = vsel %vm2127, %v2121, %v1871
        %v2156 = vsel %vm2127, %v2122, %v1886
        %v2157 = vsel %vm2127, %v2123, %v1901
        %v2158 = vsel %vm2127, %v2124, %v1916
        %v2159 = vsel %vm2127, %v2125, %v1931
        %v2160 = vsel %vm2126, %v2030, %v2128
        %v2161 = vsel %vm2126, %v2031, %v2129
        %v2162 = vsel %vm2126, %v2032, %v2130
        %v2163 = vsel %vm2126, %v2033, %v2131
        %v2164 = vsel %vm2126, %v2034, %v2132
        %v2165 = vsel %vm2126, %v2035, %v2133
        %v2166 = vsel %vm2126, %v2036, %v2134
        %v2167 = vsel %vm2126, %v2037, %v2135
        %v2168 = vsel %vm2126, %v2038, %v2136
        %v2169 = vsel %vm2126, %v2039, %v2137
        %v2170 = vsel %vm2126, %v2040, %v2138
        %v2171 = vsel %vm2126, %v2041, %v2139
        %v2172 = vsel %vm2126, %v2042, %v2140
        %v2173 = vsel %vm2126, %v2043, %v2141
        %v2174 = vsel %vm2126, %v2044, %v2142
        %v2175 = vsel %vm2126, %v2045, %v2143
        %v2176 = vsel %vm2126, %v2046, %v2144
        %v2177 = vsel %vm2126, %v2047, %v2145
        %v2178 = vsel %vm2126, %v2048, %v2146
        %v2179 = vsel %vm2126, %v2049, %v2147
        %v2180 = vsel %vm2126, %v2050, %v2148
        %v2181 = vsel %vm2126, %v2051, %v2149
        %v2182 = vsel %vm2126, %v2052, %v2150
        %v2183 = vsel %vm2126, %v2053, %v2151
        %v2184 = vsel %vm2126, %v2054, %v2152
        %v2185 = vsel %vm2126, %v2055, %v2153
        %v2186 = vsel %vm2126, %v2056, %v2154
        %v2187 = vsel %vm2126, %v2057, %v2155
        %v2188 = vsel %vm2126, %v2058, %v2156
        %v2189 = vsel %vm2126, %v2059, %v2157
        %v2190 = vsel %vm2126, %v2060, %v2158
        %v2191 = vsel %vm2126, %v2061, %v2159
        %2192 = vst.msk [vmem:[%s441] sm:$0xff] %vm1291, %v2160
        %2193 = vst.msk [vmem:[%s441 + $0x8] sm:$0xff] %vm1291, %v2161
        %2194 = vst.msk [vmem:[%s441 + $0x10] sm:$0xff] %vm1291, %v2162
        %2195 = vst.msk [vmem:[%s441 + $0x18] sm:$0xff] %vm1291, %v2163
        %2196 = vst.msk [vmem:[%s441 + $0x20] sm:$0xff] %vm1291, %v2164
        %2197 = vst.msk [vmem:[%s441 + $0x28] sm:$0xff] %vm1291, %v2165
        %2198 = vst.msk [vmem:[%s441 + $0x30] sm:$0xff] %vm1291, %v2166
        %2199 = vst.msk [vmem:[%s441 + $0x38] sm:$0xff] %vm1291, %v2167
        %2200 = vst.msk [vmem:[%s441 + $0x40] sm:$0xff] %vm1291, %v2168
        %2201 = vst.msk [vmem:[%s441 + $0x48] sm:$0xff] %vm1291, %v2169
        %2202 = vst.msk [vmem:[%s441 + $0x50] sm:$0xff] %vm1291, %v2170
        %2203 = vst.msk [vmem:[%s441 + $0x58] sm:$0xff] %vm1291, %v2171
        %2204 = vst.msk [vmem:[%s441 + $0x60] sm:$0xff] %vm1291, %v2172
        %2205 = vst.msk [vmem:[%s441 + $0x68] sm:$0xff] %vm1291, %v2173
        %2206 = vst.msk [vmem:[%s441 + $0x70] sm:$0xff] %vm1291, %v2174
        %2207 = vst.msk [vmem:[%s441 + $0x78] sm:$0xff] %vm1291, %v2175
        %2208 = vst.msk [vmem:[%s441 + $0x80] sm:$0xff] %vm1291, %v2176
        %2209 = vst.msk [vmem:[%s441 + $0x88] sm:$0xff] %vm1291, %v2177
        %2210 = vst.msk [vmem:[%s441 + $0x90] sm:$0xff] %vm1291, %v2178
        %2211 = vst.msk [vmem:[%s441 + $0x98] sm:$0xff] %vm1291, %v2179
        %2212 = vst.msk [vmem:[%s441 + $0xa0] sm:$0xff] %vm1291, %v2180
        %2213 = vst.msk [vmem:[%s441 + $0xa8] sm:$0xff] %vm1291, %v2181
        %2214 = vst.msk [vmem:[%s441 + $0xb0] sm:$0xff] %vm1291, %v2182
        %2215 = vst.msk [vmem:[%s441 + $0xb8] sm:$0xff] %vm1291, %v2183
        %2216 = vst.msk [vmem:[%s441 + $0xc0] sm:$0xff] %vm1291, %v2184
        %2217 = vst.msk [vmem:[%s441 + $0xc8] sm:$0xff] %vm1291, %v2185
        %2218 = vst.msk [vmem:[%s441 + $0xd0] sm:$0xff] %vm1291, %v2186
        %2219 = vst.msk [vmem:[%s441 + $0xd8] sm:$0xff] %vm1291, %v2187
        %2220 = vst.msk [vmem:[%s441 + $0xe0] sm:$0xff] %vm1291, %v2188
        %2221 = vst.msk [vmem:[%s441 + $0xe8] sm:$0xff] %vm1291, %v2189
        %2222 = vst.msk [vmem:[%s441 + $0xf0] sm:$0xff] %vm1291, %v2190
        %2223 = vst.msk [vmem:[%s441 + $0xf8] sm:$0xff] %vm1291, %v2191
        %s2224 = scalar_lea.vmem %s3, 32
        %v2225 = vld [vmem:[%s2224] sm:$0xff]
        %v2226 = vld [vmem:[%s2224 + $0x8] sm:$0xff]
        %v2227 = vld [vmem:[%s2224 + $0x10] sm:$0xff]
        %v2228 = vld [vmem:[%s2224 + $0x18] sm:$0xff]
        %s2229 = scalar_lea.vmem %s4, 1
        %v2230 = vld [vmem:[%s2229] sm:$0x1]
        %v2232 = vperm.slane %v2230, 0
        %2234 = vmatpush.msra.mxu0 0.0
        %2235 = vmatpush.msra.mxu0 0.0
        %2236 = vmatpush.msra.mxu0 0.0
        %2237 = vmatpush.msra.mxu0 0.0
        %2238 = vmatpush.msra.mxu0 0.0
        %2239 = vmatpush.msra.mxu0 0.0
        %2240 = vmatpush.msra.mxu0 0.0
        %2241 = vmatpush.msra.mxu0 0.0
        %2242 = vmatpush.msra.mxu0 0.0
        %2243 = vmatpush.msra.mxu0 0.0
        %2244 = vmatpush.msra.mxu0 0.0
        %2245 = vmatpush.msra.mxu0 0.0
        %2246 = vmatpush.msra.mxu0 %v2228
        %2247 = vmatpush.msra.mxu0 %v2227
        %2248 = vmatpush.msra.mxu0 %v2226
        %2249 = vmatpush.msra.mxu0 %v2225
        %2250 = vmatmul.f32.gmra.mxu0 %v737
        %v2251 = vpop.f32.mrf.mxu0
        %v2252 = vadd.f32 %v2232, %v2251
        %2253 = vmatmul.f32.gmra.mxu0 %v740
        %v2254 = vpop.f32.mrf.mxu0
        %v2255 = vadd.f32 %v2232, %v2254
        %2256 = vmatmul.f32.gmra.mxu0 %v743
        %v2257 = vpop.f32.mrf.mxu0
        %v2258 = vadd.f32 %v2232, %v2257
        %2259 = vmatmul.f32.gmra.mxu0 %v746
        %v2260 = vpop.f32.mrf.mxu0
        %v2261 = vadd.f32 %v2232, %v2260
        %2262 = vmatmul.f32.gmra.mxu0 %v749
        %v2263 = vpop.f32.mrf.mxu0
        %v2264 = vadd.f32 %v2232, %v2263
        %2265 = vmatmul.f32.gmra.mxu0 %v752
        %v2266 = vpop.f32.mrf.mxu0
        %v2267 = vadd.f32 %v2232, %v2266
        %2268 = vmatmul.f32.gmra.mxu0 %v755
        %v2269 = vpop.f32.mrf.mxu0
        %v2270 = vadd.f32 %v2232, %v2269
        %2271 = vmatmul.f32.gmra.mxu0 %v758
        %v2272 = vpop.f32.mrf.mxu0
        %v2273 = vadd.f32 %v2232, %v2272
        %2274 = vmatmul.f32.gmra.mxu0 %v761
        %v2275 = vpop.f32.mrf.mxu0
        %v2276 = vadd.f32 %v2232, %v2275
        %2277 = vmatmul.f32.gmra.mxu0 %v764
        %v2278 = vpop.f32.mrf.mxu0
        %v2279 = vadd.f32 %v2232, %v2278
        %2280 = vmatmul.f32.gmra.mxu0 %v767
        %v2281 = vpop.f32.mrf.mxu0
        %v2282 = vadd.f32 %v2232, %v2281
        %2283 = vmatmul.f32.gmra.mxu0 %v770
        %v2284 = vpop.f32.mrf.mxu0
        %v2285 = vadd.f32 %v2232, %v2284
        %2286 = vmatmul.f32.gmra.mxu0 %v773
        %v2287 = vpop.f32.mrf.mxu0
        %v2288 = vadd.f32 %v2232, %v2287
        %2289 = vmatmul.f32.gmra.mxu0 %v776
        %v2290 = vpop.f32.mrf.mxu0
        %v2291 = vadd.f32 %v2232, %v2290
        %2292 = vmatmul.f32.gmra.mxu0 %v779
        %v2293 = vpop.f32.mrf.mxu0
        %v2294 = vadd.f32 %v2232, %v2293
        %2295 = vmatmul.f32.gmra.mxu0 %v782
        %v2296 = vpop.f32.mrf.mxu0
        %v2297 = vadd.f32 %v2232, %v2296
        %2298 = vmatmul.f32.gmra.mxu0 %v785
        %v2299 = vpop.f32.mrf.mxu0
        %v2300 = vadd.f32 %v2232, %v2299
        %2301 = vmatmul.f32.gmra.mxu0 %v788
        %v2302 = vpop.f32.mrf.mxu0
        %v2303 = vadd.f32 %v2232, %v2302
        %2304 = vmatmul.f32.gmra.mxu0 %v791
        %v2305 = vpop.f32.mrf.mxu0
        %v2306 = vadd.f32 %v2232, %v2305
        %2307 = vmatmul.f32.gmra.mxu0 %v794
        %v2308 = vpop.f32.mrf.mxu0
        %v2309 = vadd.f32 %v2232, %v2308
        %2310 = vmatmul.f32.gmra.mxu0 %v797
        %v2311 = vpop.f32.mrf.mxu0
        %v2312 = vadd.f32 %v2232, %v2311
        %2313 = vmatmul.f32.gmra.mxu0 %v800
        %v2314 = vpop.f32.mrf.mxu0
        %v2315 = vadd.f32 %v2232, %v2314
        %2316 = vmatmul.f32.gmra.mxu0 %v803
        %v2317 = vpop.f32.mrf.mxu0
        %v2318 = vadd.f32 %v2232, %v2317
        %2319 = vmatmul.f32.gmra.mxu0 %v806
        %v2320 = vpop.f32.mrf.mxu0
        %v2321 = vadd.f32 %v2232, %v2320
        %2322 = vmatmul.f32.gmra.mxu0 %v809
        %v2323 = vpop.f32.mrf.mxu0
        %v2324 = vadd.f32 %v2232, %v2323
        %2325 = vmatmul.f32.gmra.mxu0 %v812
        %v2326 = vpop.f32.mrf.mxu0
        %v2327 = vadd.f32 %v2232, %v2326
        %2328 = vmatmul.f32.gmra.mxu0 %v815
        %v2329 = vpop.f32.mrf.mxu0
        %v2330 = vadd.f32 %v2232, %v2329
        %2331 = vmatmul.f32.gmra.mxu0 %v818
        %v2332 = vpop.f32.mrf.mxu0
        %v2333 = vadd.f32 %v2232, %v2332
        %2334 = vmatmul.f32.gmra.mxu0 %v821
        %v2335 = vpop.f32.mrf.mxu0
        %v2336 = vadd.f32 %v2232, %v2335
        %2337 = vmatmul.f32.gmra.mxu0 %v824
        %v2338 = vpop.f32.mrf.mxu0
        %v2339 = vadd.f32 %v2232, %v2338
        %2340 = vmatmul.f32.gmra.mxu0 %v827
        %v2341 = vpop.f32.mrf.mxu0
        %v2342 = vadd.f32 %v2232, %v2341
        %2343 = vmatmul.f32.gmra.mxu0 %v830
        %v2344 = vpop.f32.mrf.mxu0
        %v2345 = vadd.f32 %v2232, %v2344
        %2346 = vdwg.mxu0
        %s2347 = scalar_lea.vmem %s417, 256 [#allocation2]
        %2348 = vst.msk [vmem:[%s2347] sm:$0xff] %vm1291, %v2252
        %2349 = vst.msk [vmem:[%s2347 + $0x8] sm:$0xff] %vm1291, %v2255
        %2350 = vst.msk [vmem:[%s2347 + $0x10] sm:$0xff] %vm1291, %v2258
        %2351 = vst.msk [vmem:[%s2347 + $0x18] sm:$0xff] %vm1291, %v2261
        %2352 = vst.msk [vmem:[%s2347 + $0x20] sm:$0xff] %vm1291, %v2264
        %2353 = vst.msk [vmem:[%s2347 + $0x28] sm:$0xff] %vm1291, %v2267
        %2354 = vst.msk [vmem:[%s2347 + $0x30] sm:$0xff] %vm1291, %v2270
        %2355 = vst.msk [vmem:[%s2347 + $0x38] sm:$0xff] %vm1291, %v2273
        %2356 = vst.msk [vmem:[%s2347 + $0x40] sm:$0xff] %vm1291, %v2276
        %2357 = vst.msk [vmem:[%s2347 + $0x48] sm:$0xff] %vm1291, %v2279
        %2358 = vst.msk [vmem:[%s2347 + $0x50] sm:$0xff] %vm1291, %v2282
        %2359 = vst.msk [vmem:[%s2347 + $0x58] sm:$0xff] %vm1291, %v2285
        %2360 = vst.msk [vmem:[%s2347 + $0x60] sm:$0xff] %vm1291, %v2288
        %2361 = vst.msk [vmem:[%s2347 + $0x68] sm:$0xff] %vm1291, %v2291
        %2362 = vst.msk [vmem:[%s2347 + $0x70] sm:$0xff] %vm1291, %v2294
        %2363 = vst.msk [vmem:[%s2347 + $0x78] sm:$0xff] %vm1291, %v2297
        %2364 = vst.msk [vmem:[%s2347 + $0x80] sm:$0xff] %vm1291, %v2300
        %2365 = vst.msk [vmem:[%s2347 + $0x88] sm:$0xff] %vm1291, %v2303
        %2366 = vst.msk [vmem:[%s2347 + $0x90] sm:$0xff] %vm1291, %v2306
        %2367 = vst.msk [vmem:[%s2347 + $0x98] sm:$0xff] %vm1291, %v2309
        %2368 = vst.msk [vmem:[%s2347 + $0xa0] sm:$0xff] %vm1291, %v2312
        %2369 = vst.msk [vmem:[%s2347 + $0xa8] sm:$0xff] %vm1291, %v2315
        %2370 = vst.msk [vmem:[%s2347 + $0xb0] sm:$0xff] %vm1291, %v2318
        %2371 = vst.msk [vmem:[%s2347 + $0xb8] sm:$0xff] %vm1291, %v2321
        %2372 = vst.msk [vmem:[%s2347 + $0xc0] sm:$0xff] %vm1291, %v2324
        %2373 = vst.msk [vmem:[%s2347 + $0xc8] sm:$0xff] %vm1291, %v2327
        %2374 = vst.msk [vmem:[%s2347 + $0xd0] sm:$0xff] %vm1291, %v2330
        %2375 = vst.msk [vmem:[%s2347 + $0xd8] sm:$0xff] %vm1291, %v2333
        %2376 = vst.msk [vmem:[%s2347 + $0xe0] sm:$0xff] %vm1291, %v2336
        %2377 = vst.msk [vmem:[%s2347 + $0xe8] sm:$0xff] %vm1291, %v2339
        %2378 = vst.msk [vmem:[%s2347 + $0xf0] sm:$0xff] %vm1291, %v2342
        %2379 = vst.msk [vmem:[%s2347 + $0xf8] sm:$0xff] %vm1291, %v2345
        %v2380 = vxor.u32 %v2252, 2147483648
        %v2381 = vxor.u32 %v2255, 2147483648
        %v2382 = vxor.u32 %v2258, 2147483648
        %v2383 = vxor.u32 %v2261, 2147483648
        %v2384 = vxor.u32 %v2264, 2147483648
        %v2385 = vxor.u32 %v2267, 2147483648
        %v2386 = vxor.u32 %v2270, 2147483648
        %v2387 = vxor.u32 %v2273, 2147483648
        %v2388 = vxor.u32 %v2276, 2147483648
        %v2389 = vxor.u32 %v2279, 2147483648
        %v2390 = vxor.u32 %v2282, 2147483648
        %v2391 = vxor.u32 %v2285, 2147483648
        %v2392 = vxor.u32 %v2288, 2147483648
        %v2393 = vxor.u32 %v2291, 2147483648
        %v2394 = vxor.u32 %v2294, 2147483648
        %v2395 = vxor.u32 %v2297, 2147483648
        %v2396 = vxor.u32 %v2300, 2147483648
        %v2397 = vxor.u32 %v2303, 2147483648
        %v2398 = vxor.u32 %v2306, 2147483648
        %v2399 = vxor.u32 %v2309, 2147483648
        %v2400 = vxor.u32 %v2312, 2147483648
        %v2401 = vxor.u32 %v2315, 2147483648
        %v2402 = vxor.u32 %v2318, 2147483648
        %v2403 = vxor.u32 %v2321, 2147483648
        %v2404 = vxor.u32 %v2324, 2147483648
        %v2405 = vxor.u32 %v2327, 2147483648
        %v2406 = vxor.u32 %v2330, 2147483648
        %v2407 = vxor.u32 %v2333, 2147483648
        %v2408 = vxor.u32 %v2336, 2147483648
        %v2409 = vxor.u32 %v2339, 2147483648
        %v2410 = vxor.u32 %v2342, 2147483648
        %v2411 = vxor.u32 %v2345, 2147483648
        %v2412 = vmul.f32 %v2380, 1.442695
        %v2413 = vpow.pop %v2412
        %v2414 = vmul.f32 %v2381, 1.442695
        %v2415 = vpow.pop %v2414
        %v2416 = vmul.f32 %v2382, 1.442695
        %v2417 = vpow.pop %v2416
        %v2418 = vmul.f32 %v2383, 1.442695
        %v2419 = vpow.pop %v2418
        %v2420 = vmul.f32 %v2384, 1.442695
        %v2421 = vpow.pop %v2420
        %v2422 = vmul.f32 %v2385, 1.442695
        %v2423 = vpow.pop %v2422
        %v2424 = vmul.f32 %v2386, 1.442695
        %v2425 = vpow.pop %v2424
        %v2426 = vmul.f32 %v2387, 1.442695
        %v2427 = vpow.pop %v2426
        %v2428 = vmul.f32 %v2388, 1.442695
        %v2429 = vpow.pop %v2428
        %v2430 = vmul.f32 %v2389, 1.442695
        %v2431 = vpow.pop %v2430
        %v2432 = vmul.f32 %v2390, 1.442695
        %v2433 = vpow.pop %v2432
        %v2434 = vmul.f32 %v2391, 1.442695
        %v2435 = vpow.pop %v2434
        %v2436 = vmul.f32 %v2392, 1.442695
        %v2437 = vpow.pop %v2436
        %v2438 = vmul.f32 %v2393, 1.442695
        %v2439 = vpow.pop %v2438
        %v2440 = vmul.f32 %v2394, 1.442695
        %v2441 = vpow.pop %v2440
        %v2442 = vmul.f32 %v2395, 1.442695
        %v2443 = vpow.pop %v2442
        %v2444 = vmul.f32 %v2396, 1.442695
        %v2445 = vpow.pop %v2444
        %v2446 = vmul.f32 %v2397, 1.442695
        %v2447 = vpow.pop %v2446
        %v2448 = vmul.f32 %v2398, 1.442695
        %v2449 = vpow.pop %v2448
        %v2450 = vmul.f32 %v2399, 1.442695
        %v2451 = vpow.pop %v2450
        %v2452 = vmul.f32 %v2400, 1.442695
        %v2453 = vpow.pop %v2452
        %v2454 = vmul.f32 %v2401, 1.442695
        %v2455 = vpow.pop %v2454
        %v2456 = vmul.f32 %v2402, 1.442695
        %v2457 = vpow.pop %v2456
        %v2458 = vmul.f32 %v2403, 1.442695
        %v2459 = vpow.pop %v2458
        %v2460 = vmul.f32 %v2404, 1.442695
        %v2461 = vpow.pop %v2460
        %v2462 = vmul.f32 %v2405, 1.442695
        %v2463 = vpow.pop %v2462
        %v2464 = vmul.f32 %v2406, 1.442695
        %v2465 = vpow.pop %v2464
        %v2466 = vmul.f32 %v2407, 1.442695
        %v2467 = vpow.pop %v2466
        %v2468 = vmul.f32 %v2408, 1.442695
        %v2469 = vpow.pop %v2468
        %v2470 = vmul.f32 %v2409, 1.442695
        %v2471 = vpow.pop %v2470
        %v2472 = vmul.f32 %v2410, 1.442695
        %v2473 = vpow.pop %v2472
        %v2474 = vmul.f32 %v2411, 1.442695
        %v2475 = vpow.pop %v2474
        %v2476 = vadd.f32 %v2413, 1.0
        %v2477 = vadd.f32 %v2415, 1.0
        %v2478 = vadd.f32 %v2417, 1.0
        %v2479 = vadd.f32 %v2419, 1.0
        %v2480 = vadd.f32 %v2421, 1.0
        %v2481 = vadd.f32 %v2423, 1.0
        %v2482 = vadd.f32 %v2425, 1.0
        %v2483 = vadd.f32 %v2427, 1.0
        %v2484 = vadd.f32 %v2429, 1.0
        %v2485 = vadd.f32 %v2431, 1.0
        %v2486 = vadd.f32 %v2433, 1.0
        %v2487 = vadd.f32 %v2435, 1.0
        %v2488 = vadd.f32 %v2437, 1.0
        %v2489 = vadd.f32 %v2439, 1.0
        %v2490 = vadd.f32 %v2441, 1.0
        %v2491 = vadd.f32 %v2443, 1.0
        %v2492 = vadd.f32 %v2445, 1.0
        %v2493 = vadd.f32 %v2447, 1.0
        %v2494 = vadd.f32 %v2449, 1.0
        %v2495 = vadd.f32 %v2451, 1.0
        %v2496 = vadd.f32 %v2453, 1.0
        %v2497 = vadd.f32 %v2455, 1.0
        %v2498 = vadd.f32 %v2457, 1.0
        %v2499 = vadd.f32 %v2459, 1.0
        %v2500 = vadd.f32 %v2461, 1.0
        %v2501 = vadd.f32 %v2463, 1.0
        %v2502 = vadd.f32 %v2465, 1.0
        %v2503 = vadd.f32 %v2467, 1.0
        %v2504 = vadd.f32 %v2469, 1.0
        %v2505 = vadd.f32 %v2471, 1.0
        %v2506 = vadd.f32 %v2473, 1.0
        %v2507 = vadd.f32 %v2475, 1.0
        %v2508 = vrcp.pop %v2476
        %v2509 = vmul.f32 %v2476, %v2508
        %v2510 = vsub.f32 1.0, %v2509
        %v2511 = vmul.f32 %v2508, %v2510
        %v2512 = vadd.f32 %v2508, %v2511
        %vm2513 = vweird.f32 %v2476
        %vm2514 = vweird.f32 %v2508
        %vm2515 = vmor %vm2513, %vm2514
        %v2516 = vsel %vm2515, %v2508, %v2512
        %v2517 = vand.u32 2147483647, %v2476
        %vm2518 = vcmp.eq.f32.partialorder %v2517, 8.507059e+37
        %v2519 = vand.u32 %v2476, 2147483648
        %v2520 = vor.u32 1.1754944e-38, %v2519
        %v2521 = vsel %vm2518, %v2520, %v2516
        %v2522 = vmul.f32 1.0, %v2521
        %v2523 = vrcp.pop %v2477
        %v2524 = vmul.f32 %v2477, %v2523
        %v2525 = vsub.f32 1.0, %v2524
        %v2526 = vmul.f32 %v2523, %v2525
        %v2527 = vadd.f32 %v2523, %v2526
        %vm2528 = vweird.f32 %v2477
        %vm2529 = vweird.f32 %v2523
        %vm2530 = vmor %vm2528, %vm2529
        %v2531 = vsel %vm2530, %v2523, %v2527
        %v2532 = vand.u32 2147483647, %v2477
        %vm2533 = vcmp.eq.f32.partialorder %v2532, 8.507059e+37
        %v2534 = vand.u32 %v2477, 2147483648
        %v2535 = vor.u32 1.1754944e-38, %v2534
        %v2536 = vsel %vm2533, %v2535, %v2531
        %v2537 = vmul.f32 1.0, %v2536
        %v2538 = vrcp.pop %v2478
        %v2539 = vmul.f32 %v2478, %v2538
        %v2540 = vsub.f32 1.0, %v2539
        %v2541 = vmul.f32 %v2538, %v2540
        %v2542 = vadd.f32 %v2538, %v2541
        %vm2543 = vweird.f32 %v2478
        %vm2544 = vweird.f32 %v2538
        %vm2545 = vmor %vm2543, %vm2544
        %v2546 = vsel %vm2545, %v2538, %v2542
        %v2547 = vand.u32 2147483647, %v2478
        %vm2548 = vcmp.eq.f32.partialorder %v2547, 8.507059e+37
        %v2549 = vand.u32 %v2478, 2147483648
        %v2550 = vor.u32 1.1754944e-38, %v2549
        %v2551 = vsel %vm2548, %v2550, %v2546
        %v2552 = vmul.f32 1.0, %v2551
        %v2553 = vrcp.pop %v2479
        %v2554 = vmul.f32 %v2479, %v2553
        %v2555 = vsub.f32 1.0, %v2554
        %v2556 = vmul.f32 %v2553, %v2555
        %v2557 = vadd.f32 %v2553, %v2556
        %vm2558 = vweird.f32 %v2479
        %vm2559 = vweird.f32 %v2553
        %vm2560 = vmor %vm2558, %vm2559
        %v2561 = vsel %vm2560, %v2553, %v2557
        %v2562 = vand.u32 2147483647, %v2479
        %vm2563 = vcmp.eq.f32.partialorder %v2562, 8.507059e+37
        %v2564 = vand.u32 %v2479, 2147483648
        %v2565 = vor.u32 1.1754944e-38, %v2564
        %v2566 = vsel %vm2563, %v2565, %v2561
        %v2567 = vmul.f32 1.0, %v2566
        %v2568 = vrcp.pop %v2480
        %v2569 = vmul.f32 %v2480, %v2568
        %v2570 = vsub.f32 1.0, %v2569
        %v2571 = vmul.f32 %v2568, %v2570
        %v2572 = vadd.f32 %v2568, %v2571
        %vm2573 = vweird.f32 %v2480
        %vm2574 = vweird.f32 %v2568
        %vm2575 = vmor %vm2573, %vm2574
        %v2576 = vsel %vm2575, %v2568, %v2572
        %v2577 = vand.u32 2147483647, %v2480
        %vm2578 = vcmp.eq.f32.partialorder %v2577, 8.507059e+37
        %v2579 = vand.u32 %v2480, 2147483648
        %v2580 = vor.u32 1.1754944e-38, %v2579
        %v2581 = vsel %vm2578, %v2580, %v2576
        %v2582 = vmul.f32 1.0, %v2581
        %v2583 = vrcp.pop %v2481
        %v2584 = vmul.f32 %v2481, %v2583
        %v2585 = vsub.f32 1.0, %v2584
        %v2586 = vmul.f32 %v2583, %v2585
        %v2587 = vadd.f32 %v2583, %v2586
        %vm2588 = vweird.f32 %v2481
        %vm2589 = vweird.f32 %v2583
        %vm2590 = vmor %vm2588, %vm2589
        %v2591 = vsel %vm2590, %v2583, %v2587
        %v2592 = vand.u32 2147483647, %v2481
        %vm2593 = vcmp.eq.f32.partialorder %v2592, 8.507059e+37
        %v2594 = vand.u32 %v2481, 2147483648
        %v2595 = vor.u32 1.1754944e-38, %v2594
        %v2596 = vsel %vm2593, %v2595, %v2591
        %v2597 = vmul.f32 1.0, %v2596
        %v2598 = vrcp.pop %v2482
        %v2599 = vmul.f32 %v2482, %v2598
        %v2600 = vsub.f32 1.0, %v2599
        %v2601 = vmul.f32 %v2598, %v2600
        %v2602 = vadd.f32 %v2598, %v2601
        %vm2603 = vweird.f32 %v2482
        %vm2604 = vweird.f32 %v2598
        %vm2605 = vmor %vm2603, %vm2604
        %v2606 = vsel %vm2605, %v2598, %v2602
        %v2607 = vand.u32 2147483647, %v2482
        %vm2608 = vcmp.eq.f32.partialorder %v2607, 8.507059e+37
        %v2609 = vand.u32 %v2482, 2147483648
        %v2610 = vor.u32 1.1754944e-38, %v2609
        %v2611 = vsel %vm2608, %v2610, %v2606
        %v2612 = vmul.f32 1.0, %v2611
        %v2613 = vrcp.pop %v2483
        %v2614 = vmul.f32 %v2483, %v2613
        %v2615 = vsub.f32 1.0, %v2614
        %v2616 = vmul.f32 %v2613, %v2615
        %v2617 = vadd.f32 %v2613, %v2616
        %vm2618 = vweird.f32 %v2483
        %vm2619 = vweird.f32 %v2613
        %vm2620 = vmor %vm2618, %vm2619
        %v2621 = vsel %vm2620, %v2613, %v2617
        %v2622 = vand.u32 2147483647, %v2483
        %vm2623 = vcmp.eq.f32.partialorder %v2622, 8.507059e+37
        %v2624 = vand.u32 %v2483, 2147483648
        %v2625 = vor.u32 1.1754944e-38, %v2624
        %v2626 = vsel %vm2623, %v2625, %v2621
        %v2627 = vmul.f32 1.0, %v2626
        %v2628 = vrcp.pop %v2484
        %v2629 = vmul.f32 %v2484, %v2628
        %v2630 = vsub.f32 1.0, %v2629
        %v2631 = vmul.f32 %v2628, %v2630
        %v2632 = vadd.f32 %v2628, %v2631
        %vm2633 = vweird.f32 %v2484
        %vm2634 = vweird.f32 %v2628
        %vm2635 = vmor %vm2633, %vm2634
        %v2636 = vsel %vm2635, %v2628, %v2632
        %v2637 = vand.u32 2147483647, %v2484
        %vm2638 = vcmp.eq.f32.partialorder %v2637, 8.507059e+37
        %v2639 = vand.u32 %v2484, 2147483648
        %v2640 = vor.u32 1.1754944e-38, %v2639
        %v2641 = vsel %vm2638, %v2640, %v2636
        %v2642 = vmul.f32 1.0, %v2641
        %v2643 = vrcp.pop %v2485
        %v2644 = vmul.f32 %v2485, %v2643
        %v2645 = vsub.f32 1.0, %v2644
        %v2646 = vmul.f32 %v2643, %v2645
        %v2647 = vadd.f32 %v2643, %v2646
        %vm2648 = vweird.f32 %v2485
        %vm2649 = vweird.f32 %v2643
        %vm2650 = vmor %vm2648, %vm2649
        %v2651 = vsel %vm2650, %v2643, %v2647
        %v2652 = vand.u32 2147483647, %v2485
        %vm2653 = vcmp.eq.f32.partialorder %v2652, 8.507059e+37
        %v2654 = vand.u32 %v2485, 2147483648
        %v2655 = vor.u32 1.1754944e-38, %v2654
        %v2656 = vsel %vm2653, %v2655, %v2651
        %v2657 = vmul.f32 1.0, %v2656
        %v2658 = vrcp.pop %v2486
        %v2659 = vmul.f32 %v2486, %v2658
        %v2660 = vsub.f32 1.0, %v2659
        %v2661 = vmul.f32 %v2658, %v2660
        %v2662 = vadd.f32 %v2658, %v2661
        %vm2663 = vweird.f32 %v2486
        %vm2664 = vweird.f32 %v2658
        %vm2665 = vmor %vm2663, %vm2664
        %v2666 = vsel %vm2665, %v2658, %v2662
        %v2667 = vand.u32 2147483647, %v2486
        %vm2668 = vcmp.eq.f32.partialorder %v2667, 8.507059e+37
        %v2669 = vand.u32 %v2486, 2147483648
        %v2670 = vor.u32 1.1754944e-38, %v2669
        %v2671 = vsel %vm2668, %v2670, %v2666
        %v2672 = vmul.f32 1.0, %v2671
        %v2673 = vrcp.pop %v2487
        %v2674 = vmul.f32 %v2487, %v2673
        %v2675 = vsub.f32 1.0, %v2674
        %v2676 = vmul.f32 %v2673, %v2675
        %v2677 = vadd.f32 %v2673, %v2676
        %vm2678 = vweird.f32 %v2487
        %vm2679 = vweird.f32 %v2673
        %vm2680 = vmor %vm2678, %vm2679
        %v2681 = vsel %vm2680, %v2673, %v2677
        %v2682 = vand.u32 2147483647, %v2487
        %vm2683 = vcmp.eq.f32.partialorder %v2682, 8.507059e+37
        %v2684 = vand.u32 %v2487, 2147483648
        %v2685 = vor.u32 1.1754944e-38, %v2684
        %v2686 = vsel %vm2683, %v2685, %v2681
        %v2687 = vmul.f32 1.0, %v2686
        %v2688 = vrcp.pop %v2488
        %v2689 = vmul.f32 %v2488, %v2688
        %v2690 = vsub.f32 1.0, %v2689
        %v2691 = vmul.f32 %v2688, %v2690
        %v2692 = vadd.f32 %v2688, %v2691
        %vm2693 = vweird.f32 %v2488
        %vm2694 = vweird.f32 %v2688
        %vm2695 = vmor %vm2693, %vm2694
        %v2696 = vsel %vm2695, %v2688, %v2692
        %v2697 = vand.u32 2147483647, %v2488
        %vm2698 = vcmp.eq.f32.partialorder %v2697, 8.507059e+37
        %v2699 = vand.u32 %v2488, 2147483648
        %v2700 = vor.u32 1.1754944e-38, %v2699
        %v2701 = vsel %vm2698, %v2700, %v2696
        %v2702 = vmul.f32 1.0, %v2701
        %v2703 = vrcp.pop %v2489
        %v2704 = vmul.f32 %v2489, %v2703
        %v2705 = vsub.f32 1.0, %v2704
        %v2706 = vmul.f32 %v2703, %v2705
        %v2707 = vadd.f32 %v2703, %v2706
        %vm2708 = vweird.f32 %v2489
        %vm2709 = vweird.f32 %v2703
        %vm2710 = vmor %vm2708, %vm2709
        %v2711 = vsel %vm2710, %v2703, %v2707
        %v2712 = vand.u32 2147483647, %v2489
        %vm2713 = vcmp.eq.f32.partialorder %v2712, 8.507059e+37
        %v2714 = vand.u32 %v2489, 2147483648
        %v2715 = vor.u32 1.1754944e-38, %v2714
        %v2716 = vsel %vm2713, %v2715, %v2711
        %v2717 = vmul.f32 1.0, %v2716
        %v2718 = vrcp.pop %v2490
        %v2719 = vmul.f32 %v2490, %v2718
        %v2720 = vsub.f32 1.0, %v2719
        %v2721 = vmul.f32 %v2718, %v2720
        %v2722 = vadd.f32 %v2718, %v2721
        %vm2723 = vweird.f32 %v2490
        %vm2724 = vweird.f32 %v2718
        %vm2725 = vmor %vm2723, %vm2724
        %v2726 = vsel %vm2725, %v2718, %v2722
        %v2727 = vand.u32 2147483647, %v2490
        %vm2728 = vcmp.eq.f32.partialorder %v2727, 8.507059e+37
        %v2729 = vand.u32 %v2490, 2147483648
        %v2730 = vor.u32 1.1754944e-38, %v2729
        %v2731 = vsel %vm2728, %v2730, %v2726
        %v2732 = vmul.f32 1.0, %v2731
        %v2733 = vrcp.pop %v2491
        %v2734 = vmul.f32 %v2491, %v2733
        %v2735 = vsub.f32 1.0, %v2734
        %v2736 = vmul.f32 %v2733, %v2735
        %v2737 = vadd.f32 %v2733, %v2736
        %vm2738 = vweird.f32 %v2491
        %vm2739 = vweird.f32 %v2733
        %vm2740 = vmor %vm2738, %vm2739
        %v2741 = vsel %vm2740, %v2733, %v2737
        %v2742 = vand.u32 2147483647, %v2491
        %vm2743 = vcmp.eq.f32.partialorder %v2742, 8.507059e+37
        %v2744 = vand.u32 %v2491, 2147483648
        %v2745 = vor.u32 1.1754944e-38, %v2744
        %v2746 = vsel %vm2743, %v2745, %v2741
        %v2747 = vmul.f32 1.0, %v2746
        %v2748 = vrcp.pop %v2492
        %v2749 = vmul.f32 %v2492, %v2748
        %v2750 = vsub.f32 1.0, %v2749
        %v2751 = vmul.f32 %v2748, %v2750
        %v2752 = vadd.f32 %v2748, %v2751
        %vm2753 = vweird.f32 %v2492
        %vm2754 = vweird.f32 %v2748
        %vm2755 = vmor %vm2753, %vm2754
        %v2756 = vsel %vm2755, %v2748, %v2752
        %v2757 = vand.u32 2147483647, %v2492
        %vm2758 = vcmp.eq.f32.partialorder %v2757, 8.507059e+37
        %v2759 = vand.u32 %v2492, 2147483648
        %v2760 = vor.u32 1.1754944e-38, %v2759
        %v2761 = vsel %vm2758, %v2760, %v2756
        %v2762 = vmul.f32 1.0, %v2761
        %v2763 = vrcp.pop %v2493
        %v2764 = vmul.f32 %v2493, %v2763
        %v2765 = vsub.f32 1.0, %v2764
        %v2766 = vmul.f32 %v2763, %v2765
        %v2767 = vadd.f32 %v2763, %v2766
        %vm2768 = vweird.f32 %v2493
        %vm2769 = vweird.f32 %v2763
        %vm2770 = vmor %vm2768, %vm2769
        %v2771 = vsel %vm2770, %v2763, %v2767
        %v2772 = vand.u32 2147483647, %v2493
        %vm2773 = vcmp.eq.f32.partialorder %v2772, 8.507059e+37
        %v2774 = vand.u32 %v2493, 2147483648
        %v2775 = vor.u32 1.1754944e-38, %v2774
        %v2776 = vsel %vm2773, %v2775, %v2771
        %v2777 = vmul.f32 1.0, %v2776
        %v2778 = vrcp.pop %v2494
        %v2779 = vmul.f32 %v2494, %v2778
        %v2780 = vsub.f32 1.0, %v2779
        %v2781 = vmul.f32 %v2778, %v2780
        %v2782 = vadd.f32 %v2778, %v2781
        %vm2783 = vweird.f32 %v2494
        %vm2784 = vweird.f32 %v2778
        %vm2785 = vmor %vm2783, %vm2784
        %v2786 = vsel %vm2785, %v2778, %v2782
        %v2787 = vand.u32 2147483647, %v2494
        %vm2788 = vcmp.eq.f32.partialorder %v2787, 8.507059e+37
        %v2789 = vand.u32 %v2494, 2147483648
        %v2790 = vor.u32 1.1754944e-38, %v2789
        %v2791 = vsel %vm2788, %v2790, %v2786
        %v2792 = vmul.f32 1.0, %v2791
        %v2793 = vrcp.pop %v2495
        %v2794 = vmul.f32 %v2495, %v2793
        %v2795 = vsub.f32 1.0, %v2794
        %v2796 = vmul.f32 %v2793, %v2795
        %v2797 = vadd.f32 %v2793, %v2796
        %vm2798 = vweird.f32 %v2495
        %vm2799 = vweird.f32 %v2793
        %vm2800 = vmor %vm2798, %vm2799
        %v2801 = vsel %vm2800, %v2793, %v2797
        %v2802 = vand.u32 2147483647, %v2495
        %vm2803 = vcmp.eq.f32.partialorder %v2802, 8.507059e+37
        %v2804 = vand.u32 %v2495, 2147483648
        %v2805 = vor.u32 1.1754944e-38, %v2804
        %v2806 = vsel %vm2803, %v2805, %v2801
        %v2807 = vmul.f32 1.0, %v2806
        %v2808 = vrcp.pop %v2496
        %v2809 = vmul.f32 %v2496, %v2808
        %v2810 = vsub.f32 1.0, %v2809
        %v2811 = vmul.f32 %v2808, %v2810
        %v2812 = vadd.f32 %v2808, %v2811
        %vm2813 = vweird.f32 %v2496
        %vm2814 = vweird.f32 %v2808
        %vm2815 = vmor %vm2813, %vm2814
        %v2816 = vsel %vm2815, %v2808, %v2812
        %v2817 = vand.u32 2147483647, %v2496
        %vm2818 = vcmp.eq.f32.partialorder %v2817, 8.507059e+37
        %v2819 = vand.u32 %v2496, 2147483648
        %v2820 = vor.u32 1.1754944e-38, %v2819
        %v2821 = vsel %vm2818, %v2820, %v2816
        %v2822 = vmul.f32 1.0, %v2821
        %v2823 = vrcp.pop %v2497
        %v2824 = vmul.f32 %v2497, %v2823
        %v2825 = vsub.f32 1.0, %v2824
        %v2826 = vmul.f32 %v2823, %v2825
        %v2827 = vadd.f32 %v2823, %v2826
        %vm2828 = vweird.f32 %v2497
        %vm2829 = vweird.f32 %v2823
        %vm2830 = vmor %vm2828, %vm2829
        %v2831 = vsel %vm2830, %v2823, %v2827
        %v2832 = vand.u32 2147483647, %v2497
        %vm2833 = vcmp.eq.f32.partialorder %v2832, 8.507059e+37
        %v2834 = vand.u32 %v2497, 2147483648
        %v2835 = vor.u32 1.1754944e-38, %v2834
        %v2836 = vsel %vm2833, %v2835, %v2831
        %v2837 = vmul.f32 1.0, %v2836
        %v2838 = vrcp.pop %v2498
        %v2839 = vmul.f32 %v2498, %v2838
        %v2840 = vsub.f32 1.0, %v2839
        %v2841 = vmul.f32 %v2838, %v2840
        %v2842 = vadd.f32 %v2838, %v2841
        %vm2843 = vweird.f32 %v2498
        %vm2844 = vweird.f32 %v2838
        %vm2845 = vmor %vm2843, %vm2844
        %v2846 = vsel %vm2845, %v2838, %v2842
        %v2847 = vand.u32 2147483647, %v2498
        %vm2848 = vcmp.eq.f32.partialorder %v2847, 8.507059e+37
        %v2849 = vand.u32 %v2498, 2147483648
        %v2850 = vor.u32 1.1754944e-38, %v2849
        %v2851 = vsel %vm2848, %v2850, %v2846
        %v2852 = vmul.f32 1.0, %v2851
        %v2853 = vrcp.pop %v2499
        %v2854 = vmul.f32 %v2499, %v2853
        %v2855 = vsub.f32 1.0, %v2854
        %v2856 = vmul.f32 %v2853, %v2855
        %v2857 = vadd.f32 %v2853, %v2856
        %vm2858 = vweird.f32 %v2499
        %vm2859 = vweird.f32 %v2853
        %vm2860 = vmor %vm2858, %vm2859
        %v2861 = vsel %vm2860, %v2853, %v2857
        %v2862 = vand.u32 2147483647, %v2499
        %vm2863 = vcmp.eq.f32.partialorder %v2862, 8.507059e+37
        %v2864 = vand.u32 %v2499, 2147483648
        %v2865 = vor.u32 1.1754944e-38, %v2864
        %v2866 = vsel %vm2863, %v2865, %v2861
        %v2867 = vmul.f32 1.0, %v2866
        %v2868 = vrcp.pop %v2500
        %v2869 = vmul.f32 %v2500, %v2868
        %v2870 = vsub.f32 1.0, %v2869
        %v2871 = vmul.f32 %v2868, %v2870
        %v2872 = vadd.f32 %v2868, %v2871
        %vm2873 = vweird.f32 %v2500
        %vm2874 = vweird.f32 %v2868
        %vm2875 = vmor %vm2873, %vm2874
        %v2876 = vsel %vm2875, %v2868, %v2872
        %v2877 = vand.u32 2147483647, %v2500
        %vm2878 = vcmp.eq.f32.partialorder %v2877, 8.507059e+37
        %v2879 = vand.u32 %v2500, 2147483648
        %v2880 = vor.u32 1.1754944e-38, %v2879
        %v2881 = vsel %vm2878, %v2880, %v2876
        %v2882 = vmul.f32 1.0, %v2881
        %v2883 = vrcp.pop %v2501
        %v2884 = vmul.f32 %v2501, %v2883
        %v2885 = vsub.f32 1.0, %v2884
        %v2886 = vmul.f32 %v2883, %v2885
        %v2887 = vadd.f32 %v2883, %v2886
        %vm2888 = vweird.f32 %v2501
        %vm2889 = vweird.f32 %v2883
        %vm2890 = vmor %vm2888, %vm2889
        %v2891 = vsel %vm2890, %v2883, %v2887
        %v2892 = vand.u32 2147483647, %v2501
        %vm2893 = vcmp.eq.f32.partialorder %v2892, 8.507059e+37
        %v2894 = vand.u32 %v2501, 2147483648
        %v2895 = vor.u32 1.1754944e-38, %v2894
        %v2896 = vsel %vm2893, %v2895, %v2891
        %v2897 = vmul.f32 1.0, %v2896
        %v2898 = vrcp.pop %v2502
        %v2899 = vmul.f32 %v2502, %v2898
        %v2900 = vsub.f32 1.0, %v2899
        %v2901 = vmul.f32 %v2898, %v2900
        %v2902 = vadd.f32 %v2898, %v2901
        %vm2903 = vweird.f32 %v2502
        %vm2904 = vweird.f32 %v2898
        %vm2905 = vmor %vm2903, %vm2904
        %v2906 = vsel %vm2905, %v2898, %v2902
        %v2907 = vand.u32 2147483647, %v2502
        %vm2908 = vcmp.eq.f32.partialorder %v2907, 8.507059e+37
        %v2909 = vand.u32 %v2502, 2147483648
        %v2910 = vor.u32 1.1754944e-38, %v2909
        %v2911 = vsel %vm2908, %v2910, %v2906
        %v2912 = vmul.f32 1.0, %v2911
        %v2913 = vrcp.pop %v2503
        %v2914 = vmul.f32 %v2503, %v2913
        %v2915 = vsub.f32 1.0, %v2914
        %v2916 = vmul.f32 %v2913, %v2915
        %v2917 = vadd.f32 %v2913, %v2916
        %vm2918 = vweird.f32 %v2503
        %vm2919 = vweird.f32 %v2913
        %vm2920 = vmor %vm2918, %vm2919
        %v2921 = vsel %vm2920, %v2913, %v2917
        %v2922 = vand.u32 2147483647, %v2503
        %vm2923 = vcmp.eq.f32.partialorder %v2922, 8.507059e+37
        %v2924 = vand.u32 %v2503, 2147483648
        %v2925 = vor.u32 1.1754944e-38, %v2924
        %v2926 = vsel %vm2923, %v2925, %v2921
        %v2927 = vmul.f32 1.0, %v2926
        %v2928 = vrcp.pop %v2504
        %v2929 = vmul.f32 %v2504, %v2928
        %v2930 = vsub.f32 1.0, %v2929
        %v2931 = vmul.f32 %v2928, %v2930
        %v2932 = vadd.f32 %v2928, %v2931
        %vm2933 = vweird.f32 %v2504
        %vm2934 = vweird.f32 %v2928
        %vm2935 = vmor %vm2933, %vm2934
        %v2936 = vsel %vm2935, %v2928, %v2932
        %v2937 = vand.u32 2147483647, %v2504
        %vm2938 = vcmp.eq.f32.partialorder %v2937, 8.507059e+37
        %v2939 = vand.u32 %v2504, 2147483648
        %v2940 = vor.u32 1.1754944e-38, %v2939
        %v2941 = vsel %vm2938, %v2940, %v2936
        %v2942 = vmul.f32 1.0, %v2941
        %v2943 = vrcp.pop %v2505
        %v2944 = vmul.f32 %v2505, %v2943
        %v2945 = vsub.f32 1.0, %v2944
        %v2946 = vmul.f32 %v2943, %v2945
        %v2947 = vadd.f32 %v2943, %v2946
        %vm2948 = vweird.f32 %v2505
        %vm2949 = vweird.f32 %v2943
        %vm2950 = vmor %vm2948, %vm2949
        %v2951 = vsel %vm2950, %v2943, %v2947
        %v2952 = vand.u32 2147483647, %v2505
        %vm2953 = vcmp.eq.f32.partialorder %v2952, 8.507059e+37
        %v2954 = vand.u32 %v2505, 2147483648
        %v2955 = vor.u32 1.1754944e-38, %v2954
        %v2956 = vsel %vm2953, %v2955, %v2951
        %v2957 = vmul.f32 1.0, %v2956
        %v2958 = vrcp.pop %v2506
        %v2959 = vmul.f32 %v2506, %v2958
        %v2960 = vsub.f32 1.0, %v2959
        %v2961 = vmul.f32 %v2958, %v2960
        %v2962 = vadd.f32 %v2958, %v2961
        %vm2963 = vweird.f32 %v2506
        %vm2964 = vweird.f32 %v2958
        %vm2965 = vmor %vm2963, %vm2964
        %v2966 = vsel %vm2965, %v2958, %v2962
        %v2967 = vand.u32 2147483647, %v2506
        %vm2968 = vcmp.eq.f32.partialorder %v2967, 8.507059e+37
        %v2969 = vand.u32 %v2506, 2147483648
        %v2970 = vor.u32 1.1754944e-38, %v2969
        %v2971 = vsel %vm2968, %v2970, %v2966
        %v2972 = vmul.f32 1.0, %v2971
        %v2973 = vrcp.pop %v2507
        %v2974 = vmul.f32 %v2507, %v2973
        %v2975 = vsub.f32 1.0, %v2974
        %v2976 = vmul.f32 %v2973, %v2975
        %v2977 = vadd.f32 %v2973, %v2976
        %vm2978 = vweird.f32 %v2507
        %vm2979 = vweird.f32 %v2973
        %vm2980 = vmor %vm2978, %vm2979
        %v2981 = vsel %vm2980, %v2973, %v2977
        %v2982 = vand.u32 2147483647, %v2507
        %vm2983 = vcmp.eq.f32.partialorder %v2982, 8.507059e+37
        %v2984 = vand.u32 %v2507, 2147483648
        %v2985 = vor.u32 1.1754944e-38, %v2984
        %v2986 = vsel %vm2983, %v2985, %v2981
        %v2987 = vmul.f32 1.0, %v2986
        %v2988 = vsel %vm1932, 16.0, 30.0
        %v2989 = vmul.f32 %v2522, 2.0
        %v2990 = vmul.f32 %v2537, 2.0
        %v2991 = vmul.f32 %v2552, 2.0
        %v2992 = vmul.f32 %v2567, 2.0
        %v2993 = vmul.f32 %v2582, 2.0
        %v2994 = vmul.f32 %v2597, 2.0
        %v2995 = vmul.f32 %v2612, 2.0
        %v2996 = vmul.f32 %v2627, 2.0
        %v2997 = vmul.f32 %v2642, 2.0
        %v2998 = vmul.f32 %v2657, 2.0
        %v2999 = vmul.f32 %v2672, 2.0
        %v3000 = vmul.f32 %v2687, 2.0
        %v3001 = vmul.f32 %v2702, 2.0
        %v3002 = vmul.f32 %v2717, 2.0
        %v3003 = vmul.f32 %v2732, 2.0
        %v3004 = vmul.f32 %v2747, 2.0
        %v3005 = vmul.f32 %v2762, 2.0
        %v3006 = vmul.f32 %v2777, 2.0
        %v3007 = vmul.f32 %v2792, 2.0
        %v3008 = vmul.f32 %v2807, 2.0
        %v3009 = vmul.f32 %v2822, 2.0
        %v3010 = vmul.f32 %v2837, 2.0
        %v3011 = vmul.f32 %v2852, 2.0
        %v3012 = vmul.f32 %v2867, 2.0
        %v3013 = vmul.f32 %v2882, 2.0
        %v3014 = vmul.f32 %v2897, 2.0
        %v3015 = vmul.f32 %v2912, 2.0
        %v3016 = vmul.f32 %v2927, 2.0
        %v3017 = vmul.f32 %v2942, 2.0
        %v3018 = vmul.f32 %v2957, 2.0
        %v3019 = vmul.f32 %v2972, 2.0
        %v3020 = vmul.f32 %v2987, 2.0
        %v3021 = vsub.f32 %v2989, 0.5
        %v3022 = vsub.f32 %v2990, 0.5
        %v3023 = vsub.f32 %v2991, 0.5
        %v3024 = vsub.f32 %v2992, 0.5
        %v3025 = vsub.f32 %v2993, 0.5
        %v3026 = vsub.f32 %v2994, 0.5
        %v3027 = vsub.f32 %v2995, 0.5
        %v3028 = vsub.f32 %v2996, 0.5
        %v3029 = vsub.f32 %v2997, 0.5
        %v3030 = vsub.f32 %v2998, 0.5
        %v3031 = vsub.f32 %v2999, 0.5
        %v3032 = vsub.f32 %v3000, 0.5
        %v3033 = vsub.f32 %v3001, 0.5
        %v3034 = vsub.f32 %v3002, 0.5
        %v3035 = vsub.f32 %v3003, 0.5
        %v3036 = vsub.f32 %v3004, 0.5
        %v3037 = vsub.f32 %v3005, 0.5
        %v3038 = vsub.f32 %v3006, 0.5
        %v3039 = vsub.f32 %v3007, 0.5
        %v3040 = vsub.f32 %v3008, 0.5
        %v3041 = vsub.f32 %v3009, 0.5
        %v3042 = vsub.f32 %v3010, 0.5
        %v3043 = vsub.f32 %v3011, 0.5
        %v3044 = vsub.f32 %v3012, 0.5
        %v3045 = vsub.f32 %v3013, 0.5
        %v3046 = vsub.f32 %v3014, 0.5
        %v3047 = vsub.f32 %v3015, 0.5
        %v3048 = vsub.f32 %v3016, 0.5
        %v3049 = vsub.f32 %v3017, 0.5
        %v3050 = vsub.f32 %v3018, 0.5
        %v3051 = vsub.f32 %v3019, 0.5
        %v3052 = vsub.f32 %v3020, 0.5
        %v3053 = vadd.f32 %v3021, %v1138
        %v3054 = vadd.f32 %v3022, %v1139
        %v3055 = vadd.f32 %v3023, %v1140
        %v3056 = vadd.f32 %v3024, %v1141
        %v3057 = vadd.f32 %v3025, %v1142
        %v3058 = vadd.f32 %v3026, %v1143
        %v3059 = vadd.f32 %v3027, %v1144
        %v3060 = vadd.f32 %v3028, %v1145
        %v3061 = vadd.f32 %v3029, %v1146
        %v3062 = vadd.f32 %v3030, %v1147
        %v3063 = vadd.f32 %v3031, %v1148
        %v3064 = vadd.f32 %v3032, %v1149
        %v3065 = vadd.f32 %v3033, %v1150
        %v3066 = vadd.f32 %v3034, %v1151
        %v3067 = vadd.f32 %v3035, %v1152
        %v3068 = vadd.f32 %v3036, %v1153
        %v3069 = vadd.f32 %v3037, %v1154
        %v3070 = vadd.f32 %v3038, %v1155
        %v3071 = vadd.f32 %v3039, %v1156
        %v3072 = vadd.f32 %v3040, %v1157
        %v3073 = vadd.f32 %v3041, %v1158
        %v3074 = vadd.f32 %v3042, %v1159
        %v3075 = vadd.f32 %v3043, %v1160
        %v3076 = vadd.f32 %v3044, %v1161
        %v3077 = vadd.f32 %v3045, %v1162
        %v3078 = vadd.f32 %v3046, %v1163
        %v3079 = vadd.f32 %v3047, %v1164
        %v3080 = vadd.f32 %v3048, %v1165
        %v3081 = vadd.f32 %v3049, %v1166
        %v3082 = vadd.f32 %v3050, %v1167
        %v3083 = vadd.f32 %v3051, %v1168
        %v3084 = vadd.f32 %v3052, %v1169
        %v3085 = vmul.f32 %v3053, 8.0
        %v3086 = vmul.f32 %v3054, 8.0
        %v3087 = vmul.f32 %v3055, 8.0
        %v3088 = vmul.f32 %v3056, 8.0
        %v3089 = vmul.f32 %v3057, 8.0
        %v3090 = vmul.f32 %v3058, 8.0
        %v3091 = vmul.f32 %v3059, 8.0
        %v3092 = vmul.f32 %v3060, 8.0
        %v3093 = vmul.f32 %v3061, 8.0
        %v3094 = vmul.f32 %v3062, 8.0
        %v3095 = vmul.f32 %v3063, 8.0
        %v3096 = vmul.f32 %v3064, 8.0
        %v3097 = vmul.f32 %v3065, 8.0
        %v3098 = vmul.f32 %v3066, 8.0
        %v3099 = vmul.f32 %v3067, 8.0
        %v3100 = vmul.f32 %v3068, 8.0
        %v3101 = vmul.f32 %v3069, 8.0
        %v3102 = vmul.f32 %v3070, 8.0
        %v3103 = vmul.f32 %v3071, 8.0
        %v3104 = vmul.f32 %v3072, 8.0
        %v3105 = vmul.f32 %v3073, 8.0
        %v3106 = vmul.f32 %v3074, 8.0
        %v3107 = vmul.f32 %v3075, 8.0
        %v3108 = vmul.f32 %v3076, 8.0
        %v3109 = vmul.f32 %v3077, 8.0
        %v3110 = vmul.f32 %v3078, 8.0
        %v3111 = vmul.f32 %v3079, 8.0
        %v3112 = vmul.f32 %v3080, 8.0
        %v3113 = vmul.f32 %v3081, 8.0
        %v3114 = vmul.f32 %v3082, 8.0
        %v3115 = vmul.f32 %v3083, 8.0
        %v3116 = vmul.f32 %v3084, 8.0
        %v3117 = vmul.f32 %v2989, %v2989
        %v3118 = vmul.f32 %v2990, %v2990
        %v3119 = vmul.f32 %v2991, %v2991
        %v3120 = vmul.f32 %v2992, %v2992
        %v3121 = vmul.f32 %v2993, %v2993
        %v3122 = vmul.f32 %v2994, %v2994
        %v3123 = vmul.f32 %v2995, %v2995
        %v3124 = vmul.f32 %v2996, %v2996
        %v3125 = vmul.f32 %v2997, %v2997
        %v3126 = vmul.f32 %v2998, %v2998
        %v3127 = vmul.f32 %v2999, %v2999
        %v3128 = vmul.f32 %v3000, %v3000
        %v3129 = vmul.f32 %v3001, %v3001
        %v3130 = vmul.f32 %v3002, %v3002
        %v3131 = vmul.f32 %v3003, %v3003
        %v3132 = vmul.f32 %v3004, %v3004
        %v3133 = vmul.f32 %v3005, %v3005
        %v3134 = vmul.f32 %v3006, %v3006
        %v3135 = vmul.f32 %v3007, %v3007
        %v3136 = vmul.f32 %v3008, %v3008
        %v3137 = vmul.f32 %v3009, %v3009
        %v3138 = vmul.f32 %v3010, %v3010
        %v3139 = vmul.f32 %v3011, %v3011
        %v3140 = vmul.f32 %v3012, %v3012
        %v3141 = vmul.f32 %v3013, %v3013
        %v3142 = vmul.f32 %v3014, %v3014
        %v3143 = vmul.f32 %v3015, %v3015
        %v3144 = vmul.f32 %v3016, %v3016
        %v3145 = vmul.f32 %v3017, %v3017
        %v3146 = vmul.f32 %v3018, %v3018
        %v3147 = vmul.f32 %v3019, %v3019
        %v3148 = vmul.f32 %v3020, %v3020
        %v3149 = vmul.f32 %v3117, %v2988
        %v3150 = vmul.f32 %v3118, %v2988
        %v3151 = vmul.f32 %v3119, %v2988
        %v3152 = vmul.f32 %v3120, %v2988
        %v3153 = vmul.f32 %v3121, %v2988
        %v3154 = vmul.f32 %v3122, %v2988
        %v3155 = vmul.f32 %v3123, %v2988
        %v3156 = vmul.f32 %v3124, %v2988
        %v3157 = vmul.f32 %v3125, %v2988
        %v3158 = vmul.f32 %v3126, %v2988
        %v3159 = vmul.f32 %v3127, %v2988
        %v3160 = vmul.f32 %v3128, %v2988
        %v3161 = vmul.f32 %v3129, %v2988
        %v3162 = vmul.f32 %v3130, %v2988
        %v3163 = vmul.f32 %v3131, %v2988
        %v3164 = vmul.f32 %v3132, %v2988
        %v3165 = vmul.f32 %v3133, %v2988
        %v3166 = vmul.f32 %v3134, %v2988
        %v3167 = vmul.f32 %v3135, %v2988
        %v3168 = vmul.f32 %v3136, %v2988
        %v3169 = vmul.f32 %v3137, %v2988
        %v3170 = vmul.f32 %v3138, %v2988
        %v3171 = vmul.f32 %v3139, %v2988
        %v3172 = vmul.f32 %v3140, %v2988
        %v3173 = vmul.f32 %v3141, %v2988
        %v3174 = vmul.f32 %v3142, %v2988
        %v3175 = vmul.f32 %v3143, %v2988
        %v3176 = vmul.f32 %v3144, %v2988
        %v3177 = vmul.f32 %v3145, %v2988
        %v3178 = vmul.f32 %v3146, %v2988
        %v3179 = vmul.f32 %v3147, %v2988
        %v3180 = vmul.f32 %v3148, %v2988
        %v3181 = vsel %vm2127, %v3149, %v2522
        %v3182 = vsel %vm2127, %v3150, %v2537
        %v3183 = vsel %vm2127, %v3151, %v2552
        %v3184 = vsel %vm2127, %v3152, %v2567
        %v3185 = vsel %vm2127, %v3153, %v2582
        %v3186 = vsel %vm2127, %v3154, %v2597
        %v3187 = vsel %vm2127, %v3155, %v2612
        %v3188 = vsel %vm2127, %v3156, %v2627
        %v3189 = vsel %vm2127, %v3157, %v2642
        %v3190 = vsel %vm2127, %v3158, %v2657
        %v3191 = vsel %vm2127, %v3159, %v2672
        %v3192 = vsel %vm2127, %v3160, %v2687
        %v3193 = vsel %vm2127, %v3161, %v2702
        %v3194 = vsel %vm2127, %v3162, %v2717
        %v3195 = vsel %vm2127, %v3163, %v2732
        %v3196 = vsel %vm2127, %v3164, %v2747
        %v3197 = vsel %vm2127, %v3165, %v2762
        %v3198 = vsel %vm2127, %v3166, %v2777
        %v3199 = vsel %vm2127, %v3167, %v2792
        %v3200 = vsel %vm2127, %v3168, %v2807
        %v3201 = vsel %vm2127, %v3169, %v2822
        %v3202 = vsel %vm2127, %v3170, %v2837
        %v3203 = vsel %vm2127, %v3171, %v2852
        %v3204 = vsel %vm2127, %v3172, %v2867
        %v3205 = vsel %vm2127, %v3173, %v2882
        %v3206 = vsel %vm2127, %v3174, %v2897
        %v3207 = vsel %vm2127, %v3175, %v2912
        %v3208 = vsel %vm2127, %v3176, %v2927
        %v3209 = vsel %vm2127, %v3177, %v2942
        %v3210 = vsel %vm2127, %v3178, %v2957
        %v3211 = vsel %vm2127, %v3179, %v2972
        %v3212 = vsel %vm2127, %v3180, %v2987
        %v3213 = vsel %vm2126, %v3085, %v3181
        %v3214 = vsel %vm2126, %v3086, %v3182
        %v3215 = vsel %vm2126, %v3087, %v3183
        %v3216 = vsel %vm2126, %v3088, %v3184
        %v3217 = vsel %vm2126, %v3089, %v3185
        %v3218 = vsel %vm2126, %v3090, %v3186
        %v3219 = vsel %vm2126, %v3091, %v3187
        %v3220 = vsel %vm2126, %v3092, %v3188
        %v3221 = vsel %vm2126, %v3093, %v3189
        %v3222 = vsel %vm2126, %v3094, %v3190
        %v3223 = vsel %vm2126, %v3095, %v3191
        %v3224 = vsel %vm2126, %v3096, %v3192
        %v3225 = vsel %vm2126, %v3097, %v3193
        %v3226 = vsel %vm2126, %v3098, %v3194
        %v3227 = vsel %vm2126, %v3099, %v3195
        %v3228 = vsel %vm2126, %v3100, %v3196
        %v3229 = vsel %vm2126, %v3101, %v3197
        %v3230 = vsel %vm2126, %v3102, %v3198
        %v3231 = vsel %vm2126, %v3103, %v3199
        %v3232 = vsel %vm2126, %v3104, %v3200
        %v3233 = vsel %vm2126, %v3105, %v3201
        %v3234 = vsel %vm2126, %v3106, %v3202
        %v3235 = vsel %vm2126, %v3107, %v3203
        %v3236 = vsel %vm2126, %v3108, %v3204
        %v3237 = vsel %vm2126, %v3109, %v3205
        %v3238 = vsel %vm2126, %v3110, %v3206
        %v3239 = vsel %vm2126, %v3111, %v3207
        %v3240 = vsel %vm2126, %v3112, %v3208
        %v3241 = vsel %vm2126, %v3113, %v3209
        %v3242 = vsel %vm2126, %v3114, %v3210
        %v3243 = vsel %vm2126, %v3115, %v3211
        %v3244 = vsel %vm2126, %v3116, %v3212
        %s3245 = scalar_lea.vmem %s441, 256
        %3246 = vst.msk [vmem:[%s3245] sm:$0xff] %vm1291, %v3213
        %3247 = vst.msk [vmem:[%s3245 + $0x8] sm:$0xff] %vm1291, %v3214
        %3248 = vst.msk [vmem:[%s3245 + $0x10] sm:$0xff] %vm1291, %v3215
        %3249 = vst.msk [vmem:[%s3245 + $0x18] sm:$0xff] %vm1291, %v3216
        %3250 = vst.msk [vmem:[%s3245 + $0x20] sm:$0xff] %vm1291, %v3217
        %3251 = vst.msk [vmem:[%s3245 + $0x28] sm:$0xff] %vm1291, %v3218
        %3252 = vst.msk [vmem:[%s3245 + $0x30] sm:$0xff] %vm1291, %v3219
        %3253 = vst.msk [vmem:[%s3245 + $0x38] sm:$0xff] %vm1291, %v3220
        %3254 = vst.msk [vmem:[%s3245 + $0x40] sm:$0xff] %vm1291, %v3221
        %3255 = vst.msk [vmem:[%s3245 + $0x48] sm:$0xff] %vm1291, %v3222
        %3256 = vst.msk [vmem:[%s3245 + $0x50] sm:$0xff] %vm1291, %v3223
        %3257 = vst.msk [vmem:[%s3245 + $0x58] sm:$0xff] %vm1291, %v3224
        %3258 = vst.msk [vmem:[%s3245 + $0x60] sm:$0xff] %vm1291, %v3225
        %3259 = vst.msk [vmem:[%s3245 + $0x68] sm:$0xff] %vm1291, %v3226
        %3260 = vst.msk [vmem:[%s3245 + $0x70] sm:$0xff] %vm1291, %v3227
        %3261 = vst.msk [vmem:[%s3245 + $0x78] sm:$0xff] %vm1291, %v3228
        %3262 = vst.msk [vmem:[%s3245 + $0x80] sm:$0xff] %vm1291, %v3229
        %3263 = vst.msk [vmem:[%s3245 + $0x88] sm:$0xff] %vm1291, %v3230
        %3264 = vst.msk [vmem:[%s3245 + $0x90] sm:$0xff] %vm1291, %v3231
        %3265 = vst.msk [vmem:[%s3245 + $0x98] sm:$0xff] %vm1291, %v3232
        %3266 = vst.msk [vmem:[%s3245 + $0xa0] sm:$0xff] %vm1291, %v3233
        %3267 = vst.msk [vmem:[%s3245 + $0xa8] sm:$0xff] %vm1291, %v3234
        %3268 = vst.msk [vmem:[%s3245 + $0xb0] sm:$0xff] %vm1291, %v3235
        %3269 = vst.msk [vmem:[%s3245 + $0xb8] sm:$0xff] %vm1291, %v3236
        %3270 = vst.msk [vmem:[%s3245 + $0xc0] sm:$0xff] %vm1291, %v3237
        %3271 = vst.msk [vmem:[%s3245 + $0xc8] sm:$0xff] %vm1291, %v3238
        %3272 = vst.msk [vmem:[%s3245 + $0xd0] sm:$0xff] %vm1291, %v3239
        %3273 = vst.msk [vmem:[%s3245 + $0xd8] sm:$0xff] %vm1291, %v3240
        %3274 = vst.msk [vmem:[%s3245 + $0xe0] sm:$0xff] %vm1291, %v3241
        %3275 = vst.msk [vmem:[%s3245 + $0xe8] sm:$0xff] %vm1291, %v3242
        %3276 = vst.msk [vmem:[%s3245 + $0xf0] sm:$0xff] %vm1291, %v3243
        %3277 = vst.msk [vmem:[%s3245 + $0xf8] sm:$0xff] %vm1291, %v3244
        %s3278 = scalar_lea.vmem %s3, 64
        %v3279 = vld [vmem:[%s3278] sm:$0xff]
        %v3280 = vld [vmem:[%s3278 + $0x8] sm:$0xff]
        %v3281 = vld [vmem:[%s3278 + $0x10] sm:$0xff]
        %v3282 = vld [vmem:[%s3278 + $0x18] sm:$0xff]
        %s3283 = scalar_lea.vmem %s4, 2
        %v3284 = vld [vmem:[%s3283] sm:$0x1]
        %v3286 = vperm.slane %v3284, 0
        %3288 = vmatpush.msra.mxu0 0.0
        %3289 = vmatpush.msra.mxu0 0.0
        %3290 = vmatpush.msra.mxu0 0.0
        %3291 = vmatpush.msra.mxu0 0.0
        %3292 = vmatpush.msra.mxu0 0.0
        %3293 = vmatpush.msra.mxu0 0.0
        %3294 = vmatpush.msra.mxu0 0.0
        %3295 = vmatpush.msra.mxu0 0.0
        %3296 = vmatpush.msra.mxu0 0.0
        %3297 = vmatpush.msra.mxu0 0.0
        %3298 = vmatpush.msra.mxu0 0.0
        %3299 = vmatpush.msra.mxu0 0.0
        %3300 = vmatpush.msra.mxu0 %v3282
        %3301 = vmatpush.msra.mxu0 %v3281
        %3302 = vmatpush.msra.mxu0 %v3280
        %3303 = vmatpush.msra.mxu0 %v3279
        %3304 = vmatmul.f32.gmra.mxu0 %v737
        %v3305 = vpop.f32.mrf.mxu0
        %v3306 = vadd.f32 %v3286, %v3305
        %3307 = vmatmul.f32.gmra.mxu0 %v740
        %v3308 = vpop.f32.mrf.mxu0
        %v3309 = vadd.f32 %v3286, %v3308
        %3310 = vmatmul.f32.gmra.mxu0 %v743
        %v3311 = vpop.f32.mrf.mxu0
        %v3312 = vadd.f32 %v3286, %v3311
        %3313 = vmatmul.f32.gmra.mxu0 %v746
        %v3314 = vpop.f32.mrf.mxu0
        %v3315 = vadd.f32 %v3286, %v3314
        %3316 = vmatmul.f32.gmra.mxu0 %v749
        %v3317 = vpop.f32.mrf.mxu0
        %v3318 = vadd.f32 %v3286, %v3317
        %3319 = vmatmul.f32.gmra.mxu0 %v752
        %v3320 = vpop.f32.mrf.mxu0
        %v3321 = vadd.f32 %v3286, %v3320
        %3322 = vmatmul.f32.gmra.mxu0 %v755
        %v3323 = vpop.f32.mrf.mxu0
        %v3324 = vadd.f32 %v3286, %v3323
        %3325 = vmatmul.f32.gmra.mxu0 %v758
        %v3326 = vpop.f32.mrf.mxu0
        %v3327 = vadd.f32 %v3286, %v3326
        %3328 = vmatmul.f32.gmra.mxu0 %v761
        %v3329 = vpop.f32.mrf.mxu0
        %v3330 = vadd.f32 %v3286, %v3329
        %3331 = vmatmul.f32.gmra.mxu0 %v764
        %v3332 = vpop.f32.mrf.mxu0
        %v3333 = vadd.f32 %v3286, %v3332
        %3334 = vmatmul.f32.gmra.mxu0 %v767
        %v3335 = vpop.f32.mrf.mxu0
        %v3336 = vadd.f32 %v3286, %v3335
        %3337 = vmatmul.f32.gmra.mxu0 %v770
        %v3338 = vpop.f32.mrf.mxu0
        %v3339 = vadd.f32 %v3286, %v3338
        %3340 = vmatmul.f32.gmra.mxu0 %v773
        %v3341 = vpop.f32.mrf.mxu0
        %v3342 = vadd.f32 %v3286, %v3341
        %3343 = vmatmul.f32.gmra.mxu0 %v776
        %v3344 = vpop.f32.mrf.mxu0
        %v3345 = vadd.f32 %v3286, %v3344
        %3346 = vmatmul.f32.gmra.mxu0 %v779
        %v3347 = vpop.f32.mrf.mxu0
        %v3348 = vadd.f32 %v3286, %v3347
        %3349 = vmatmul.f32.gmra.mxu0 %v782
        %v3350 = vpop.f32.mrf.mxu0
        %v3351 = vadd.f32 %v3286, %v3350
        %3352 = vmatmul.f32.gmra.mxu0 %v785
        %v3353 = vpop.f32.mrf.mxu0
        %v3354 = vadd.f32 %v3286, %v3353
        %3355 = vmatmul.f32.gmra.mxu0 %v788
        %v3356 = vpop.f32.mrf.mxu0
        %v3357 = vadd.f32 %v3286, %v3356
        %3358 = vmatmul.f32.gmra.mxu0 %v791
        %v3359 = vpop.f32.mrf.mxu0
        %v3360 = vadd.f32 %v3286, %v3359
        %3361 = vmatmul.f32.gmra.mxu0 %v794
        %v3362 = vpop.f32.mrf.mxu0
        %v3363 = vadd.f32 %v3286, %v3362
        %3364 = vmatmul.f32.gmra.mxu0 %v797
        %v3365 = vpop.f32.mrf.mxu0
        %v3366 = vadd.f32 %v3286, %v3365
        %3367 = vmatmul.f32.gmra.mxu0 %v800
        %v3368 = vpop.f32.mrf.mxu0
        %v3369 = vadd.f32 %v3286, %v3368
        %3370 = vmatmul.f32.gmra.mxu0 %v803
        %v3371 = vpop.f32.mrf.mxu0
        %v3372 = vadd.f32 %v3286, %v3371
        %3373 = vmatmul.f32.gmra.mxu0 %v806
        %v3374 = vpop.f32.mrf.mxu0
        %v3375 = vadd.f32 %v3286, %v3374
        %3376 = vmatmul.f32.gmra.mxu0 %v809
        %v3377 = vpop.f32.mrf.mxu0
        %v3378 = vadd.f32 %v3286, %v3377
        %3379 = vmatmul.f32.gmra.mxu0 %v812
        %v3380 = vpop.f32.mrf.mxu0
        %v3381 = vadd.f32 %v3286, %v3380
        %3382 = vmatmul.f32.gmra.mxu0 %v815
        %v3383 = vpop.f32.mrf.mxu0
        %v3384 = vadd.f32 %v3286, %v3383
        %3385 = vmatmul.f32.gmra.mxu0 %v818
        %v3386 = vpop.f32.mrf.mxu0
        %v3387 = vadd.f32 %v3286, %v3386
        %3388 = vmatmul.f32.gmra.mxu0 %v821
        %v3389 = vpop.f32.mrf.mxu0
        %v3390 = vadd.f32 %v3286, %v3389
        %3391 = vmatmul.f32.gmra.mxu0 %v824
        %v3392 = vpop.f32.mrf.mxu0
        %v3393 = vadd.f32 %v3286, %v3392
        %3394 = vmatmul.f32.gmra.mxu0 %v827
        %v3395 = vpop.f32.mrf.mxu0
        %v3396 = vadd.f32 %v3286, %v3395
        %3397 = vmatmul.f32.gmra.mxu0 %v830
        %v3398 = vpop.f32.mrf.mxu0
        %v3399 = vadd.f32 %v3286, %v3398
        %3400 = vdwg.mxu0
        %s3401 = scalar_lea.vmem %s417, 512 [#allocation2]
        %3402 = vst.msk [vmem:[%s3401] sm:$0xff] %vm1291, %v3306
        %3403 = vst.msk [vmem:[%s3401 + $0x8] sm:$0xff] %vm1291, %v3309
        %3404 = vst.msk [vmem:[%s3401 + $0x10] sm:$0xff] %vm1291, %v3312
        %3405 = vst.msk [vmem:[%s3401 + $0x18] sm:$0xff] %vm1291, %v3315
        %3406 = vst.msk [vmem:[%s3401 + $0x20] sm:$0xff] %vm1291, %v3318
        %3407 = vst.msk [vmem:[%s3401 + $0x28] sm:$0xff] %vm1291, %v3321
        %3408 = vst.msk [vmem:[%s3401 + $0x30] sm:$0xff] %vm1291, %v3324
        %3409 = vst.msk [vmem:[%s3401 + $0x38] sm:$0xff] %vm1291, %v3327
        %3410 = vst.msk [vmem:[%s3401 + $0x40] sm:$0xff] %vm1291, %v3330
        %3411 = vst.msk [vmem:[%s3401 + $0x48] sm:$0xff] %vm1291, %v3333
        %3412 = vst.msk [vmem:[%s3401 + $0x50] sm:$0xff] %vm1291, %v3336
        %3413 = vst.msk [vmem:[%s3401 + $0x58] sm:$0xff] %vm1291, %v3339
        %3414 = vst.msk [vmem:[%s3401 + $0x60] sm:$0xff] %vm1291, %v3342
        %3415 = vst.msk [vmem:[%s3401 + $0x68] sm:$0xff] %vm1291, %v3345
        %3416 = vst.msk [vmem:[%s3401 + $0x70] sm:$0xff] %vm1291, %v3348
        %3417 = vst.msk [vmem:[%s3401 + $0x78] sm:$0xff] %vm1291, %v3351
        %3418 = vst.msk [vmem:[%s3401 + $0x80] sm:$0xff] %vm1291, %v3354
        %3419 = vst.msk [vmem:[%s3401 + $0x88] sm:$0xff] %vm1291, %v3357
        %3420 = vst.msk [vmem:[%s3401 + $0x90] sm:$0xff] %vm1291, %v3360
        %3421 = vst.msk [vmem:[%s3401 + $0x98] sm:$0xff] %vm1291, %v3363
        %3422 = vst.msk [vmem:[%s3401 + $0xa0] sm:$0xff] %vm1291, %v3366
        %3423 = vst.msk [vmem:[%s3401 + $0xa8] sm:$0xff] %vm1291, %v3369
        %3424 = vst.msk [vmem:[%s3401 + $0xb0] sm:$0xff] %vm1291, %v3372
        %3425 = vst.msk [vmem:[%s3401 + $0xb8] sm:$0xff] %vm1291, %v3375
        %3426 = vst.msk [vmem:[%s3401 + $0xc0] sm:$0xff] %vm1291, %v3378
        %3427 = vst.msk [vmem:[%s3401 + $0xc8] sm:$0xff] %vm1291, %v3381
        %3428 = vst.msk [vmem:[%s3401 + $0xd0] sm:$0xff] %vm1291, %v3384
        %3429 = vst.msk [vmem:[%s3401 + $0xd8] sm:$0xff] %vm1291, %v3387
        %3430 = vst.msk [vmem:[%s3401 + $0xe0] sm:$0xff] %vm1291, %v3390
        %3431 = vst.msk [vmem:[%s3401 + $0xe8] sm:$0xff] %vm1291, %v3393
        %3432 = vst.msk [vmem:[%s3401 + $0xf0] sm:$0xff] %vm1291, %v3396
        %3433 = vst.msk [vmem:[%s3401 + $0xf8] sm:$0xff] %vm1291, %v3399
        %v3434 = vxor.u32 %v3306, 2147483648
        %v3435 = vxor.u32 %v3309, 2147483648
        %v3436 = vxor.u32 %v3312, 2147483648
        %v3437 = vxor.u32 %v3315, 2147483648
        %v3438 = vxor.u32 %v3318, 2147483648
        %v3439 = vxor.u32 %v3321, 2147483648
        %v3440 = vxor.u32 %v3324, 2147483648
        %v3441 = vxor.u32 %v3327, 2147483648
        %v3442 = vxor.u32 %v3330, 2147483648
        %v3443 = vxor.u32 %v3333, 2147483648
        %v3444 = vxor.u32 %v3336, 2147483648
        %v3445 = vxor.u32 %v3339, 2147483648
        %v3446 = vxor.u32 %v3342, 2147483648
        %v3447 = vxor.u32 %v3345, 2147483648
        %v3448 = vxor.u32 %v3348, 2147483648
        %v3449 = vxor.u32 %v3351, 2147483648
        %v3450 = vxor.u32 %v3354, 2147483648
        %v3451 = vxor.u32 %v3357, 2147483648
        %v3452 = vxor.u32 %v3360, 2147483648
        %v3453 = vxor.u32 %v3363, 2147483648
        %v3454 = vxor.u32 %v3366, 2147483648
        %v3455 = vxor.u32 %v3369, 2147483648
        %v3456 = vxor.u32 %v3372, 2147483648
        %v3457 = vxor.u32 %v3375, 2147483648
        %v3458 = vxor.u32 %v3378, 2147483648
        %v3459 = vxor.u32 %v3381, 2147483648
        %v3460 = vxor.u32 %v3384, 2147483648
        %v3461 = vxor.u32 %v3387, 2147483648
        %v3462 = vxor.u32 %v3390, 2147483648
        %v3463 = vxor.u32 %v3393, 2147483648
        %v3464 = vxor.u32 %v3396, 2147483648
        %v3465 = vxor.u32 %v3399, 2147483648
        %v3466 = vmul.f32 %v3434, 1.442695
        %v3467 = vpow.pop %v3466
        %v3468 = vmul.f32 %v3435, 1.442695
        %v3469 = vpow.pop %v3468
        %v3470 = vmul.f32 %v3436, 1.442695
        %v3471 = vpow.pop %v3470
        %v3472 = vmul.f32 %v3437, 1.442695
        %v3473 = vpow.pop %v3472
        %v3474 = vmul.f32 %v3438, 1.442695
        %v3475 = vpow.pop %v3474
        %v3476 = vmul.f32 %v3439, 1.442695
        %v3477 = vpow.pop %v3476
        %v3478 = vmul.f32 %v3440, 1.442695
        %v3479 = vpow.pop %v3478
        %v3480 = vmul.f32 %v3441, 1.442695
        %v3481 = vpow.pop %v3480
        %v3482 = vmul.f32 %v3442, 1.442695
        %v3483 = vpow.pop %v3482
        %v3484 = vmul.f32 %v3443, 1.442695
        %v3485 = vpow.pop %v3484
        %v3486 = vmul.f32 %v3444, 1.442695
        %v3487 = vpow.pop %v3486
        %v3488 = vmul.f32 %v3445, 1.442695
        %v3489 = vpow.pop %v3488
        %v3490 = vmul.f32 %v3446, 1.442695
        %v3491 = vpow.pop %v3490
        %v3492 = vmul.f32 %v3447, 1.442695
        %v3493 = vpow.pop %v3492
        %v3494 = vmul.f32 %v3448, 1.442695
        %v3495 = vpow.pop %v3494
        %v3496 = vmul.f32 %v3449, 1.442695
        %v3497 = vpow.pop %v3496
        %v3498 = vmul.f32 %v3450, 1.442695
        %v3499 = vpow.pop %v3498
        %v3500 = vmul.f32 %v3451, 1.442695
        %v3501 = vpow.pop %v3500
        %v3502 = vmul.f32 %v3452, 1.442695
        %v3503 = vpow.pop %v3502
        %v3504 = vmul.f32 %v3453, 1.442695
        %v3505 = vpow.pop %v3504
        %v3506 = vmul.f32 %v3454, 1.442695
        %v3507 = vpow.pop %v3506
        %v3508 = vmul.f32 %v3455, 1.442695
        %v3509 = vpow.pop %v3508
        %v3510 = vmul.f32 %v3456, 1.442695
        %v3511 = vpow.pop %v3510
        %v3512 = vmul.f32 %v3457, 1.442695
        %v3513 = vpow.pop %v3512
        %v3514 = vmul.f32 %v3458, 1.442695
        %v3515 = vpow.pop %v3514
        %v3516 = vmul.f32 %v3459, 1.442695
        %v3517 = vpow.pop %v3516
        %v3518 = vmul.f32 %v3460, 1.442695
        %v3519 = vpow.pop %v3518
        %v3520 = vmul.f32 %v3461, 1.442695
        %v3521 = vpow.pop %v3520
        %v3522 = vmul.f32 %v3462, 1.442695
        %v3523 = vpow.pop %v3522
        %v3524 = vmul.f32 %v3463, 1.442695
        %v3525 = vpow.pop %v3524
        %v3526 = vmul.f32 %v3464, 1.442695
        %v3527 = vpow.pop %v3526
        %v3528 = vmul.f32 %v3465, 1.442695
        %v3529 = vpow.pop %v3528
        %v3530 = vadd.f32 %v3467, 1.0
        %v3531 = vadd.f32 %v3469, 1.0
        %v3532 = vadd.f32 %v3471, 1.0
        %v3533 = vadd.f32 %v3473, 1.0
        %v3534 = vadd.f32 %v3475, 1.0
        %v3535 = vadd.f32 %v3477, 1.0
        %v3536 = vadd.f32 %v3479, 1.0
        %v3537 = vadd.f32 %v3481, 1.0
        %v3538 = vadd.f32 %v3483, 1.0
        %v3539 = vadd.f32 %v3485, 1.0
        %v3540 = vadd.f32 %v3487, 1.0
        %v3541 = vadd.f32 %v3489, 1.0
        %v3542 = vadd.f32 %v3491, 1.0
        %v3543 = vadd.f32 %v3493, 1.0
        %v3544 = vadd.f32 %v3495, 1.0
        %v3545 = vadd.f32 %v3497, 1.0
        %v3546 = vadd.f32 %v3499, 1.0
        %v3547 = vadd.f32 %v3501, 1.0
        %v3548 = vadd.f32 %v3503, 1.0
        %v3549 = vadd.f32 %v3505, 1.0
        %v3550 = vadd.f32 %v3507, 1.0
        %v3551 = vadd.f32 %v3509, 1.0
        %v3552 = vadd.f32 %v3511, 1.0
        %v3553 = vadd.f32 %v3513, 1.0
        %v3554 = vadd.f32 %v3515, 1.0
        %v3555 = vadd.f32 %v3517, 1.0
        %v3556 = vadd.f32 %v3519, 1.0
        %v3557 = vadd.f32 %v3521, 1.0
        %v3558 = vadd.f32 %v3523, 1.0
        %v3559 = vadd.f32 %v3525, 1.0
        %v3560 = vadd.f32 %v3527, 1.0
        %v3561 = vadd.f32 %v3529, 1.0
        %v3562 = vrcp.pop %v3530
        %v3563 = vmul.f32 %v3530, %v3562
        %v3564 = vsub.f32 1.0, %v3563
        %v3565 = vmul.f32 %v3562, %v3564
        %v3566 = vadd.f32 %v3562, %v3565
        %vm3567 = vweird.f32 %v3530
        %vm3568 = vweird.f32 %v3562
        %vm3569 = vmor %vm3567, %vm3568
        %v3570 = vsel %vm3569, %v3562, %v3566
        %v3571 = vand.u32 2147483647, %v3530
        %vm3572 = vcmp.eq.f32.partialorder %v3571, 8.507059e+37
        %v3573 = vand.u32 %v3530, 2147483648
        %v3574 = vor.u32 1.1754944e-38, %v3573
        %v3575 = vsel %vm3572, %v3574, %v3570
        %v3576 = vmul.f32 1.0, %v3575
        %v3577 = vrcp.pop %v3531
        %v3578 = vmul.f32 %v3531, %v3577
        %v3579 = vsub.f32 1.0, %v3578
        %v3580 = vmul.f32 %v3577, %v3579
        %v3581 = vadd.f32 %v3577, %v3580
        %vm3582 = vweird.f32 %v3531
        %vm3583 = vweird.f32 %v3577
        %vm3584 = vmor %vm3582, %vm3583
        %v3585 = vsel %vm3584, %v3577, %v3581
        %v3586 = vand.u32 2147483647, %v3531
        %vm3587 = vcmp.eq.f32.partialorder %v3586, 8.507059e+37
        %v3588 = vand.u32 %v3531, 2147483648
        %v3589 = vor.u32 1.1754944e-38, %v3588
        %v3590 = vsel %vm3587, %v3589, %v3585
        %v3591 = vmul.f32 1.0, %v3590
        %v3592 = vrcp.pop %v3532
        %v3593 = vmul.f32 %v3532, %v3592
        %v3594 = vsub.f32 1.0, %v3593
        %v3595 = vmul.f32 %v3592, %v3594
        %v3596 = vadd.f32 %v3592, %v3595
        %vm3597 = vweird.f32 %v3532
        %vm3598 = vweird.f32 %v3592
        %vm3599 = vmor %vm3597, %vm3598
        %v3600 = vsel %vm3599, %v3592, %v3596
        %v3601 = vand.u32 2147483647, %v3532
        %vm3602 = vcmp.eq.f32.partialorder %v3601, 8.507059e+37
        %v3603 = vand.u32 %v3532, 2147483648
        %v3604 = vor.u32 1.1754944e-38, %v3603
        %v3605 = vsel %vm3602, %v3604, %v3600
        %v3606 = vmul.f32 1.0, %v3605
        %v3607 = vrcp.pop %v3533
        %v3608 = vmul.f32 %v3533, %v3607
        %v3609 = vsub.f32 1.0, %v3608
        %v3610 = vmul.f32 %v3607, %v3609
        %v3611 = vadd.f32 %v3607, %v3610
        %vm3612 = vweird.f32 %v3533
        %vm3613 = vweird.f32 %v3607
        %vm3614 = vmor %vm3612, %vm3613
        %v3615 = vsel %vm3614, %v3607, %v3611
        %v3616 = vand.u32 2147483647, %v3533
        %vm3617 = vcmp.eq.f32.partialorder %v3616, 8.507059e+37
        %v3618 = vand.u32 %v3533, 2147483648
        %v3619 = vor.u32 1.1754944e-38, %v3618
        %v3620 = vsel %vm3617, %v3619, %v3615
        %v3621 = vmul.f32 1.0, %v3620
        %v3622 = vrcp.pop %v3534
        %v3623 = vmul.f32 %v3534, %v3622
        %v3624 = vsub.f32 1.0, %v3623
        %v3625 = vmul.f32 %v3622, %v3624
        %v3626 = vadd.f32 %v3622, %v3625
        %vm3627 = vweird.f32 %v3534
        %vm3628 = vweird.f32 %v3622
        %vm3629 = vmor %vm3627, %vm3628
        %v3630 = vsel %vm3629, %v3622, %v3626
        %v3631 = vand.u32 2147483647, %v3534
        %vm3632 = vcmp.eq.f32.partialorder %v3631, 8.507059e+37
        %v3633 = vand.u32 %v3534, 2147483648
        %v3634 = vor.u32 1.1754944e-38, %v3633
        %v3635 = vsel %vm3632, %v3634, %v3630
        %v3636 = vmul.f32 1.0, %v3635
        %v3637 = vrcp.pop %v3535
        %v3638 = vmul.f32 %v3535, %v3637
        %v3639 = vsub.f32 1.0, %v3638
        %v3640 = vmul.f32 %v3637, %v3639
        %v3641 = vadd.f32 %v3637, %v3640
        %vm3642 = vweird.f32 %v3535
        %vm3643 = vweird.f32 %v3637
        %vm3644 = vmor %vm3642, %vm3643
        %v3645 = vsel %vm3644, %v3637, %v3641
        %v3646 = vand.u32 2147483647, %v3535
        %vm3647 = vcmp.eq.f32.partialorder %v3646, 8.507059e+37
        %v3648 = vand.u32 %v3535, 2147483648
        %v3649 = vor.u32 1.1754944e-38, %v3648
        %v3650 = vsel %vm3647, %v3649, %v3645
        %v3651 = vmul.f32 1.0, %v3650
        %v3652 = vrcp.pop %v3536
        %v3653 = vmul.f32 %v3536, %v3652
        %v3654 = vsub.f32 1.0, %v3653
        %v3655 = vmul.f32 %v3652, %v3654
        %v3656 = vadd.f32 %v3652, %v3655
        %vm3657 = vweird.f32 %v3536
        %vm3658 = vweird.f32 %v3652
        %vm3659 = vmor %vm3657, %vm3658
        %v3660 = vsel %vm3659, %v3652, %v3656
        %v3661 = vand.u32 2147483647, %v3536
        %vm3662 = vcmp.eq.f32.partialorder %v3661, 8.507059e+37
        %v3663 = vand.u32 %v3536, 2147483648
        %v3664 = vor.u32 1.1754944e-38, %v3663
        %v3665 = vsel %vm3662, %v3664, %v3660
        %v3666 = vmul.f32 1.0, %v3665
        %v3667 = vrcp.pop %v3537
        %v3668 = vmul.f32 %v3537, %v3667
        %v3669 = vsub.f32 1.0, %v3668
        %v3670 = vmul.f32 %v3667, %v3669
        %v3671 = vadd.f32 %v3667, %v3670
        %vm3672 = vweird.f32 %v3537
        %vm3673 = vweird.f32 %v3667
        %vm3674 = vmor %vm3672, %vm3673
        %v3675 = vsel %vm3674, %v3667, %v3671
        %v3676 = vand.u32 2147483647, %v3537
        %vm3677 = vcmp.eq.f32.partialorder %v3676, 8.507059e+37
        %v3678 = vand.u32 %v3537, 2147483648
        %v3679 = vor.u32 1.1754944e-38, %v3678
        %v3680 = vsel %vm3677, %v3679, %v3675
        %v3681 = vmul.f32 1.0, %v3680
        %v3682 = vrcp.pop %v3538
        %v3683 = vmul.f32 %v3538, %v3682
        %v3684 = vsub.f32 1.0, %v3683
        %v3685 = vmul.f32 %v3682, %v3684
        %v3686 = vadd.f32 %v3682, %v3685
        %vm3687 = vweird.f32 %v3538
        %vm3688 = vweird.f32 %v3682
        %vm3689 = vmor %vm3687, %vm3688
        %v3690 = vsel %vm3689, %v3682, %v3686
        %v3691 = vand.u32 2147483647, %v3538
        %vm3692 = vcmp.eq.f32.partialorder %v3691, 8.507059e+37
        %v3693 = vand.u32 %v3538, 2147483648
        %v3694 = vor.u32 1.1754944e-38, %v3693
        %v3695 = vsel %vm3692, %v3694, %v3690
        %v3696 = vmul.f32 1.0, %v3695
        %v3697 = vrcp.pop %v3539
        %v3698 = vmul.f32 %v3539, %v3697
        %v3699 = vsub.f32 1.0, %v3698
        %v3700 = vmul.f32 %v3697, %v3699
        %v3701 = vadd.f32 %v3697, %v3700
        %vm3702 = vweird.f32 %v3539
        %vm3703 = vweird.f32 %v3697
        %vm3704 = vmor %vm3702, %vm3703
        %v3705 = vsel %vm3704, %v3697, %v3701
        %v3706 = vand.u32 2147483647, %v3539
        %vm3707 = vcmp.eq.f32.partialorder %v3706, 8.507059e+37
        %v3708 = vand.u32 %v3539, 2147483648
        %v3709 = vor.u32 1.1754944e-38, %v3708
        %v3710 = vsel %vm3707, %v3709, %v3705
        %v3711 = vmul.f32 1.0, %v3710
        %v3712 = vrcp.pop %v3540
        %v3713 = vmul.f32 %v3540, %v3712
        %v3714 = vsub.f32 1.0, %v3713
        %v3715 = vmul.f32 %v3712, %v3714
        %v3716 = vadd.f32 %v3712, %v3715
        %vm3717 = vweird.f32 %v3540
        %vm3718 = vweird.f32 %v3712
        %vm3719 = vmor %vm3717, %vm3718
        %v3720 = vsel %vm3719, %v3712, %v3716
        %v3721 = vand.u32 2147483647, %v3540
        %vm3722 = vcmp.eq.f32.partialorder %v3721, 8.507059e+37
        %v3723 = vand.u32 %v3540, 2147483648
        %v3724 = vor.u32 1.1754944e-38, %v3723
        %v3725 = vsel %vm3722, %v3724, %v3720
        %v3726 = vmul.f32 1.0, %v3725
        %v3727 = vrcp.pop %v3541
        %v3728 = vmul.f32 %v3541, %v3727
        %v3729 = vsub.f32 1.0, %v3728
        %v3730 = vmul.f32 %v3727, %v3729
        %v3731 = vadd.f32 %v3727, %v3730
        %vm3732 = vweird.f32 %v3541
        %vm3733 = vweird.f32 %v3727
        %vm3734 = vmor %vm3732, %vm3733
        %v3735 = vsel %vm3734, %v3727, %v3731
        %v3736 = vand.u32 2147483647, %v3541
        %vm3737 = vcmp.eq.f32.partialorder %v3736, 8.507059e+37
        %v3738 = vand.u32 %v3541, 2147483648
        %v3739 = vor.u32 1.1754944e-38, %v3738
        %v3740 = vsel %vm3737, %v3739, %v3735
        %v3741 = vmul.f32 1.0, %v3740
        %v3742 = vrcp.pop %v3542
        %v3743 = vmul.f32 %v3542, %v3742
        %v3744 = vsub.f32 1.0, %v3743
        %v3745 = vmul.f32 %v3742, %v3744
        %v3746 = vadd.f32 %v3742, %v3745
        %vm3747 = vweird.f32 %v3542
        %vm3748 = vweird.f32 %v3742
        %vm3749 = vmor %vm3747, %vm3748
        %v3750 = vsel %vm3749, %v3742, %v3746
        %v3751 = vand.u32 2147483647, %v3542
        %vm3752 = vcmp.eq.f32.partialorder %v3751, 8.507059e+37
        %v3753 = vand.u32 %v3542, 2147483648
        %v3754 = vor.u32 1.1754944e-38, %v3753
        %v3755 = vsel %vm3752, %v3754, %v3750
        %v3756 = vmul.f32 1.0, %v3755
        %v3757 = vrcp.pop %v3543
        %v3758 = vmul.f32 %v3543, %v3757
        %v3759 = vsub.f32 1.0, %v3758
        %v3760 = vmul.f32 %v3757, %v3759
        %v3761 = vadd.f32 %v3757, %v3760
        %vm3762 = vweird.f32 %v3543
        %vm3763 = vweird.f32 %v3757
        %vm3764 = vmor %vm3762, %vm3763
        %v3765 = vsel %vm3764, %v3757, %v3761
        %v3766 = vand.u32 2147483647, %v3543
        %vm3767 = vcmp.eq.f32.partialorder %v3766, 8.507059e+37
        %v3768 = vand.u32 %v3543, 2147483648
        %v3769 = vor.u32 1.1754944e-38, %v3768
        %v3770 = vsel %vm3767, %v3769, %v3765
        %v3771 = vmul.f32 1.0, %v3770
        %v3772 = vrcp.pop %v3544
        %v3773 = vmul.f32 %v3544, %v3772
        %v3774 = vsub.f32 1.0, %v3773
        %v3775 = vmul.f32 %v3772, %v3774
        %v3776 = vadd.f32 %v3772, %v3775
        %vm3777 = vweird.f32 %v3544
        %vm3778 = vweird.f32 %v3772
        %vm3779 = vmor %vm3777, %vm3778
        %v3780 = vsel %vm3779, %v3772, %v3776
        %v3781 = vand.u32 2147483647, %v3544
        %vm3782 = vcmp.eq.f32.partialorder %v3781, 8.507059e+37
        %v3783 = vand.u32 %v3544, 2147483648
        %v3784 = vor.u32 1.1754944e-38, %v3783
        %v3785 = vsel %vm3782, %v3784, %v3780
        %v3786 = vmul.f32 1.0, %v3785
        %v3787 = vrcp.pop %v3545
        %v3788 = vmul.f32 %v3545, %v3787
        %v3789 = vsub.f32 1.0, %v3788
        %v3790 = vmul.f32 %v3787, %v3789
        %v3791 = vadd.f32 %v3787, %v3790
        %vm3792 = vweird.f32 %v3545
        %vm3793 = vweird.f32 %v3787
        %vm3794 = vmor %vm3792, %vm3793
        %v3795 = vsel %vm3794, %v3787, %v3791
        %v3796 = vand.u32 2147483647, %v3545
        %vm3797 = vcmp.eq.f32.partialorder %v3796, 8.507059e+37
        %v3798 = vand.u32 %v3545, 2147483648
        %v3799 = vor.u32 1.1754944e-38, %v3798
        %v3800 = vsel %vm3797, %v3799, %v3795
        %v3801 = vmul.f32 1.0, %v3800
        %v3802 = vrcp.pop %v3546
        %v3803 = vmul.f32 %v3546, %v3802
        %v3804 = vsub.f32 1.0, %v3803
        %v3805 = vmul.f32 %v3802, %v3804
        %v3806 = vadd.f32 %v3802, %v3805
        %vm3807 = vweird.f32 %v3546
        %vm3808 = vweird.f32 %v3802
        %vm3809 = vmor %vm3807, %vm3808
        %v3810 = vsel %vm3809, %v3802, %v3806
        %v3811 = vand.u32 2147483647, %v3546
        %vm3812 = vcmp.eq.f32.partialorder %v3811, 8.507059e+37
        %v3813 = vand.u32 %v3546, 2147483648
        %v3814 = vor.u32 1.1754944e-38, %v3813
        %v3815 = vsel %vm3812, %v3814, %v3810
        %v3816 = vmul.f32 1.0, %v3815
        %v3817 = vrcp.pop %v3547
        %v3818 = vmul.f32 %v3547, %v3817
        %v3819 = vsub.f32 1.0, %v3818
        %v3820 = vmul.f32 %v3817, %v3819
        %v3821 = vadd.f32 %v3817, %v3820
        %vm3822 = vweird.f32 %v3547
        %vm3823 = vweird.f32 %v3817
        %vm3824 = vmor %vm3822, %vm3823
        %v3825 = vsel %vm3824, %v3817, %v3821
        %v3826 = vand.u32 2147483647, %v3547
        %vm3827 = vcmp.eq.f32.partialorder %v3826, 8.507059e+37
        %v3828 = vand.u32 %v3547, 2147483648
        %v3829 = vor.u32 1.1754944e-38, %v3828
        %v3830 = vsel %vm3827, %v3829, %v3825
        %v3831 = vmul.f32 1.0, %v3830
        %v3832 = vrcp.pop %v3548
        %v3833 = vmul.f32 %v3548, %v3832
        %v3834 = vsub.f32 1.0, %v3833
        %v3835 = vmul.f32 %v3832, %v3834
        %v3836 = vadd.f32 %v3832, %v3835
        %vm3837 = vweird.f32 %v3548
        %vm3838 = vweird.f32 %v3832
        %vm3839 = vmor %vm3837, %vm3838
        %v3840 = vsel %vm3839, %v3832, %v3836
        %v3841 = vand.u32 2147483647, %v3548
        %vm3842 = vcmp.eq.f32.partialorder %v3841, 8.507059e+37
        %v3843 = vand.u32 %v3548, 2147483648
        %v3844 = vor.u32 1.1754944e-38, %v3843
        %v3845 = vsel %vm3842, %v3844, %v3840
        %v3846 = vmul.f32 1.0, %v3845
        %v3847 = vrcp.pop %v3549
        %v3848 = vmul.f32 %v3549, %v3847
        %v3849 = vsub.f32 1.0, %v3848
        %v3850 = vmul.f32 %v3847, %v3849
        %v3851 = vadd.f32 %v3847, %v3850
        %vm3852 = vweird.f32 %v3549
        %vm3853 = vweird.f32 %v3847
        %vm3854 = vmor %vm3852, %vm3853
        %v3855 = vsel %vm3854, %v3847, %v3851
        %v3856 = vand.u32 2147483647, %v3549
        %vm3857 = vcmp.eq.f32.partialorder %v3856, 8.507059e+37
        %v3858 = vand.u32 %v3549, 2147483648
        %v3859 = vor.u32 1.1754944e-38, %v3858
        %v3860 = vsel %vm3857, %v3859, %v3855
        %v3861 = vmul.f32 1.0, %v3860
        %v3862 = vrcp.pop %v3550
        %v3863 = vmul.f32 %v3550, %v3862
        %v3864 = vsub.f32 1.0, %v3863
        %v3865 = vmul.f32 %v3862, %v3864
        %v3866 = vadd.f32 %v3862, %v3865
        %vm3867 = vweird.f32 %v3550
        %vm3868 = vweird.f32 %v3862
        %vm3869 = vmor %vm3867, %vm3868
        %v3870 = vsel %vm3869, %v3862, %v3866
        %v3871 = vand.u32 2147483647, %v3550
        %vm3872 = vcmp.eq.f32.partialorder %v3871, 8.507059e+37
        %v3873 = vand.u32 %v3550, 2147483648
        %v3874 = vor.u32 1.1754944e-38, %v3873
        %v3875 = vsel %vm3872, %v3874, %v3870
        %v3876 = vmul.f32 1.0, %v3875
        %v3877 = vrcp.pop %v3551
        %v3878 = vmul.f32 %v3551, %v3877
        %v3879 = vsub.f32 1.0, %v3878
        %v3880 = vmul.f32 %v3877, %v3879
        %v3881 = vadd.f32 %v3877, %v3880
        %vm3882 = vweird.f32 %v3551
        %vm3883 = vweird.f32 %v3877
        %vm3884 = vmor %vm3882, %vm3883
        %v3885 = vsel %vm3884, %v3877, %v3881
        %v3886 = vand.u32 2147483647, %v3551
        %vm3887 = vcmp.eq.f32.partialorder %v3886, 8.507059e+37
        %v3888 = vand.u32 %v3551, 2147483648
        %v3889 = vor.u32 1.1754944e-38, %v3888
        %v3890 = vsel %vm3887, %v3889, %v3885
        %v3891 = vmul.f32 1.0, %v3890
        %v3892 = vrcp.pop %v3552
        %v3893 = vmul.f32 %v3552, %v3892
        %v3894 = vsub.f32 1.0, %v3893
        %v3895 = vmul.f32 %v3892, %v3894
        %v3896 = vadd.f32 %v3892, %v3895
        %vm3897 = vweird.f32 %v3552
        %vm3898 = vweird.f32 %v3892
        %vm3899 = vmor %vm3897, %vm3898
        %v3900 = vsel %vm3899, %v3892, %v3896
        %v3901 = vand.u32 2147483647, %v3552
        %vm3902 = vcmp.eq.f32.partialorder %v3901, 8.507059e+37
        %v3903 = vand.u32 %v3552, 2147483648
        %v3904 = vor.u32 1.1754944e-38, %v3903
        %v3905 = vsel %vm3902, %v3904, %v3900
        %v3906 = vmul.f32 1.0, %v3905
        %v3907 = vrcp.pop %v3553
        %v3908 = vmul.f32 %v3553, %v3907
        %v3909 = vsub.f32 1.0, %v3908
        %v3910 = vmul.f32 %v3907, %v3909
        %v3911 = vadd.f32 %v3907, %v3910
        %vm3912 = vweird.f32 %v3553
        %vm3913 = vweird.f32 %v3907
        %vm3914 = vmor %vm3912, %vm3913
        %v3915 = vsel %vm3914, %v3907, %v3911
        %v3916 = vand.u32 2147483647, %v3553
        %vm3917 = vcmp.eq.f32.partialorder %v3916, 8.507059e+37
        %v3918 = vand.u32 %v3553, 2147483648
        %v3919 = vor.u32 1.1754944e-38, %v3918
        %v3920 = vsel %vm3917, %v3919, %v3915
        %v3921 = vmul.f32 1.0, %v3920
        %v3922 = vrcp.pop %v3554
        %v3923 = vmul.f32 %v3554, %v3922
        %v3924 = vsub.f32 1.0, %v3923
        %v3925 = vmul.f32 %v3922, %v3924
        %v3926 = vadd.f32 %v3922, %v3925
        %vm3927 = vweird.f32 %v3554
        %vm3928 = vweird.f32 %v3922
        %vm3929 = vmor %vm3927, %vm3928
        %v3930 = vsel %vm3929, %v3922, %v3926
        %v3931 = vand.u32 2147483647, %v3554
        %vm3932 = vcmp.eq.f32.partialorder %v3931, 8.507059e+37
        %v3933 = vand.u32 %v3554, 2147483648
        %v3934 = vor.u32 1.1754944e-38, %v3933
        %v3935 = vsel %vm3932, %v3934, %v3930
        %v3936 = vmul.f32 1.0, %v3935
        %v3937 = vrcp.pop %v3555
        %v3938 = vmul.f32 %v3555, %v3937
        %v3939 = vsub.f32 1.0, %v3938
        %v3940 = vmul.f32 %v3937, %v3939
        %v3941 = vadd.f32 %v3937, %v3940
        %vm3942 = vweird.f32 %v3555
        %vm3943 = vweird.f32 %v3937
        %vm3944 = vmor %vm3942, %vm3943
        %v3945 = vsel %vm3944, %v3937, %v3941
        %v3946 = vand.u32 2147483647, %v3555
        %vm3947 = vcmp.eq.f32.partialorder %v3946, 8.507059e+37
        %v3948 = vand.u32 %v3555, 2147483648
        %v3949 = vor.u32 1.1754944e-38, %v3948
        %v3950 = vsel %vm3947, %v3949, %v3945
        %v3951 = vmul.f32 1.0, %v3950
        %v3952 = vrcp.pop %v3556
        %v3953 = vmul.f32 %v3556, %v3952
        %v3954 = vsub.f32 1.0, %v3953
        %v3955 = vmul.f32 %v3952, %v3954
        %v3956 = vadd.f32 %v3952, %v3955
        %vm3957 = vweird.f32 %v3556
        %vm3958 = vweird.f32 %v3952
        %vm3959 = vmor %vm3957, %vm3958
        %v3960 = vsel %vm3959, %v3952, %v3956
        %v3961 = vand.u32 2147483647, %v3556
        %vm3962 = vcmp.eq.f32.partialorder %v3961, 8.507059e+37
        %v3963 = vand.u32 %v3556, 2147483648
        %v3964 = vor.u32 1.1754944e-38, %v3963
        %v3965 = vsel %vm3962, %v3964, %v3960
        %v3966 = vmul.f32 1.0, %v3965
        %v3967 = vrcp.pop %v3557
        %v3968 = vmul.f32 %v3557, %v3967
        %v3969 = vsub.f32 1.0, %v3968
        %v3970 = vmul.f32 %v3967, %v3969
        %v3971 = vadd.f32 %v3967, %v3970
        %vm3972 = vweird.f32 %v3557
        %vm3973 = vweird.f32 %v3967
        %vm3974 = vmor %vm3972, %vm3973
        %v3975 = vsel %vm3974, %v3967, %v3971
        %v3976 = vand.u32 2147483647, %v3557
        %vm3977 = vcmp.eq.f32.partialorder %v3976, 8.507059e+37
        %v3978 = vand.u32 %v3557, 2147483648
        %v3979 = vor.u32 1.1754944e-38, %v3978
        %v3980 = vsel %vm3977, %v3979, %v3975
        %v3981 = vmul.f32 1.0, %v3980
        %v3982 = vrcp.pop %v3558
        %v3983 = vmul.f32 %v3558, %v3982
        %v3984 = vsub.f32 1.0, %v3983
        %v3985 = vmul.f32 %v3982, %v3984
        %v3986 = vadd.f32 %v3982, %v3985
        %vm3987 = vweird.f32 %v3558
        %vm3988 = vweird.f32 %v3982
        %vm3989 = vmor %vm3987, %vm3988
        %v3990 = vsel %vm3989, %v3982, %v3986
        %v3991 = vand.u32 2147483647, %v3558
        %vm3992 = vcmp.eq.f32.partialorder %v3991, 8.507059e+37
        %v3993 = vand.u32 %v3558, 2147483648
        %v3994 = vor.u32 1.1754944e-38, %v3993
        %v3995 = vsel %vm3992, %v3994, %v3990
        %v3996 = vmul.f32 1.0, %v3995
        %v3997 = vrcp.pop %v3559
        %v3998 = vmul.f32 %v3559, %v3997
        %v3999 = vsub.f32 1.0, %v3998
        %v4000 = vmul.f32 %v3997, %v3999
        %v4001 = vadd.f32 %v3997, %v4000
        %vm4002 = vweird.f32 %v3559
        %vm4003 = vweird.f32 %v3997
        %vm4004 = vmor %vm4002, %vm4003
        %v4005 = vsel %vm4004, %v3997, %v4001
        %v4006 = vand.u32 2147483647, %v3559
        %vm4007 = vcmp.eq.f32.partialorder %v4006, 8.507059e+37
        %v4008 = vand.u32 %v3559, 2147483648
        %v4009 = vor.u32 1.1754944e-38, %v4008
        %v4010 = vsel %vm4007, %v4009, %v4005
        %v4011 = vmul.f32 1.0, %v4010
        %v4012 = vrcp.pop %v3560
        %v4013 = vmul.f32 %v3560, %v4012
        %v4014 = vsub.f32 1.0, %v4013
        %v4015 = vmul.f32 %v4012, %v4014
        %v4016 = vadd.f32 %v4012, %v4015
        %vm4017 = vweird.f32 %v3560
        %vm4018 = vweird.f32 %v4012
        %vm4019 = vmor %vm4017, %vm4018
        %v4020 = vsel %vm4019, %v4012, %v4016
        %v4021 = vand.u32 2147483647, %v3560
        %vm4022 = vcmp.eq.f32.partialorder %v4021, 8.507059e+37
        %v4023 = vand.u32 %v3560, 2147483648
        %v4024 = vor.u32 1.1754944e-38, %v4023
        %v4025 = vsel %vm4022, %v4024, %v4020
        %v4026 = vmul.f32 1.0, %v4025
        %v4027 = vrcp.pop %v3561
        %v4028 = vmul.f32 %v3561, %v4027
        %v4029 = vsub.f32 1.0, %v4028
        %v4030 = vmul.f32 %v4027, %v4029
        %v4031 = vadd.f32 %v4027, %v4030
        %vm4032 = vweird.f32 %v3561
        %vm4033 = vweird.f32 %v4027
        %vm4034 = vmor %vm4032, %vm4033
        %v4035 = vsel %vm4034, %v4027, %v4031
        %v4036 = vand.u32 2147483647, %v3561
        %vm4037 = vcmp.eq.f32.partialorder %v4036, 8.507059e+37
        %v4038 = vand.u32 %v3561, 2147483648
        %v4039 = vor.u32 1.1754944e-38, %v4038
        %v4040 = vsel %vm4037, %v4039, %v4035
        %v4041 = vmul.f32 1.0, %v4040
        %v4042 = vsel %vm1932, 33.0, 23.0
        %v4043 = vmul.f32 %v3576, 2.0
        %v4044 = vmul.f32 %v3591, 2.0
        %v4045 = vmul.f32 %v3606, 2.0
        %v4046 = vmul.f32 %v3621, 2.0
        %v4047 = vmul.f32 %v3636, 2.0
        %v4048 = vmul.f32 %v3651, 2.0
        %v4049 = vmul.f32 %v3666, 2.0
        %v4050 = vmul.f32 %v3681, 2.0
        %v4051 = vmul.f32 %v3696, 2.0
        %v4052 = vmul.f32 %v3711, 2.0
        %v4053 = vmul.f32 %v3726, 2.0
        %v4054 = vmul.f32 %v3741, 2.0
        %v4055 = vmul.f32 %v3756, 2.0
        %v4056 = vmul.f32 %v3771, 2.0
        %v4057 = vmul.f32 %v3786, 2.0
        %v4058 = vmul.f32 %v3801, 2.0
        %v4059 = vmul.f32 %v3816, 2.0
        %v4060 = vmul.f32 %v3831, 2.0
        %v4061 = vmul.f32 %v3846, 2.0
        %v4062 = vmul.f32 %v3861, 2.0
        %v4063 = vmul.f32 %v3876, 2.0
        %v4064 = vmul.f32 %v3891, 2.0
        %v4065 = vmul.f32 %v3906, 2.0
        %v4066 = vmul.f32 %v3921, 2.0
        %v4067 = vmul.f32 %v3936, 2.0
        %v4068 = vmul.f32 %v3951, 2.0
        %v4069 = vmul.f32 %v3966, 2.0
        %v4070 = vmul.f32 %v3981, 2.0
        %v4071 = vmul.f32 %v3996, 2.0
        %v4072 = vmul.f32 %v4011, 2.0
        %v4073 = vmul.f32 %v4026, 2.0
        %v4074 = vmul.f32 %v4041, 2.0
        %v4075 = vsub.f32 %v4043, 0.5
        %v4076 = vsub.f32 %v4044, 0.5
        %v4077 = vsub.f32 %v4045, 0.5
        %v4078 = vsub.f32 %v4046, 0.5
        %v4079 = vsub.f32 %v4047, 0.5
        %v4080 = vsub.f32 %v4048, 0.5
        %v4081 = vsub.f32 %v4049, 0.5
        %v4082 = vsub.f32 %v4050, 0.5
        %v4083 = vsub.f32 %v4051, 0.5
        %v4084 = vsub.f32 %v4052, 0.5
        %v4085 = vsub.f32 %v4053, 0.5
        %v4086 = vsub.f32 %v4054, 0.5
        %v4087 = vsub.f32 %v4055, 0.5
        %v4088 = vsub.f32 %v4056, 0.5
        %v4089 = vsub.f32 %v4057, 0.5
        %v4090 = vsub.f32 %v4058, 0.5
        %v4091 = vsub.f32 %v4059, 0.5
        %v4092 = vsub.f32 %v4060, 0.5
        %v4093 = vsub.f32 %v4061, 0.5
        %v4094 = vsub.f32 %v4062, 0.5
        %v4095 = vsub.f32 %v4063, 0.5
        %v4096 = vsub.f32 %v4064, 0.5
        %v4097 = vsub.f32 %v4065, 0.5
        %v4098 = vsub.f32 %v4066, 0.5
        %v4099 = vsub.f32 %v4067, 0.5
        %v4100 = vsub.f32 %v4068, 0.5
        %v4101 = vsub.f32 %v4069, 0.5
        %v4102 = vsub.f32 %v4070, 0.5
        %v4103 = vsub.f32 %v4071, 0.5
        %v4104 = vsub.f32 %v4072, 0.5
        %v4105 = vsub.f32 %v4073, 0.5
        %v4106 = vsub.f32 %v4074, 0.5
        %v4107 = vadd.f32 %v4075, %v1138
        %v4108 = vadd.f32 %v4076, %v1139
        %v4109 = vadd.f32 %v4077, %v1140
        %v4110 = vadd.f32 %v4078, %v1141
        %v4111 = vadd.f32 %v4079, %v1142
        %v4112 = vadd.f32 %v4080, %v1143
        %v4113 = vadd.f32 %v4081, %v1144
        %v4114 = vadd.f32 %v4082, %v1145
        %v4115 = vadd.f32 %v4083, %v1146
        %v4116 = vadd.f32 %v4084, %v1147
        %v4117 = vadd.f32 %v4085, %v1148
        %v4118 = vadd.f32 %v4086, %v1149
        %v4119 = vadd.f32 %v4087, %v1150
        %v4120 = vadd.f32 %v4088, %v1151
        %v4121 = vadd.f32 %v4089, %v1152
        %v4122 = vadd.f32 %v4090, %v1153
        %v4123 = vadd.f32 %v4091, %v1154
        %v4124 = vadd.f32 %v4092, %v1155
        %v4125 = vadd.f32 %v4093, %v1156
        %v4126 = vadd.f32 %v4094, %v1157
        %v4127 = vadd.f32 %v4095, %v1158
        %v4128 = vadd.f32 %v4096, %v1159
        %v4129 = vadd.f32 %v4097, %v1160
        %v4130 = vadd.f32 %v4098, %v1161
        %v4131 = vadd.f32 %v4099, %v1162
        %v4132 = vadd.f32 %v4100, %v1163
        %v4133 = vadd.f32 %v4101, %v1164
        %v4134 = vadd.f32 %v4102, %v1165
        %v4135 = vadd.f32 %v4103, %v1166
        %v4136 = vadd.f32 %v4104, %v1167
        %v4137 = vadd.f32 %v4105, %v1168
        %v4138 = vadd.f32 %v4106, %v1169
        %v4139 = vmul.f32 %v4107, 8.0
        %v4140 = vmul.f32 %v4108, 8.0
        %v4141 = vmul.f32 %v4109, 8.0
        %v4142 = vmul.f32 %v4110, 8.0
        %v4143 = vmul.f32 %v4111, 8.0
        %v4144 = vmul.f32 %v4112, 8.0
        %v4145 = vmul.f32 %v4113, 8.0
        %v4146 = vmul.f32 %v4114, 8.0
        %v4147 = vmul.f32 %v4115, 8.0
        %v4148 = vmul.f32 %v4116, 8.0
        %v4149 = vmul.f32 %v4117, 8.0
        %v4150 = vmul.f32 %v4118, 8.0
        %v4151 = vmul.f32 %v4119, 8.0
        %v4152 = vmul.f32 %v4120, 8.0
        %v4153 = vmul.f32 %v4121, 8.0
        %v4154 = vmul.f32 %v4122, 8.0
        %v4155 = vmul.f32 %v4123, 8.0
        %v4156 = vmul.f32 %v4124, 8.0
        %v4157 = vmul.f32 %v4125, 8.0
        %v4158 = vmul.f32 %v4126, 8.0
        %v4159 = vmul.f32 %v4127, 8.0
        %v4160 = vmul.f32 %v4128, 8.0
        %v4161 = vmul.f32 %v4129, 8.0
        %v4162 = vmul.f32 %v4130, 8.0
        %v4163 = vmul.f32 %v4131, 8.0
        %v4164 = vmul.f32 %v4132, 8.0
        %v4165 = vmul.f32 %v4133, 8.0
        %v4166 = vmul.f32 %v4134, 8.0
        %v4167 = vmul.f32 %v4135, 8.0
        %v4168 = vmul.f32 %v4136, 8.0
        %v4169 = vmul.f32 %v4137, 8.0
        %v4170 = vmul.f32 %v4138, 8.0
        %v4171 = vmul.f32 %v4043, %v4043
        %v4172 = vmul.f32 %v4044, %v4044
        %v4173 = vmul.f32 %v4045, %v4045
        %v4174 = vmul.f32 %v4046, %v4046
        %v4175 = vmul.f32 %v4047, %v4047
        %v4176 = vmul.f32 %v4048, %v4048
        %v4177 = vmul.f32 %v4049, %v4049
        %v4178 = vmul.f32 %v4050, %v4050
        %v4179 = vmul.f32 %v4051, %v4051
        %v4180 = vmul.f32 %v4052, %v4052
        %v4181 = vmul.f32 %v4053, %v4053
        %v4182 = vmul.f32 %v4054, %v4054
        %v4183 = vmul.f32 %v4055, %v4055
        %v4184 = vmul.f32 %v4056, %v4056
        %v4185 = vmul.f32 %v4057, %v4057
        %v4186 = vmul.f32 %v4058, %v4058
        %v4187 = vmul.f32 %v4059, %v4059
        %v4188 = vmul.f32 %v4060, %v4060
        %v4189 = vmul.f32 %v4061, %v4061
        %v4190 = vmul.f32 %v4062, %v4062
        %v4191 = vmul.f32 %v4063, %v4063
        %v4192 = vmul.f32 %v4064, %v4064
        %v4193 = vmul.f32 %v4065, %v4065
        %v4194 = vmul.f32 %v4066, %v4066
        %v4195 = vmul.f32 %v4067, %v4067
        %v4196 = vmul.f32 %v4068, %v4068
        %v4197 = vmul.f32 %v4069, %v4069
        %v4198 = vmul.f32 %v4070, %v4070
        %v4199 = vmul.f32 %v4071, %v4071
        %v4200 = vmul.f32 %v4072, %v4072
        %v4201 = vmul.f32 %v4073, %v4073
        %v4202 = vmul.f32 %v4074, %v4074
        %v4203 = vmul.f32 %v4171, %v4042
        %v4204 = vmul.f32 %v4172, %v4042
        %v4205 = vmul.f32 %v4173, %v4042
        %v4206 = vmul.f32 %v4174, %v4042
        %v4207 = vmul.f32 %v4175, %v4042
        %v4208 = vmul.f32 %v4176, %v4042
        %v4209 = vmul.f32 %v4177, %v4042
        %v4210 = vmul.f32 %v4178, %v4042
        %v4211 = vmul.f32 %v4179, %v4042
        %v4212 = vmul.f32 %v4180, %v4042
        %v4213 = vmul.f32 %v4181, %v4042
        %v4214 = vmul.f32 %v4182, %v4042
        %v4215 = vmul.f32 %v4183, %v4042
        %v4216 = vmul.f32 %v4184, %v4042
        %v4217 = vmul.f32 %v4185, %v4042
        %v4218 = vmul.f32 %v4186, %v4042
        %v4219 = vmul.f32 %v4187, %v4042
        %v4220 = vmul.f32 %v4188, %v4042
        %v4221 = vmul.f32 %v4189, %v4042
        %v4222 = vmul.f32 %v4190, %v4042
        %v4223 = vmul.f32 %v4191, %v4042
        %v4224 = vmul.f32 %v4192, %v4042
        %v4225 = vmul.f32 %v4193, %v4042
        %v4226 = vmul.f32 %v4194, %v4042
        %v4227 = vmul.f32 %v4195, %v4042
        %v4228 = vmul.f32 %v4196, %v4042
        %v4229 = vmul.f32 %v4197, %v4042
        %v4230 = vmul.f32 %v4198, %v4042
        %v4231 = vmul.f32 %v4199, %v4042
        %v4232 = vmul.f32 %v4200, %v4042
        %v4233 = vmul.f32 %v4201, %v4042
        %v4234 = vmul.f32 %v4202, %v4042
        %v4235 = vsel %vm2127, %v4203, %v3576
        %v4236 = vsel %vm2127, %v4204, %v3591
        %v4237 = vsel %vm2127, %v4205, %v3606
        %v4238 = vsel %vm2127, %v4206, %v3621
        %v4239 = vsel %vm2127, %v4207, %v3636
        %v4240 = vsel %vm2127, %v4208, %v3651
        %v4241 = vsel %vm2127, %v4209, %v3666
        %v4242 = vsel %vm2127, %v4210, %v3681
        %v4243 = vsel %vm2127, %v4211, %v3696
        %v4244 = vsel %vm2127, %v4212, %v3711
        %v4245 = vsel %vm2127, %v4213, %v3726
        %v4246 = vsel %vm2127, %v4214, %v3741
        %v4247 = vsel %vm2127, %v4215, %v3756
        %v4248 = vsel %vm2127, %v4216, %v3771
        %v4249 = vsel %vm2127, %v4217, %v3786
        %v4250 = vsel %vm2127, %v4218, %v3801
        %v4251 = vsel %vm2127, %v4219, %v3816
        %v4252 = vsel %vm2127, %v4220, %v3831
        %v4253 = vsel %vm2127, %v4221, %v3846
        %v4254 = vsel %vm2127, %v4222, %v3861
        %v4255 = vsel %vm2127, %v4223, %v3876
        %v4256 = vsel %vm2127, %v4224, %v3891
        %v4257 = vsel %vm2127, %v4225, %v3906
        %v4258 = vsel %vm2127, %v4226, %v3921
        %v4259 = vsel %vm2127, %v4227, %v3936
        %v4260 = vsel %vm2127, %v4228, %v3951
        %v4261 = vsel %vm2127, %v4229, %v3966
        %v4262 = vsel %vm2127, %v4230, %v3981
        %v4263 = vsel %vm2127, %v4231, %v3996
        %v4264 = vsel %vm2127, %v4232, %v4011
        %v4265 = vsel %vm2127, %v4233, %v4026
        %v4266 = vsel %vm2127, %v4234, %v4041
        %v4267 = vsel %vm2126, %v4139, %v4235
        %v4268 = vsel %vm2126, %v4140, %v4236
        %v4269 = vsel %vm2126, %v4141, %v4237
        %v4270 = vsel %vm2126, %v4142, %v4238
        %v4271 = vsel %vm2126, %v4143, %v4239
        %v4272 = vsel %vm2126, %v4144, %v4240
        %v4273 = vsel %vm2126, %v4145, %v4241
        %v4274 = vsel %vm2126, %v4146, %v4242
        %v4275 = vsel %vm2126, %v4147, %v4243
        %v4276 = vsel %vm2126, %v4148, %v4244
        %v4277 = vsel %vm2126, %v4149, %v4245
        %v4278 = vsel %vm2126, %v4150, %v4246
        %v4279 = vsel %vm2126, %v4151, %v4247
        %v4280 = vsel %vm2126, %v4152, %v4248
        %v4281 = vsel %vm2126, %v4153, %v4249
        %v4282 = vsel %vm2126, %v4154, %v4250
        %v4283 = vsel %vm2126, %v4155, %v4251
        %v4284 = vsel %vm2126, %v4156, %v4252
        %v4285 = vsel %vm2126, %v4157, %v4253
        %v4286 = vsel %vm2126, %v4158, %v4254
        %v4287 = vsel %vm2126, %v4159, %v4255
        %v4288 = vsel %vm2126, %v4160, %v4256
        %v4289 = vsel %vm2126, %v4161, %v4257
        %v4290 = vsel %vm2126, %v4162, %v4258
        %v4291 = vsel %vm2126, %v4163, %v4259
        %v4292 = vsel %vm2126, %v4164, %v4260
        %v4293 = vsel %vm2126, %v4165, %v4261
        %v4294 = vsel %vm2126, %v4166, %v4262
        %v4295 = vsel %vm2126, %v4167, %v4263
        %v4296 = vsel %vm2126, %v4168, %v4264
        %v4297 = vsel %vm2126, %v4169, %v4265
        %v4298 = vsel %vm2126, %v4170, %v4266
        %s4299 = scalar_lea.vmem %s441, 512
        %4300 = vst.msk [vmem:[%s4299] sm:$0xff] %vm1291, %v4267
        %4301 = vst.msk [vmem:[%s4299 + $0x8] sm:$0xff] %vm1291, %v4268
        %4302 = vst.msk [vmem:[%s4299 + $0x10] sm:$0xff] %vm1291, %v4269
        %4303 = vst.msk [vmem:[%s4299 + $0x18] sm:$0xff] %vm1291, %v4270
        %4304 = vst.msk [vmem:[%s4299 + $0x20] sm:$0xff] %vm1291, %v4271
        %4305 = vst.msk [vmem:[%s4299 + $0x28] sm:$0xff] %vm1291, %v4272
        %4306 = vst.msk [vmem:[%s4299 + $0x30] sm:$0xff] %vm1291, %v4273
        %4307 = vst.msk [vmem:[%s4299 + $0x38] sm:$0xff] %vm1291, %v4274
        %4308 = vst.msk [vmem:[%s4299 + $0x40] sm:$0xff] %vm1291, %v4275
        %4309 = vst.msk [vmem:[%s4299 + $0x48] sm:$0xff] %vm1291, %v4276
        %4310 = vst.msk [vmem:[%s4299 + $0x50] sm:$0xff] %vm1291, %v4277
        %4311 = vst.msk [vmem:[%s4299 + $0x58] sm:$0xff] %vm1291, %v4278
        %4312 = vst.msk [vmem:[%s4299 + $0x60] sm:$0xff] %vm1291, %v4279
        %4313 = vst.msk [vmem:[%s4299 + $0x68] sm:$0xff] %vm1291, %v4280
        %4314 = vst.msk [vmem:[%s4299 + $0x70] sm:$0xff] %vm1291, %v4281
        %4315 = vst.msk [vmem:[%s4299 + $0x78] sm:$0xff] %vm1291, %v4282
        %4316 = vst.msk [vmem:[%s4299 + $0x80] sm:$0xff] %vm1291, %v4283
        %4317 = vst.msk [vmem:[%s4299 + $0x88] sm:$0xff] %vm1291, %v4284
        %4318 = vst.msk [vmem:[%s4299 + $0x90] sm:$0xff] %vm1291, %v4285
        %4319 = vst.msk [vmem:[%s4299 + $0x98] sm:$0xff] %vm1291, %v4286
        %4320 = vst.msk [vmem:[%s4299 + $0xa0] sm:$0xff] %vm1291, %v4287
        %4321 = vst.msk [vmem:[%s4299 + $0xa8] sm:$0xff] %vm1291, %v4288
        %4322 = vst.msk [vmem:[%s4299 + $0xb0] sm:$0xff] %vm1291, %v4289
        %4323 = vst.msk [vmem:[%s4299 + $0xb8] sm:$0xff] %vm1291, %v4290
        %4324 = vst.msk [vmem:[%s4299 + $0xc0] sm:$0xff] %vm1291, %v4291
        %4325 = vst.msk [vmem:[%s4299 + $0xc8] sm:$0xff] %vm1291, %v4292
        %4326 = vst.msk [vmem:[%s4299 + $0xd0] sm:$0xff] %vm1291, %v4293
        %4327 = vst.msk [vmem:[%s4299 + $0xd8] sm:$0xff] %vm1291, %v4294
        %4328 = vst.msk [vmem:[%s4299 + $0xe0] sm:$0xff] %vm1291, %v4295
        %4329 = vst.msk [vmem:[%s4299 + $0xe8] sm:$0xff] %vm1291, %v4296
        %4330 = vst.msk [vmem:[%s4299 + $0xf0] sm:$0xff] %vm1291, %v4297
        %4331 = vst.msk [vmem:[%s4299 + $0xf8] sm:$0xff] %vm1291, %v4298
        %p4332 = scmp.lt.s32.totalorder %s30, 1
        %s4333 = scalar_select %p4332, %s30, 1
        %s4334 = smul.addr %s4333, 96
        %s4335 = smul.addr %s4334, 8
        %s4336 = scalar_lea.vmem %s9, %s4335
        %s4337 = sand.u32 %s258, 1
        %s4338 = scalar_lea.sflag [#allocation3], %s4337
        %s4339 = sand.u32 %s258, 1
        %s4340 = smul.addr %s4339, 768
        %s4341 = scalar_lea.vmem [#allocation2], %s4340
        %s4342 = sand.u32 %s30, 1
        %s4343 = scalar_lea.sflag [#allocation5], %s4342
        %s4344 = sand.u32 %s284, 1
        %s4345 = smul.addr %s4344, 4
        %s4346 = scalar_lea.vmem [#allocation4], %s4345
        %s4347 = sand.u32 %s30, 1
        %s4348 = scalar_lea.sflag [#allocation5], %s4347
        %s4349 = sand.u32 %s310, 1
        %s4350 = smul.addr %s4349, 4
        %s4351 = scalar_lea.vmem [#allocation6], %s4350
        // Predicated region
        $region57: #{_forward.1} parent=55 // pred_check
          %p4352 = pneg %p242
        $region58: #{_forward.1} parent=55 // pred_check_branch
          %4354 = sbr.rel (%p4352) target = $region60
        $region59: #{_forward.1} parent=55 // pred_region
          _
        $region60: #{_forward.1} parent=55 // pred_fallthru
          _
        // Predicated region
        $region61: #{_forward.1} parent=55 // pred_check
          %p4355 = pneg %p268
        $region62: #{_forward.1} parent=55 // pred_check_branch
          %4357 = sbr.rel (%p4355) target = $region64
        $region63: #{_forward.1} parent=55 // pred_region
          %4359 = vsyncadd %s4338, 0
          %s4360 = smul.addr %s30, 96
          %s4361 = smul.addr %s4360, 8
          %s4362 = scalar_lea.hbm %s10, %s4361
          %s4363 = sshll.u32 %s4341, 4
          %s4364 = int_to_ptr.vmem [resolvable:$true] %s4363
          %s4365 = sshll.u32 %s4362, 4
          %s4366 = int_to_ptr.hbm [resolvable:$true] %s4365
          %4371 = dma.vmem_to_hbm [thread:$0]  %s4364, 12288, %s4366, %s4338, 128, 128, 8
        $region64: #{_forward.1} parent=55 // pred_fallthru
          _
        // Predicated region
        $region65: #{_forward.1} parent=55 // pred_check
          %p4372 = pneg %p294
        $region66: #{_forward.1} parent=55 // pred_check_branch
          %4374 = sbr.rel (%p4372) target = $region68
        $region67: #{_forward.1} parent=55 // pred_region
          %4376 = vsyncadd %s4343, 0
          %s4377 = smul.addr %s30, 2
          %s4378 = smul.addr %s4377, 2
          %s4379 = scalar_lea.hbm %s11, %s4378
          %s4381 = sshll.u32 %s4346, 4
          %s4382 = int_to_ptr.vmem [resolvable:$true] %s4381
          %s4383 = sshll.u32 %s4379, 4
          %s4384 = int_to_ptr.hbm [resolvable:$true] %s4383
          %4386 = dma.vmem_to_hbm [thread:$0]  %s4382, 64, %s4384, %s4343
        $region68: #{_forward.1} parent=55 // pred_fallthru
          _
        // Predicated region
        $region69: #{_forward.1} parent=55 // pred_check
          %p4387 = pneg %p320
        $region70: #{_forward.1} parent=55 // pred_check_branch
          %4389 = sbr.rel (%p4387) target = $region72
        $region71: #{_forward.1} parent=55 // pred_region
          %4391 = vsyncadd %s4348, 0
          %s4392 = smul.addr %s30, 2
          %s4393 = smul.addr %s4392, 2
          %s4394 = scalar_lea.hbm %s12, %s4393
          %s4396 = sshll.u32 %s4351, 4
          %s4397 = int_to_ptr.vmem [resolvable:$true] %s4396
          %s4398 = sshll.u32 %s4394, 4
          %s4399 = int_to_ptr.hbm [resolvable:$true] %s4398
          %4401 = dma.vmem_to_hbm [thread:$0]  %s4397, 64, %s4399, %s4348
        $region72: #{_forward.1} parent=55 // pred_fallthru
          _
      $region56: #{_forward.1} parent=5 // pred_fallthru
        _
      %p4402 = scmp.le.s32.totalorder 2, %s25
      // Predicated region
      $region73: #{_forward.1} parent=5 // pred_check
        %p4403 = pneg %p4402
      $region74: #{_forward.1} parent=5 // pred_check_branch
        %4405 = sbr.rel (%p4403) target = $region76
      $region75: #{_forward.1} parent=5 // pred_region
        %s4406 = ssub.s32 %s25, 2
        // Predicated region
        $region77: #{_forward.1} parent=75 // pred_check
          %p4407 = pneg %p248
        $region78: #{_forward.1} parent=75 // pred_check_branch
          %4409 = sbr.rel (%p4407) target = $region80
        $region79: #{_forward.1} parent=75 // pred_region
          %p4410 = scmp.lt.s32.totalorder %s31, 1
          %s4411 = scalar_select %p4410, %s31, 1
          %s4412 = smul.addr %s4411, 96
          %s4413 = smul.addr %s4412, 8
          %s4414 = scalar_lea.vmem %s9, %s4413
        $region80: #{_forward.1} parent=75 // pred_fallthru
          _
        // Predicated region
        $region81: #{_forward.1} parent=75 // pred_check
          %p4415 = pneg %p274
        $region82: #{_forward.1} parent=75 // pred_check_branch
          %4417 = sbr.rel (%p4415) target = $region84
        $region83: #{_forward.1} parent=75 // pred_region
          %s4418 = sand.u32 %s259, 1
          %s4419 = scalar_lea.sflag [#allocation3], %s4418
          %s4420 = sand.u32 %s259, 1
          %s4421 = smul.addr %s4420, 768
          %s4422 = scalar_lea.vmem [#allocation2], %s4421
          %4424 = dma.done %s4419, 12288
        $region84: #{_forward.1} parent=75 // pred_fallthru
          _
        // Predicated region
        $region85: #{_forward.1} parent=75 // pred_check
          %p4425 = pneg %p300
        $region86: #{_forward.1} parent=75 // pred_check_branch
          %4427 = sbr.rel (%p4425) target = $region88
        $region87: #{_forward.1} parent=75 // pred_region
          %s4428 = sand.u32 %s31, 1
          %s4429 = scalar_lea.sflag [#allocation5], %s4428
          %s4430 = sand.u32 %s285, 1
          %s4431 = smul.addr %s4430, 4
          %s4432 = scalar_lea.vmem [#allocation4], %s4431
          %4434 = dma.done %s4429, 64
        $region88: #{_forward.1} parent=75 // pred_fallthru
          _
        // Predicated region
        $region89: #{_forward.1} parent=75 // pred_check
          %p4435 = pneg %p326
        $region90: #{_forward.1} parent=75 // pred_check_branch
          %4437 = sbr.rel (%p4435) target = $region92
        $region91: #{_forward.1} parent=75 // pred_region
          %s4438 = sand.u32 %s31, 1
          %s4439 = scalar_lea.sflag [#allocation5], %s4438
          %s4440 = sand.u32 %s311, 1
          %s4441 = smul.addr %s4440, 4
          %s4442 = scalar_lea.vmem [#allocation6], %s4441
          %4444 = dma.done %s4439, 64
        $region92: #{_forward.1} parent=75 // pred_fallthru
          _
      $region76: #{_forward.1} parent=5 // pred_fallthru
        _
    $region6: #{_forward.1} parent=1 // loop_footer
      %s29 = sadd.s32 1, %s25
    $region7: #{_forward.1} parent=1 // loop_footer_branch
      %24 = sbr.rel target = $region3
    $region8: #{_forward.1} parent=1 // loop_exit
      _
    %4445 = vsyncpa [#allocation3], 1
    %s4446 = scalar_lea.sflag [#allocation3], 1
    %4447 = vsyncpa %s4446, 1
    %4448 = vsyncpa [#allocation5], 1
    %s4449 = scalar_lea.sflag [#allocation5], 1
    %4450 = vsyncpa %s4449, 1

</llo_original>
